<compile_context>
chip_gen: v7x
topology: tpu7x:2x2x1
jax: 0.10.0
libtpu: 0.0.40
codegen_flags: <defaults>
</compile_context>

<pallas_src>
import numpy as np

import jax
import jax.numpy as jnp
from jax.experimental import pallas as pl
from jax.experimental.pallas import tpu as pltpu


# ---------------------------------------------------------------------------
# Host-side (one-time) weight repacking
# ---------------------------------------------------------------------------
def _conv_toeplitz(w_oihw, *, w_in, w_out, stride, in_stride, out_base):
    """Fold the W-direction of a 3x3, padding=1 conv into per-kernel-row
    block-Toeplitz matrices.

    Activations are rows of length w_in*in_stride with input column w, channel c
    at lane w*in_stride + c.  Returns T with shape
    (3, (w_in-1)*in_stride + Cin, w_out*Cout) such that summing
    row_slab_kh @ T[kh] over the three kernel rows reproduces the conv along W
    (stride, W-padding and the output column order out_base(wo)+co included);
    the H direction is handled by the caller via the three row slabs."""
    cout, cin, _, _ = w_oihw.shape
    wt = np.transpose(w_oihw, (2, 3, 1, 0)).astype(np.float32)   # (3, 3, Cin, Cout)
    rows = (w_in - 1) * in_stride + cin
    t = np.zeros((3, rows, w_out * cout), np.float32)
    for kh in range(3):
        for wo in range(w_out):
            base = out_base(wo)
            for kw in range(3):
                wi = stride * wo - 1 + kw
                if 0 <= wi < w_in:
                    t[kh, wi * in_stride:wi * in_stride + cin,
                      base:base + cout] = wt[kh, kw]
    return t


def prepare_params(params):
    """One-time host-side repacking of the PyTorch-layout parameters into the
    operands the fused kernel consumes: block-Toeplitz conv matrices, tiled conv
    biases, 128-lane-padded fc matrices, and fc1 with the (C, H, W) flatten order
    folded in.  Purely a function of the weights -- done once, off the hot path."""
    (cw1, cb1), (cw2, cb2), (cw3, cb3) = [
        (np.asarray(w, np.float32), np.asarray(b, np.float32)) for w, b in params["conv"]]
    (fw1, fb1), (fw2, fb2), (fw3, fb3) = [
        (np.asarray(w, np.float32), np.asarray(b, np.float32)) for w, b in params["fc"]]

    # conv1 output columns: wo*16 + co  (dense, feeds conv2 directly).
    t1 = _conv_toeplitz(cw1, w_in=16, w_out=16, stride=1, in_stride=3,
                        out_base=lambda wo: wo * 16)
    # conv2 output columns: (wo%2)*256 + (wo//2)*32 + co  -> W-pool partners are
    # 256 lanes apart (aligned) and the pooled map is the dense layout w'*32+c.
    t2 = _conv_toeplitz(cw2, w_in=16, w_out=16, stride=1, in_stride=16,
                        out_base=lambda wo: (wo % 2) * 256 + (wo // 2) * 32)
    # conv3 (stride 2) reads the dense pooled layout (in_stride=32); output
    # columns (wo%2)*128 + (wo//2)*64 + co -> W-pool partners 128 lanes apart.
    t3 = _conv_toeplitz(cw3, w_in=8, w_out=4, stride=2, in_stride=32,
                        out_base=lambda wo: (wo % 2) * 128 + (wo // 2) * 64)
    b1t = np.tile(cb1, 16)[None, :]                  # (1, 256)
    b2t = np.tile(cb2, 16)[None, :]                  # (1, 512)
    b3t = np.tile(cb3, 4)[None, :]                   # (1, 256)

    # fc1 with PyTorch's (C, H, W) flatten folded in.  Rows are indexed by the
    # kernel's pooled feature layout: row block h'' in {0,1}, lane = w''*64 + c.
    m1 = np.zeros((2, 128, 128), np.float32)
    for hp in range(2):
        for wp in range(2):
            cols = np.arange(64) * 4 + hp * 2 + wp
            m1[hp, 64 * wp:64 * wp + 64, :64] = fw1[:, cols].T
    b1p = np.zeros((1, 128), np.float32); b1p[0, :64] = fb1
    w2p = np.zeros((128, 128), np.float32); w2p[:64, :50] = fw2.T
    b2p = np.zeros((1, 128), np.float32); b2p[0, :50] = fb2
    w3p = np.zeros((128, 128), np.float32); w3p[:50, :50] = fw3.T
    b3p = np.zeros((1, 128), np.float32); b3p[0, :50] = fb3

    ops = (t1, b1t, t2, b2t, t3, b3t, m1, b1p, w2p, b2p, w3p, b3p)
    return tuple(jnp.asarray(a) for a in ops)


# ---------------------------------------------------------------------------
# The fused kernel: the entire network in one pallas_call
# ---------------------------------------------------------------------------
def _net_kernel(a0_ref, t1_ref, b1_ref, t2_ref, b2_ref, t3_ref, b3_ref,
                m1_ref, fb1_ref, fw2_ref, fb2_ref, fw3_ref, fb3_ref,
                o_ref,
                p1_ref, p2_ref, s0_ref, s1_ref, s2_ref):
    f32 = jnp.float32
    n = a0_ref.shape[0]

    # ---- conv1: 3 -> 16, 3x3, pad 1, stride 1, + ReLU ------------------------
    # Activation rows (n, h); lanes w*16 + co after the dot.
    p1_ref[...] = jnp.zeros_like(p1_ref)             # zero H-pad rows (0 and 17)
    p1_ref[:, 1:17, :] = a0_ref[...]                 # in-kernel zero padding (H)
    acc1 = jnp.dot(p1_ref[:, 0:16, :].reshape(n * 16, 48), t1_ref[0],
                   preferred_element_type=f32)
    for kh in (1, 2):
        acc1 = acc1 + jnp.dot(p1_ref[:, kh:kh + 16, :].reshape(n * 16, 48),
                              t1_ref[kh], preferred_element_type=f32)
    y1 = jnp.maximum(acc1 + b1_ref[...], 0.0).reshape(n, 16, 256)

    # ---- conv2: 16 -> 32, 3x3, pad 1, + 2x2 max-pool + ReLU ------------------
    p2_ref[...] = jnp.zeros_like(p2_ref)
    p2_ref[:, 1:17, :] = y1
    acc2 = jnp.dot(p2_ref[:, 0:16, :].reshape(n * 16, 256), t2_ref[0],
                   preferred_element_type=f32)
    for kh in (1, 2):
        acc2 = acc2 + jnp.dot(p2_ref[:, kh:kh + 16, :].reshape(n * 16, 256),
                              t2_ref[kh], preferred_element_type=f32)
    y2 = (acc2 + b2_ref[...]).reshape(n, 16, 512)
    # 2x2 max-pool (PyTorch order: conv -> pool -> relu).  H-pool pairs adjacent
    # rows (valid results at even rows); W-pool pairs the aligned 256-lane halves
    # (that is exactly how t2's output columns were ordered).
    hm2 = jnp.maximum(y2[:, 0:15, :], y2[:, 1:16, :])
    wm2 = jnp.maximum(hm2[:, :, 0:256], hm2[:, :, 256:512])
    r2 = jnp.maximum(wm2, 0.0)          # pooled map: rows 2*h', lanes w'*32 + c

    # ---- conv3: 32 -> 64, 3x3, pad 1, stride 2, + 2x2 max-pool + ReLU --------
    # Stage the three stride-2 row slabs (one per kernel row kh) with plain
    # contiguous row copies; W-stride / W-padding live inside t3_ref.
    s0_ref[...] = jnp.zeros_like(s0_ref)             # keeps the h = -1 pad rows
    s_refs = (s0_ref, s1_ref, s2_ref)
    for kh in range(3):
        for ho in range(4):
            r = 2 * ho - 1 + kh                      # pooled input row (-1 == pad)
            if r >= 0:
                s_refs[kh][n * ho:n * ho + n, :] = r2[:, 2 * r, :]
    acc3 = jnp.dot(s0_ref[...], t3_ref[0], preferred_element_type=f32)
    for kh in (1, 2):
        acc3 = acc3 + jnp.dot(s_refs[kh][...], t3_ref[kh],
                              preferred_element_type=f32)
    y3 = acc3 + b3_ref[...]              # rows ho*n + b; cols (wo%2)*128+(wo//2)*64+co
    hm3 = jnp.maximum(y3[0:3 * n, :], y3[n:4 * n, :])        # pool over ho pairs
    wm3 = jnp.maximum(hm3[:, 0:128], hm3[:, 128:256])        # pool over wo pairs
    r3 = jnp.maximum(wm3, 0.0)           # valid rows [0, n) (h''=0) and [2n, 3n) (h''=1)

    # ---- MLP head: fc1 -> ReLU -> fc2 -> ReLU -> fc3 -------------------------
    # dropout1 / dropout2 (p=0.2) are identity at inference.  Hidden widths are
    # zero-padded to 128 lanes and the flatten order is folded into m1_ref, so
    # every matmul and the final store are unmasked and lane-dense.
    x0 = r3[0:n, :]                      # pooled features at h'' = 0
    x1 = r3[2 * n:3 * n, :]              # pooled features at h'' = 1
    z1 = (jnp.dot(x0, m1_ref[0], preferred_element_type=f32) +
          jnp.dot(x1, m1_ref[1], preferred_element_type=f32) + fb1_ref[...])
    z1 = jnp.maximum(z1, 0.0)
    z2 = jnp.maximum(jnp.dot(z1, fw2_ref[...], preferred_element_type=f32)
                     + fb2_ref[...], 0.0)
    o_ref[...] = (jnp.dot(z2, fw3_ref[...], preferred_element_type=f32)
                  + fb3_ref[...]).astype(o_ref.dtype)


# ---------------------------------------------------------------------------
# Wrapper: one tiny XLA transpose+reshape, one pallas_call, one slice.
# ---------------------------------------------------------------------------
def net_forward(x_nchw, kparams):
    """x_nchw: (N, 3, 16, 16) float32 (PyTorch layout) -> (N, 50) logits."""
    n, c, h, w = x_nchw.shape
    assert (c, h, w) == (3, 16, 16)
    # Only per-call wrapper op on the data path: NCHW -> lane-dense (N, H, W*C).
    a0 = jnp.transpose(x_nchw, (0, 2, 3, 1)).reshape(n, h, w * c)
    vmem = lambda: pl.BlockSpec(memory_space=pltpu.MemorySpace.VMEM)
    out = pl.pallas_call(
        _net_kernel,
        out_shape=jax.ShapeDtypeStruct((n, 128), jnp.float32),
        in_specs=[vmem() for _ in range(13)],
        out_specs=vmem(),
        scratch_shapes=[
            pltpu.VMEM((n, 18, 48), jnp.float32),    # H-padded conv1 input
            pltpu.VMEM((n, 18, 256), jnp.float32),   # H-padded conv2 input
            pltpu.VMEM((4 * n, 256), jnp.float32),   # conv3 row slab, kh = 0
            pltpu.VMEM((4 * n, 256), jnp.float32),   # conv3 row slab, kh = 1
            pltpu.VMEM((4 * n, 256), jnp.float32),   # conv3 row slab, kh = 2
        ],
    )(a0, *kparams)
    return out[:, :50]                   # drop the 128-lane padding


# ---------------------------------------------------------------------------
# Deterministic PyTorch-layout parameters (Conv2d: OIHW, Linear: (out, in)).
# ---------------------------------------------------------------------------
def init_params(key):
    ks = jax.random.split(key, 12)

    def conv_w(k, cout, cin):
        return jax.random.normal(k, (cout, cin, 3, 3), jnp.float32) / float(np.sqrt(9 * cin))

    def fc_w(k, cout, cin):
        return jax.random.normal(k, (cout, cin), jnp.float32) / float(np.sqrt(cin))

    def bias(k, c):
        return 0.1 * jax.random.normal(k, (c,), jnp.float32)

    conv = ((conv_w(ks[0], 16, 3),  bias(ks[1], 16)),
            (conv_w(ks[2], 32, 16), bias(ks[3], 32)),
            (conv_w(ks[4], 64, 32), bias(ks[5], 64)))
    fc = ((fc_w(ks[6], 64, 256), bias(ks[7], 64)),
          (fc_w(ks[8], 50, 64),  bias(ks[9], 50)),
          (fc_w(ks[10], 50, 50), bias(ks[11], 50)))
    return {"conv": conv, "fc": fc}


# ---------------------------------------------------------------------------
# Exact float64 NumPy re-implementation of the PyTorch module (for validation).
# ---------------------------------------------------------------------------
def _reference_forward_np(x, params):
    def conv2d(x, w, b, stride):
        n, ci, h, wd = x.shape
        co = w.shape[0]
        xp = np.pad(x, ((0, 0), (0, 0), (1, 1), (1, 1)))
        ho = (h + 2 - 3) // stride + 1
        wo = (wd + 2 - 3) // stride + 1
        out = np.zeros((n, co, ho, wo), np.float64)
        for kh in range(3):
            for kw in range(3):
                patch = xp[:, :, kh:kh + stride * ho:stride, kw:kw + stride * wo:stride]
                out += np.einsum('nchw,oc->nohw', patch, w[:, :, kh, kw])
        return out + b[None, :, None, None]

    def maxpool2(x):
        n, c, h, w = x.shape
        return x.reshape(n, c, h // 2, 2, w // 2, 2).max(axis=(3, 5))

    (cw1, cb1), (cw2, cb2), (cw3, cb3) = [
        (np.asarray(w, np.float64), np.asarray(b, np.float64)) for w, b in params["conv"]]
    (fw1, fb1), (fw2, fb2), (fw3, fb3) = [
        (np.asarray(w, np.float64), np.asarray(b, np.float64)) for w, b in params["fc"]]

    y = np.maximum(conv2d(x, cw1, cb1, 1), 0.0)
    y = np.maximum(maxpool2(conv2d(y, cw2, cb2, 1)), 0.0)
    y = np.maximum(maxpool2(conv2d(y, cw3, cb3, 2)), 0.0)
    flat = y.reshape(x.shape[0], -1)                 # (C, H, W) flatten order
    z = np.maximum(flat @ fw1.T + fb1, 0.0)
    z = np.maximum(z @ fw2.T + fb2, 0.0)
    return z @ fw3.T + fb3


if __name__ == "__main__":
    key = jax.random.PRNGKey(0)
    k_x, k_p = jax.random.split(key)

    batch = 2
    x = jax.random.normal(k_x, (batch, 3, 16, 16), jnp.float32)   # NCHW like PyTorch

    params = init_params(k_p)            # PyTorch-layout parameters
    kparams = prepare_params(params)     # one-time repack into kernel operands

    fwd = jax.jit(net_forward)
    out = jax.block_until_ready(fwd(x, kparams))
    assert out.shape == (batch, 50), out.shape
    assert out.dtype == jnp.float32

    # Cross-check against the exact float64 NumPy reference (loose tolerance to
    # allow for TPU f32/MXU accumulation differences; real bugs are O(0.1+)).
    ref = _reference_forward_np(np.asarray(x, np.float64), params)
    np.testing.assert_allclose(np.asarray(out, np.float64), ref, rtol=3e-2, atol=3e-2)
    print("KERNEL_OK")
</pallas_src>

<mosaic_0001>
module attributes {stable_mosaic.version = 11 : i64} {
  func.func @_net_kernel(%arg0: memref<2x16x48xf32, #tpu.memory_space<vmem>>, %arg1: memref<3x48x256xf32, #tpu.memory_space<vmem>>, %arg2: memref<1x256xf32, #tpu.memory_space<vmem>>, %arg3: memref<3x256x512xf32, #tpu.memory_space<vmem>>, %arg4: memref<1x512xf32, #tpu.memory_space<vmem>>, %arg5: memref<3x256x256xf32, #tpu.memory_space<vmem>>, %arg6: memref<1x256xf32, #tpu.memory_space<vmem>>, %arg7: memref<2x128x128xf32, #tpu.memory_space<vmem>>, %arg8: memref<1x128xf32, #tpu.memory_space<vmem>>, %arg9: memref<128x128xf32, #tpu.memory_space<vmem>>, %arg10: memref<1x128xf32, #tpu.memory_space<vmem>>, %arg11: memref<128x128xf32, #tpu.memory_space<vmem>>, %arg12: memref<1x128xf32, #tpu.memory_space<vmem>>, %arg13: memref<2x128xf32, #tpu.memory_space<vmem>>, %arg14: memref<2x18x48xf32, #tpu.memory_space<vmem>>, %arg15: memref<2x18x256xf32, #tpu.memory_space<vmem>>, %arg16: memref<8x256xf32, #tpu.memory_space<vmem>>, %arg17: memref<8x256xf32, #tpu.memory_space<vmem>>, %arg18: memref<8x256xf32, #tpu.memory_space<vmem>>) attributes {dimension_semantics = [], scalar_prefetch = 0 : i64, scratch_operands = 5 : i64, tpu.core_type = #tpu.core_type<tc>} {
    %cst = arith.constant 0.000000e+00 : f32
    %0 = vector.broadcast %cst : f32 to vector<2x18x48xf32>
    %c0 = arith.constant 0 : index
    %c0_0 = arith.constant 0 : index
    %c0_1 = arith.constant 0 : index
    %1 = vector.load %arg14[%c0, %c0_0, %c0_1] : memref<2x18x48xf32, #tpu.memory_space<vmem>>, vector<2x18x48xf32>
    tpu.vector_store %arg14[%c0, %c0_0, %c0_1], %0 {strides = array<i32>} : memref<2x18x48xf32, #tpu.memory_space<vmem>>, vector<2x18x48xf32>,
    %c0_2 = arith.constant 0 : index
    %c0_3 = arith.constant 0 : index
    %c0_4 = arith.constant 0 : index
    %2 = vector.load %arg0[%c0_2, %c0_3, %c0_4] : memref<2x16x48xf32, #tpu.memory_space<vmem>>, vector<2x16x48xf32>
    %c0_5 = arith.constant 0 : index
    %c1 = arith.constant 1 : index
    %c0_6 = arith.constant 0 : index
    %3 = vector.load %arg14[%c0_5, %c1, %c0_6] : memref<2x18x48xf32, #tpu.memory_space<vmem>>, vector<2x16x48xf32>
    tpu.vector_store %arg14[%c0_5, %c1, %c0_6], %2 {strides = array<i32>} : memref<2x18x48xf32, #tpu.memory_space<vmem>>, vector<2x16x48xf32>,
    %c0_7 = arith.constant 0 : index
    %c0_8 = arith.constant 0 : index
    %c0_9 = arith.constant 0 : index
    %4 = vector.load %arg14[%c0_7, %c0_8, %c0_9] : memref<2x18x48xf32, #tpu.memory_space<vmem>>, vector<2x16x48xf32>
    %5 = vector.shape_cast %4 : vector<2x16x48xf32> to vector<32x48xf32>
    %c0_10 = arith.constant 0 : index
    %c0_11 = arith.constant 0 : index
    %c0_12 = arith.constant 0 : index
    %6 = vector.load %arg1[%c0_10, %c0_11, %c0_12] : memref<3x48x256xf32, #tpu.memory_space<vmem>>, vector<1x48x256xf32>
    %7 = vector.shape_cast %6 : vector<1x48x256xf32> to vector<48x256xf32>
    %cst_13 = arith.constant dense<0.000000e+00> : vector<32x256xf32>
    %8 = tpu.matmul %5, %7, %cst_13 {dimension_numbers = #tpu.dot_dimension_numbers<[1], [0], [0], [1], [0, 0, 1, 1], [], []>} : vector<32x48xf32>, vector<48x256xf32>, vector<32x256xf32> -> vector<32x256xf32>
    %c0_14 = arith.constant 0 : index
    %c1_15 = arith.constant 1 : index
    %c0_16 = arith.constant 0 : index
    %9 = vector.load %arg14[%c0_14, %c1_15, %c0_16] : memref<2x18x48xf32, #tpu.memory_space<vmem>>, vector<2x16x48xf32>
    %10 = vector.shape_cast %9 : vector<2x16x48xf32> to vector<32x48xf32>
    %c1_17 = arith.constant 1 : index
    %c0_18 = arith.constant 0 : index
    %c0_19 = arith.constant 0 : index
    %11 = vector.load %arg1[%c1_17, %c0_18, %c0_19] : memref<3x48x256xf32, #tpu.memory_space<vmem>>, vector<1x48x256xf32>
    %12 = vector.shape_cast %11 : vector<1x48x256xf32> to vector<48x256xf32>
    %cst_20 = arith.constant dense<0.000000e+00> : vector<32x256xf32>
    %13 = tpu.matmul %10, %12, %cst_20 {dimension_numbers = #tpu.dot_dimension_numbers<[1], [0], [0], [1], [0, 0, 1, 1], [], []>} : vector<32x48xf32>, vector<48x256xf32>, vector<32x256xf32> -> vector<32x256xf32>
    %14 = arith.addf %8, %13 : vector<32x256xf32>
    %c0_21 = arith.constant 0 : index
    %c2 = arith.constant 2 : index
    %c0_22 = arith.constant 0 : index
    %15 = vector.load %arg14[%c0_21, %c2, %c0_22] : memref<2x18x48xf32, #tpu.memory_space<vmem>>, vector<2x16x48xf32>
    %16 = vector.shape_cast %15 : vector<2x16x48xf32> to vector<32x48xf32>
    %c2_23 = arith.constant 2 : index
    %c0_24 = arith.constant 0 : index
    %c0_25 = arith.constant 0 : index
    %17 = vector.load %arg1[%c2_23, %c0_24, %c0_25] : memref<3x48x256xf32, #tpu.memory_space<vmem>>, vector<1x48x256xf32>
    %18 = vector.shape_cast %17 : vector<1x48x256xf32> to vector<48x256xf32>
    %cst_26 = arith.constant dense<0.000000e+00> : vector<32x256xf32>
    %19 = tpu.matmul %16, %18, %cst_26 {dimension_numbers = #tpu.dot_dimension_numbers<[1], [0], [0], [1], [0, 0, 1, 1], [], []>} : vector<32x48xf32>, vector<48x256xf32>, vector<32x256xf32> -> vector<32x256xf32>
    %20 = arith.addf %14, %19 : vector<32x256xf32>
    %c0_27 = arith.constant 0 : index
    %c0_28 = arith.constant 0 : index
    %21 = vector.load %arg2[%c0_27, %c0_28] : memref<1x256xf32, #tpu.memory_space<vmem>>, vector<1x256xf32>
    %22 = vector.broadcast %21 : vector<1x256xf32> to vector<32x256xf32>
    %23 = arith.addf %20, %22 : vector<32x256xf32>
    %cst_29 = arith.constant 0.000000e+00 : f32
    %24 = vector.broadcast %cst_29 : f32 to vector<32x256xf32>
    %25 = arith.maximumf %23, %24 : vector<32x256xf32>
    %26 = vector.shape_cast %25 : vector<32x256xf32> to vector<2x16x256xf32>
    %cst_30 = arith.constant 0.000000e+00 : f32
    %27 = vector.broadcast %cst_30 : f32 to vector<2x18x256xf32>
    %c0_31 = arith.constant 0 : index
    %c0_32 = arith.constant 0 : index
    %c0_33 = arith.constant 0 : index
    %28 = vector.load %arg15[%c0_31, %c0_32, %c0_33] : memref<2x18x256xf32, #tpu.memory_space<vmem>>, vector<2x18x256xf32>
    tpu.vector_store %arg15[%c0_31, %c0_32, %c0_33], %27 {strides = array<i32>} : memref<2x18x256xf32, #tpu.memory_space<vmem>>, vector<2x18x256xf32>,
    %c0_34 = arith.constant 0 : index
    %c1_35 = arith.constant 1 : index
    %c0_36 = arith.constant 0 : index
    %29 = vector.load %arg15[%c0_34, %c1_35, %c0_36] : memref<2x18x256xf32, #tpu.memory_space<vmem>>, vector<2x16x256xf32>
    tpu.vector_store %arg15[%c0_34, %c1_35, %c0_36], %26 {strides = array<i32>} : memref<2x18x256xf32, #tpu.memory_space<vmem>>, vector<2x16x256xf32>,
    %c0_37 = arith.constant 0 : index
    %c0_38 = arith.constant 0 : index
    %c0_39 = arith.constant 0 : index
    %30 = vector.load %arg15[%c0_37, %c0_38, %c0_39] : memref<2x18x256xf32, #tpu.memory_space<vmem>>, vector<2x16x256xf32>
    %31 = vector.shape_cast %30 : vector<2x16x256xf32> to vector<32x256xf32>
    %c0_40 = arith.constant 0 : index
    %c0_41 = arith.constant 0 : index
    %c0_42 = arith.constant 0 : index
    %32 = vector.load %arg3[%c0_40, %c0_41, %c0_42] : memref<3x256x512xf32, #tpu.memory_space<vmem>>, vector<1x256x512xf32>
    %33 = vector.shape_cast %32 : vector<1x256x512xf32> to vector<256x512xf32>
    %cst_43 = arith.constant dense<0.000000e+00> : vector<32x512xf32>
    %34 = tpu.matmul %31, %33, %cst_43 {dimension_numbers = #tpu.dot_dimension_numbers<[1], [0], [0], [1], [0, 0, 1, 1], [], []>} : vector<32x256xf32>, vector<256x512xf32>, vector<32x512xf32> -> vector<32x512xf32>
    %c0_44 = arith.constant 0 : index
    %c1_45 = arith.constant 1 : index
    %c0_46 = arith.constant 0 : index
    %35 = vector.load %arg15[%c0_44, %c1_45, %c0_46] : memref<2x18x256xf32, #tpu.memory_space<vmem>>, vector<2x16x256xf32>
    %36 = vector.shape_cast %35 : vector<2x16x256xf32> to vector<32x256xf32>
    %c1_47 = arith.constant 1 : index
    %c0_48 = arith.constant 0 : index
    %c0_49 = arith.constant 0 : index
    %37 = vector.load %arg3[%c1_47, %c0_48, %c0_49] : memref<3x256x512xf32, #tpu.memory_space<vmem>>, vector<1x256x512xf32>
    %38 = vector.shape_cast %37 : vector<1x256x512xf32> to vector<256x512xf32>
    %cst_50 = arith.constant dense<0.000000e+00> : vector<32x512xf32>
    %39 = tpu.matmul %36, %38, %cst_50 {dimension_numbers = #tpu.dot_dimension_numbers<[1], [0], [0], [1], [0, 0, 1, 1], [], []>} : vector<32x256xf32>, vector<256x512xf32>, vector<32x512xf32> -> vector<32x512xf32>
    %40 = arith.addf %34, %39 : vector<32x512xf32>
    %c0_51 = arith.constant 0 : index
    %c2_52 = arith.constant 2 : index
    %c0_53 = arith.constant 0 : index
    %41 = vector.load %arg15[%c0_51, %c2_52, %c0_53] : memref<2x18x256xf32, #tpu.memory_space<vmem>>, vector<2x16x256xf32>
    %42 = vector.shape_cast %41 : vector<2x16x256xf32> to vector<32x256xf32>
    %c2_54 = arith.constant 2 : index
    %c0_55 = arith.constant 0 : index
    %c0_56 = arith.constant 0 : index
    %43 = vector.load %arg3[%c2_54, %c0_55, %c0_56] : memref<3x256x512xf32, #tpu.memory_space<vmem>>, vector<1x256x512xf32>
    %44 = vector.shape_cast %43 : vector<1x256x512xf32> to vector<256x512xf32>
    %cst_57 = arith.constant dense<0.000000e+00> : vector<32x512xf32>
    %45 = tpu.matmul %42, %44, %cst_57 {dimension_numbers = #tpu.dot_dimension_numbers<[1], [0], [0], [1], [0, 0, 1, 1], [], []>} : vector<32x256xf32>, vector<256x512xf32>, vector<32x512xf32> -> vector<32x512xf32>
    %46 = arith.addf %40, %45 : vector<32x512xf32>
    %c0_58 = arith.constant 0 : index
    %c0_59 = arith.constant 0 : index
    %47 = vector.load %arg4[%c0_58, %c0_59] : memref<1x512xf32, #tpu.memory_space<vmem>>, vector<1x512xf32>
    %48 = vector.broadcast %47 : vector<1x512xf32> to vector<32x512xf32>
    %49 = arith.addf %46, %48 : vector<32x512xf32>
    %50 = vector.shape_cast %49 : vector<32x512xf32> to vector<2x16x512xf32>
    %51 = vector.extract_strided_slice %50 {offsets = [0, 0, 0], sizes = [2, 15, 512], strides = [1, 1, 1]} : vector<2x16x512xf32> to vector<2x15x512xf32>
    %52 = vector.extract_strided_slice %50 {offsets = [0, 1, 0], sizes = [2, 15, 512], strides = [1, 1, 1]} : vector<2x16x512xf32> to vector<2x15x512xf32>
    %53 = arith.maximumf %51, %52 : vector<2x15x512xf32>
    %54 = vector.extract_strided_slice %53 {offsets = [0, 0, 0], sizes = [2, 15, 256], strides = [1, 1, 1]} : vector<2x15x512xf32> to vector<2x15x256xf32>
    %55 = vector.extract_strided_slice %53 {offsets = [0, 0, 256], sizes = [2, 15, 256], strides = [1, 1, 1]} : vector<2x15x512xf32> to vector<2x15x256xf32>
    %56 = arith.maximumf %54, %55 : vector<2x15x256xf32>
    %cst_60 = arith.constant 0.000000e+00 : f32
    %57 = vector.broadcast %cst_60 : f32 to vector<2x15x256xf32>
    %58 = arith.maximumf %56, %57 : vector<2x15x256xf32>
    %cst_61 = arith.constant 0.000000e+00 : f32
    %59 = vector.broadcast %cst_61 : f32 to vector<8x256xf32>
    %c0_62 = arith.constant 0 : index
    %c0_63 = arith.constant 0 : index
    %60 = vector.load %arg16[%c0_62, %c0_63] : memref<8x256xf32, #tpu.memory_space<vmem>>, vector<8x256xf32>
    tpu.vector_store %arg16[%c0_62, %c0_63], %59 {strides = array<i32>} : memref<8x256xf32, #tpu.memory_space<vmem>>, vector<8x256xf32>,
    %61 = vector.extract_strided_slice %58 {offsets = [0, 2, 0], sizes = [2, 1, 256], strides = [1, 1, 1]} : vector<2x15x256xf32> to vector<2x1x256xf32>
    %62 = vector.shape_cast %61 : vector<2x1x256xf32> to vector<2x256xf32>
    %c2_64 = arith.constant 2 : index
    %c0_65 = arith.constant 0 : index
    %63 = vector.load %arg16[%c2_64, %c0_65] : memref<8x256xf32, #tpu.memory_space<vmem>>, vector<2x256xf32>
    tpu.vector_store %arg16[%c2_64, %c0_65], %62 {strides = array<i32>} : memref<8x256xf32, #tpu.memory_space<vmem>>, vector<2x256xf32>,
    %64 = vector.extract_strided_slice %58 {offsets = [0, 6, 0], sizes = [2, 1, 256], strides = [1, 1, 1]} : vector<2x15x256xf32> to vector<2x1x256xf32>
    %65 = vector.shape_cast %64 : vector<2x1x256xf32> to vector<2x256xf32>
    %c4 = arith.constant 4 : index
    %c0_66 = arith.constant 0 : index
    %66 = vector.load %arg16[%c4, %c0_66] : memref<8x256xf32, #tpu.memory_space<vmem>>, vector<2x256xf32>
    tpu.vector_store %arg16[%c4, %c0_66], %65 {strides = array<i32>} : memref<8x256xf32, #tpu.memory_space<vmem>>, vector<2x256xf32>,
    %67 = vector.extract_strided_slice %58 {offsets = [0, 10, 0], sizes = [2, 1, 256], strides = [1, 1, 1]} : vector<2x15x256xf32> to vector<2x1x256xf32>
    %68 = vector.shape_cast %67 : vector<2x1x256xf32> to vector<2x256xf32>
    %c6 = arith.constant 6 : index
    %c0_67 = arith.constant 0 : index
    %69 = vector.load %arg16[%c6, %c0_67] : memref<8x256xf32, #tpu.memory_space<vmem>>, vector<2x256xf32>
    tpu.vector_store %arg16[%c6, %c0_67], %68 {strides = array<i32>} : memref<8x256xf32, #tpu.memory_space<vmem>>, vector<2x256xf32>,
    %70 = vector.extract_strided_slice %58 {offsets = [0, 0, 0], sizes = [2, 1, 256], strides = [1, 1, 1]} : vector<2x15x256xf32> to vector<2x1x256xf32>
    %71 = vector.shape_cast %70 : vector<2x1x256xf32> to vector<2x256xf32>
    %c0_68 = arith.constant 0 : index
    %c0_69 = arith.constant 0 : index
    %72 = vector.load %arg17[%c0_68, %c0_69] : memref<8x256xf32, #tpu.memory_space<vmem>>, vector<2x256xf32>
    tpu.vector_store %arg17[%c0_68, %c0_69], %71 {strides = array<i32>} : memref<8x256xf32, #tpu.memory_space<vmem>>, vector<2x256xf32>,
    %73 = vector.extract_strided_slice %58 {offsets = [0, 4, 0], sizes = [2, 1, 256], strides = [1, 1, 1]} : vector<2x15x256xf32> to vector<2x1x256xf32>
    %74 = vector.shape_cast %73 : vector<2x1x256xf32> to vector<2x256xf32>
    %c2_70 = arith.constant 2 : index
    %c0_71 = arith.constant 0 : index
    %75 = vector.load %arg17[%c2_70, %c0_71] : memref<8x256xf32, #tpu.memory_space<vmem>>, vector<2x256xf32>
    tpu.vector_store %arg17[%c2_70, %c0_71], %74 {strides = array<i32>} : memref<8x256xf32, #tpu.memory_space<vmem>>, vector<2x256xf32>,
    %76 = vector.extract_strided_slice %58 {offsets = [0, 8, 0], sizes = [2, 1, 256], strides = [1, 1, 1]} : vector<2x15x256xf32> to vector<2x1x256xf32>
    %77 = vector.shape_cast %76 : vector<2x1x256xf32> to vector<2x256xf32>
    %c4_72 = arith.constant 4 : index
    %c0_73 = arith.constant 0 : index
    %78 = vector.load %arg17[%c4_72, %c0_73] : memref<8x256xf32, #tpu.memory_space<vmem>>, vector<2x256xf32>
    tpu.vector_store %arg17[%c4_72, %c0_73], %77 {strides = array<i32>} : memref<8x256xf32, #tpu.memory_space<vmem>>, vector<2x256xf32>,
    %79 = vector.extract_strided_slice %58 {offsets = [0, 12, 0], sizes = [2, 1, 256], strides = [1, 1, 1]} : vector<2x15x256xf32> to vector<2x1x256xf32>
    %80 = vector.shape_cast %79 : vector<2x1x256xf32> to vector<2x256xf32>
    %c6_74 = arith.constant 6 : index
    %c0_75 = arith.constant 0 : index
    %81 = vector.load %arg17[%c6_74, %c0_75] : memref<8x256xf32, #tpu.memory_space<vmem>>, vector<2x256xf32>
    tpu.vector_store %arg17[%c6_74, %c0_75], %80 {strides = array<i32>} : memref<8x256xf32, #tpu.memory_space<vmem>>, vector<2x256xf32>,
    %82 = vector.extract_strided_slice %58 {offsets = [0, 2, 0], sizes = [2, 1, 256], strides = [1, 1, 1]} : vector<2x15x256xf32> to vector<2x1x256xf32>
    %83 = vector.shape_cast %82 : vector<2x1x256xf32> to vector<2x256xf32>
    %c0_76 = arith.constant 0 : index
    %c0_77 = arith.constant 0 : index
    %84 = vector.load %arg18[%c0_76, %c0_77] : memref<8x256xf32, #tpu.memory_space<vmem>>, vector<2x256xf32>
    tpu.vector_store %arg18[%c0_76, %c0_77], %83 {strides = array<i32>} : memref<8x256xf32, #tpu.memory_space<vmem>>, vector<2x256xf32>,
    %85 = vector.extract_strided_slice %58 {offsets = [0, 6, 0], sizes = [2, 1, 256], strides = [1, 1, 1]} : vector<2x15x256xf32> to vector<2x1x256xf32>
    %86 = vector.shape_cast %85 : vector<2x1x256xf32> to vector<2x256xf32>
    %c2_78 = arith.constant 2 : index
    %c0_79 = arith.constant 0 : index
    %87 = vector.load %arg18[%c2_78, %c0_79] : memref<8x256xf32, #tpu.memory_space<vmem>>, vector<2x256xf32>
    tpu.vector_store %arg18[%c2_78, %c0_79], %86 {strides = array<i32>} : memref<8x256xf32, #tpu.memory_space<vmem>>, vector<2x256xf32>,
    %88 = vector.extract_strided_slice %58 {offsets = [0, 10, 0], sizes = [2, 1, 256], strides = [1, 1, 1]} : vector<2x15x256xf32> to vector<2x1x256xf32>
    %89 = vector.shape_cast %88 : vector<2x1x256xf32> to vector<2x256xf32>
    %c4_80 = arith.constant 4 : index
    %c0_81 = arith.constant 0 : index
    %90 = vector.load %arg18[%c4_80, %c0_81] : memref<8x256xf32, #tpu.memory_space<vmem>>, vector<2x256xf32>
    tpu.vector_store %arg18[%c4_80, %c0_81], %89 {strides = array<i32>} : memref<8x256xf32, #tpu.memory_space<vmem>>, vector<2x256xf32>,
    %91 = vector.extract_strided_slice %58 {offsets = [0, 14, 0], sizes = [2, 1, 256], strides = [1, 1, 1]} : vector<2x15x256xf32> to vector<2x1x256xf32>
    %92 = vector.shape_cast %91 : vector<2x1x256xf32> to vector<2x256xf32>
    %c6_82 = arith.constant 6 : index
    %c0_83 = arith.constant 0 : index
    %93 = vector.load %arg18[%c6_82, %c0_83] : memref<8x256xf32, #tpu.memory_space<vmem>>, vector<2x256xf32>
    tpu.vector_store %arg18[%c6_82, %c0_83], %92 {strides = array<i32>} : memref<8x256xf32, #tpu.memory_space<vmem>>, vector<2x256xf32>,
    %c0_84 = arith.constant 0 : index
    %c0_85 = arith.constant 0 : index
    %94 = vector.load %arg16[%c0_84, %c0_85] : memref<8x256xf32, #tpu.memory_space<vmem>>, vector<8x256xf32>
    %c0_86 = arith.constant 0 : index
    %c0_87 = arith.constant 0 : index
    %c0_88 = arith.constant 0 : index
    %95 = vector.load %arg5[%c0_86, %c0_87, %c0_88] : memref<3x256x256xf32, #tpu.memory_space<vmem>>, vector<1x256x256xf32>
    %96 = vector.shape_cast %95 : vector<1x256x256xf32> to vector<256x256xf32>
    %cst_89 = arith.constant dense<0.000000e+00> : vector<8x256xf32>
    %97 = tpu.matmul %94, %96, %cst_89 {dimension_numbers = #tpu.dot_dimension_numbers<[1], [0], [0], [1], [0, 0, 1, 1], [], []>} : vector<8x256xf32>, vector<256x256xf32>, vector<8x256xf32> -> vector<8x256xf32>
    %c0_90 = arith.constant 0 : index
    %c0_91 = arith.constant 0 : index
    %98 = vector.load %arg17[%c0_90, %c0_91] : memref<8x256xf32, #tpu.memory_space<vmem>>, vector<8x256xf32>
    %c1_92 = arith.constant 1 : index
    %c0_93 = arith.constant 0 : index
    %c0_94 = arith.constant 0 : index
    %99 = vector.load %arg5[%c1_92, %c0_93, %c0_94] : memref<3x256x256xf32, #tpu.memory_space<vmem>>, vector<1x256x256xf32>
    %100 = vector.shape_cast %99 : vector<1x256x256xf32> to vector<256x256xf32>
    %cst_95 = arith.constant dense<0.000000e+00> : vector<8x256xf32>
    %101 = tpu.matmul %98, %100, %cst_95 {dimension_numbers = #tpu.dot_dimension_numbers<[1], [0], [0], [1], [0, 0, 1, 1], [], []>} : vector<8x256xf32>, vector<256x256xf32>, vector<8x256xf32> -> vector<8x256xf32>
    %102 = arith.addf %97, %101 : vector<8x256xf32>
    %c0_96 = arith.constant 0 : index
    %c0_97 = arith.constant 0 : index
    %103 = vector.load %arg18[%c0_96, %c0_97] : memref<8x256xf32, #tpu.memory_space<vmem>>, vector<8x256xf32>
    %c2_98 = arith.constant 2 : index
    %c0_99 = arith.constant 0 : index
    %c0_100 = arith.constant 0 : index
    %104 = vector.load %arg5[%c2_98, %c0_99, %c0_100] : memref<3x256x256xf32, #tpu.memory_space<vmem>>, vector<1x256x256xf32>
    %105 = vector.shape_cast %104 : vector<1x256x256xf32> to vector<256x256xf32>
    %cst_101 = arith.constant dense<0.000000e+00> : vector<8x256xf32>
    %106 = tpu.matmul %103, %105, %cst_101 {dimension_numbers = #tpu.dot_dimension_numbers<[1], [0], [0], [1], [0, 0, 1, 1], [], []>} : vector<8x256xf32>, vector<256x256xf32>, vector<8x256xf32> -> vector<8x256xf32>
    %107 = arith.addf %102, %106 : vector<8x256xf32>
    %c0_102 = arith.constant 0 : index
    %c0_103 = arith.constant 0 : index
    %108 = vector.load %arg6[%c0_102, %c0_103] : memref<1x256xf32, #tpu.memory_space<vmem>>, vector<1x256xf32>
    %109 = vector.broadcast %108 : vector<1x256xf32> to vector<8x256xf32>
    %110 = arith.addf %107, %109 : vector<8x256xf32>
    %111 = vector.extract_strided_slice %110 {offsets = [0, 0], sizes = [6, 256], strides = [1, 1]} : vector<8x256xf32> to vector<6x256xf32>
    %112 = vector.extract_strided_slice %110 {offsets = [2, 0], sizes = [6, 256], strides = [1, 1]} : vector<8x256xf32> to vector<6x256xf32>
    %113 = arith.maximumf %111, %112 : vector<6x256xf32>
    %114 = vector.extract_strided_slice %113 {offsets = [0, 0], sizes = [6, 128], strides = [1, 1]} : vector<6x256xf32> to vector<6x128xf32>
    %115 = vector.extract_strided_slice %113 {offsets = [0, 128], sizes = [6, 128], strides = [1, 1]} : vector<6x256xf32> to vector<6x128xf32>
    %116 = arith.maximumf %114, %115 : vector<6x128xf32>
    %cst_104 = arith.constant 0.000000e+00 : f32
    %117 = vector.broadcast %cst_104 : f32 to vector<6x128xf32>
    %118 = arith.maximumf %116, %117 : vector<6x128xf32>
    %119 = vector.extract_strided_slice %118 {offsets = [0, 0], sizes = [2, 128], strides = [1, 1]} : vector<6x128xf32> to vector<2x128xf32>
    %120 = vector.extract_strided_slice %118 {offsets = [4, 0], sizes = [2, 128], strides = [1, 1]} : vector<6x128xf32> to vector<2x128xf32>
    %c0_105 = arith.constant 0 : index
    %c0_106 = arith.constant 0 : index
    %c0_107 = arith.constant 0 : index
    %121 = vector.load %arg7[%c0_105, %c0_106, %c0_107] : memref<2x128x128xf32, #tpu.memory_space<vmem>>, vector<1x128x128xf32>
    %122 = vector.shape_cast %121 : vector<1x128x128xf32> to vector<128x128xf32>
    %cst_108 = arith.constant dense<0.000000e+00> : vector<2x128xf32>
    %123 = tpu.matmul %119, %122, %cst_108 {dimension_numbers = #tpu.dot_dimension_numbers<[1], [0], [0], [1], [0, 0, 1, 1], [], []>} : vector<2x128xf32>, vector<128x128xf32>, vector<2x128xf32> -> vector<2x128xf32>
    %c1_109 = arith.constant 1 : index
    %c0_110 = arith.constant 0 : index
    %c0_111 = arith.constant 0 : index
    %124 = vector.load %arg7[%c1_109, %c0_110, %c0_111] : memref<2x128x128xf32, #tpu.memory_space<vmem>>, vector<1x128x128xf32>
    %125 = vector.shape_cast %124 : vector<1x128x128xf32> to vector<128x128xf32>
    %cst_112 = arith.constant dense<0.000000e+00> : vector<2x128xf32>
    %126 = tpu.matmul %120, %125, %cst_112 {dimension_numbers = #tpu.dot_dimension_numbers<[1], [0], [0], [1], [0, 0, 1, 1], [], []>} : vector<2x128xf32>, vector<128x128xf32>, vector<2x128xf32> -> vector<2x128xf32>
    %127 = arith.addf %123, %126 : vector<2x128xf32>
    %c0_113 = arith.constant 0 : index
    %c0_114 = arith.constant 0 : index
    %128 = vector.load %arg8[%c0_113, %c0_114] : memref<1x128xf32, #tpu.memory_space<vmem>>, vector<1x128xf32>
    %129 = vector.broadcast %128 : vector<1x128xf32> to vector<2x128xf32>
    %130 = arith.addf %127, %129 : vector<2x128xf32>
    %cst_115 = arith.constant 0.000000e+00 : f32
    %131 = vector.broadcast %cst_115 : f32 to vector<2x128xf32>
    %132 = arith.maximumf %130, %131 : vector<2x128xf32>
    %c0_116 = arith.constant 0 : index
    %c0_117 = arith.constant 0 : index
    %133 = vector.load %arg9[%c0_116, %c0_117] : memref<128x128xf32, #tpu.memory_space<vmem>>, vector<128x128xf32>
    %cst_118 = arith.constant dense<0.000000e+00> : vector<2x128xf32>
    %134 = tpu.matmul %132, %133, %cst_118 {dimension_numbers = #tpu.dot_dimension_numbers<[1], [0], [0], [1], [0, 0, 1, 1], [], []>} : vector<2x128xf32>, vector<128x128xf32>, vector<2x128xf32> -> vector<2x128xf32>
    %c0_119 = arith.constant 0 : index
    %c0_120 = arith.constant 0 : index
    %135 = vector.load %arg10[%c0_119, %c0_120] : memref<1x128xf32, #tpu.memory_space<vmem>>, vector<1x128xf32>
    %136 = vector.broadcast %135 : vector<1x128xf32> to vector<2x128xf32>
    %137 = arith.addf %134, %136 : vector<2x128xf32>
    %cst_121 = arith.constant 0.000000e+00 : f32
    %138 = vector.broadcast %cst_121 : f32 to vector<2x128xf32>
    %139 = arith.maximumf %137, %138 : vector<2x128xf32>
    %c0_122 = arith.constant 0 : index
    %c0_123 = arith.constant 0 : index
    %140 = vector.load %arg11[%c0_122, %c0_123] : memref<128x128xf32, #tpu.memory_space<vmem>>, vector<128x128xf32>
    %cst_124 = arith.constant dense<0.000000e+00> : vector<2x128xf32>
    %141 = tpu.matmul %139, %140, %cst_124 {dimension_numbers = #tpu.dot_dimension_numbers<[1], [0], [0], [1], [0, 0, 1, 1], [], []>} : vector<2x128xf32>, vector<128x128xf32>, vector<2x128xf32> -> vector<2x128xf32>
    %c0_125 = arith.constant 0 : index
    %c0_126 = arith.constant 0 : index
    %142 = vector.load %arg12[%c0_125, %c0_126] : memref<1x128xf32, #tpu.memory_space<vmem>>, vector<1x128xf32>
    %143 = vector.broadcast %142 : vector<1x128xf32> to vector<2x128xf32>
    %144 = arith.addf %141, %143 : vector<2x128xf32>
    %c0_127 = arith.constant 0 : index
    %c0_128 = arith.constant 0 : index
    %145 = vector.load %arg13[%c0_127, %c0_128] : memref<2x128xf32, #tpu.memory_space<vmem>>, vector<2x128xf32>
    tpu.vector_store %arg13[%c0_127, %c0_128], %144 {strides = array<i32>} : memref<2x128xf32, #tpu.memory_space<vmem>>, vector<2x128xf32>,
    return
  }
}

</mosaic_0001>

<llo_original>
// kernel: net_forward.1
$region0: #{net_forward.1}
  #allocation0 [shape = 'u32[]', space=smem, size = 0x4, offset = 0x4, fixed_abs, tag = 'smem constant byte address 0x4 - core index']
  #allocation1 [shape = 'u32[144,128]{1,0:T(1,128)}', space=vmem, size = 0x12000, scoped, tag = 'internal scratch']
  #allocation2 [shape = 'f32[2,18,48]{2,1,0:T(8,128)}', space=vmem, size = 0x6000, scoped, tag = 'scratch operand']
  #allocation3 [shape = 'f32[2,18,256]{2,1,0:T(8,128)}', space=vmem, size = 0xc000, scoped, tag = 'scratch operand']
  #allocation4 [shape = 'f32[8,256]{1,0:T(8,128)}', space=vmem, size = 0x2000, scoped, tag = 'scratch operand']
  #allocation5 [shape = 'f32[8,256]{1,0:T(8,128)}', space=vmem, size = 0x2000, scoped, tag = 'scratch operand']
  #allocation6 [shape = 'f32[8,256]{1,0:T(8,128)}', space=vmem, size = 0x2000, scoped, tag = 'scratch operand']
  %s0 = inlined_call_operand.vmem [shape: f32[2,16,48], index: 0, kind: input, shape index: {}]
  %s1 = inlined_call_operand.hbm [shape: f32[3,48,256], index: 1, kind: input, shape index: {}]
  %s2 = inlined_call_operand.hbm [shape: f32[1,256], index: 2, kind: input, shape index: {}]
  %s3 = inlined_call_operand.hbm [shape: f32[3,256,512], index: 3, kind: input, shape index: {}]
  %s4 = inlined_call_operand.hbm [shape: f32[1,512], index: 4, kind: input, shape index: {}]
  %s5 = inlined_call_operand.hbm [shape: f32[3,256,256], index: 5, kind: input, shape index: {}]
  %s6 = inlined_call_operand.hbm [shape: f32[1,256], index: 6, kind: input, shape index: {}]
  %s7 = inlined_call_operand.hbm [shape: f32[2,128,128], index: 7, kind: input, shape index: {}]
  %s8 = inlined_call_operand.hbm [shape: f32[1,128], index: 8, kind: input, shape index: {}]
  %s9 = inlined_call_operand.hbm [shape: f32[128,128], index: 9, kind: input, shape index: {}]
  %s10 = inlined_call_operand.hbm [shape: f32[1,128], index: 10, kind: input, shape index: {}]
  %s11 = inlined_call_operand.hbm [shape: f32[128,128], index: 11, kind: input, shape index: {}]
  %s12 = inlined_call_operand.hbm [shape: f32[1,128], index: 12, kind: input, shape index: {}]
  %s13 = inlined_call_operand.hbm [shape: f32[2,128], index: 13, kind: output, shape index: {}]
  %s14 = sld [smem:[#allocation0]]
  $region110: #{net_forward.1} parent=0
    _
  %s16 = ssub.s32 1, %s14
  %s17 = scalar_select 0, %s16, %s14
  $region1: #{net_forward.1} parent=0
    #allocation7 [shape = 'u8[147456]{0}', space=vmem, size = 0x24000, scoped, tag = 'input window, operand 1, single buffered']
    #allocation8 [shape = 's32[1]{0}', space=sflag, size = 0x4, scoped, tag = 'scoped memory for net_forward.1']
    #allocation9 [shape = 's32[1]{0}', space=sflag, size = 0x4, scoped, tag = 'scoped memory for net_forward.1']
    #allocation10 [shape = 'u8[1024]{0}', space=vmem, size = 0x400, scoped, tag = 'input window, operand 2, single buffered']
    #allocation11 [shape = 's32[1]{0}', space=sflag, size = 0x4, scoped, tag = 'scoped memory for net_forward.1']
    #allocation12 [shape = 'u8[1572864]{0}', space=vmem, size = 0x180000, scoped, tag = 'input window, operand 3, single buffered']
    #allocation13 [shape = 'u8[2048]{0}', space=vmem, size = 0x800, scoped, tag = 'input window, operand 4, single buffered']
    #allocation14 [shape = 's32[1]{0}', space=sflag, size = 0x4, scoped, tag = 'scoped memory for net_forward.1']
    #allocation15 [shape = 'u8[786432]{0}', space=vmem, size = 0xc0000, scoped, tag = 'input window, operand 5, single buffered']
    #allocation16 [shape = 'u8[1024]{0}', space=vmem, size = 0x400, scoped, tag = 'input window, operand 6, single buffered']
    #allocation17 [shape = 's32[1]{0}', space=sflag, size = 0x4, scoped, tag = 'scoped memory for net_forward.1']
    #allocation18 [shape = 'u8[131072]{0}', space=vmem, size = 0x20000, scoped, tag = 'input window, operand 7, single buffered']
    #allocation19 [shape = 'u8[512]{0}', space=vmem, size = 0x400, scoped, tag = 'input window, operand 8, single buffered']
    #allocation20 [shape = 's32[1]{0}', space=sflag, size = 0x4, scoped, tag = 'scoped memory for net_forward.1']
    #allocation21 [shape = 'u8[65536]{0}', space=vmem, size = 0x10000, scoped, tag = 'input window, operand 9, single buffered']
    #allocation22 [shape = 'u8[512]{0}', space=vmem, size = 0x400, scoped, tag = 'input window, operand 10, single buffered']
    #allocation23 [shape = 's32[1]{0}', space=sflag, size = 0x4, scoped, tag = 'scoped memory for net_forward.1']
    #allocation24 [shape = 'u8[65536]{0}', space=vmem, size = 0x10000, scoped, tag = 'input window, operand 11, single buffered']
    #allocation25 [shape = 'u8[512]{0}', space=vmem, size = 0x400, scoped, tag = 'input window, operand 12, single buffered']
    #allocation26 [shape = 's32[1]{0}', space=sflag, size = 0x4, scoped, tag = 'scoped memory for net_forward.1']
    #allocation27 [shape = 'u8[1024]{0}', space=vmem, size = 0x400, scoped, tag = 'output window, operand 0, single buffered']
    %18 = vsyncpa [#allocation8], 0
    %19 = vsyncpa [#allocation11], 0
    %20 = vsyncpa [#allocation14], 0
    %21 = vsyncpa [#allocation17], 0
    %22 = vsyncpa [#allocation20], 0
    %23 = vsyncpa [#allocation23], 0
    %24 = vsyncpa [#allocation26], 0
    %25 = vsyncpa [#allocation9], 0
    // Predicated region
    $region2: #{net_forward.1} parent=1 // pred_check
      _
    $region3: #{net_forward.1} parent=1 // pred_check_branch
      %27 = sbr.rel (0) target = $region5
    $region4: #{net_forward.1} parent=1 // pred_region
      _
    $region5: #{net_forward.1} parent=1 // pred_fallthru
      _
    // Predicated region
    $region6: #{net_forward.1} parent=1 // pred_check
      _
    $region7: #{net_forward.1} parent=1 // pred_check_branch
      %29 = sbr.rel (0) target = $region9
    $region8: #{net_forward.1} parent=1 // pred_region
      %s31 = ssub.s32 4608, 4608
      %32 = vsyncadd [#allocation8], %s31
      %s33 = sshll.u32 [#allocation7], 4
      %s34 = int_to_ptr.vmem [resolvable:$true] %s33
      %39 = dma.hbm_to_vmem [thread:$0]  %s1, 4608, %s34, [#allocation8], 256, 256, 16
    $region9: #{net_forward.1} parent=1 // pred_fallthru
      _
    // Predicated region
    $region10: #{net_forward.1} parent=1 // pred_check
      _
    $region11: #{net_forward.1} parent=1 // pred_check_branch
      %41 = sbr.rel (0) target = $region13
    $region12: #{net_forward.1} parent=1 // pred_region
      %s43 = ssub.s32 32, 32
      %44 = vsyncadd [#allocation11], %s43
      %s46 = sshll.u32 [#allocation10], 4
      %s47 = int_to_ptr.vmem [resolvable:$true] %s46
      %49 = dma.hbm_to_vmem [thread:$0]  %s2, 32, %s47, [#allocation11]
    $region13: #{net_forward.1} parent=1 // pred_fallthru
      _
    // Predicated region
    $region14: #{net_forward.1} parent=1 // pred_check
      _
    $region15: #{net_forward.1} parent=1 // pred_check_branch
      %51 = sbr.rel (0) target = $region17
    $region16: #{net_forward.1} parent=1 // pred_region
      %s53 = ssub.s32 49152, 49152
      %54 = vsyncadd [#allocation11], %s53
      %s55 = sshll.u32 [#allocation12], 4
      %s56 = int_to_ptr.vmem [resolvable:$true] %s55
      %61 = dma.hbm_to_vmem [thread:$0]  %s3, 49152, %s56, [#allocation11], 512, 512, 32
    $region17: #{net_forward.1} parent=1 // pred_fallthru
      _
    // Predicated region
    $region18: #{net_forward.1} parent=1 // pred_check
      _
    $region19: #{net_forward.1} parent=1 // pred_check_branch
      %63 = sbr.rel (0) target = $region21
    $region20: #{net_forward.1} parent=1 // pred_region
      %s65 = ssub.s32 64, 64
      %66 = vsyncadd [#allocation14], %s65
      %s68 = sshll.u32 [#allocation13], 4
      %s69 = int_to_ptr.vmem [resolvable:$true] %s68
      %71 = dma.hbm_to_vmem [thread:$0]  %s4, 64, %s69, [#allocation14]
    $region21: #{net_forward.1} parent=1 // pred_fallthru
      _
    // Predicated region
    $region22: #{net_forward.1} parent=1 // pred_check
      _
    $region23: #{net_forward.1} parent=1 // pred_check_branch
      %73 = sbr.rel (0) target = $region25
    $region24: #{net_forward.1} parent=1 // pred_region
      %s75 = ssub.s32 24576, 24576
      %76 = vsyncadd [#allocation14], %s75
      %s77 = sshll.u32 [#allocation15], 4
      %s78 = int_to_ptr.vmem [resolvable:$true] %s77
      %83 = dma.hbm_to_vmem [thread:$0]  %s5, 24576, %s78, [#allocation14], 256, 256, 16
    $region25: #{net_forward.1} parent=1 // pred_fallthru
      _
    // Predicated region
    $region26: #{net_forward.1} parent=1 // pred_check
      _
    $region27: #{net_forward.1} parent=1 // pred_check_branch
      %85 = sbr.rel (0) target = $region29
    $region28: #{net_forward.1} parent=1 // pred_region
      %s87 = ssub.s32 32, 32
      %88 = vsyncadd [#allocation17], %s87
      %s90 = sshll.u32 [#allocation16], 4
      %s91 = int_to_ptr.vmem [resolvable:$true] %s90
      %93 = dma.hbm_to_vmem [thread:$0]  %s6, 32, %s91, [#allocation17]
    $region29: #{net_forward.1} parent=1 // pred_fallthru
      _
    // Predicated region
    $region30: #{net_forward.1} parent=1 // pred_check
      _
    $region31: #{net_forward.1} parent=1 // pred_check_branch
      %95 = sbr.rel (0) target = $region33
    $region32: #{net_forward.1} parent=1 // pred_region
      %s97 = ssub.s32 4096, 4096
      %98 = vsyncadd [#allocation17], %s97
      %s99 = sshll.u32 [#allocation18], 4
      %s100 = int_to_ptr.vmem [resolvable:$true] %s99
      %105 = dma.hbm_to_vmem [thread:$0]  %s7, 4096, %s100, [#allocation17], 128, 128, 8
    $region33: #{net_forward.1} parent=1 // pred_fallthru
      _
    // Predicated region
    $region34: #{net_forward.1} parent=1 // pred_check
      _
    $region35: #{net_forward.1} parent=1 // pred_check_branch
      %107 = sbr.rel (0) target = $region37
    $region36: #{net_forward.1} parent=1 // pred_region
      %s109 = ssub.s32 16, 16
      %110 = vsyncadd [#allocation20], %s109
      %s112 = sshll.u32 [#allocation19], 4
      %s113 = int_to_ptr.vmem [resolvable:$true] %s112
      %115 = dma.hbm_to_vmem [thread:$0]  %s8, 16, %s113, [#allocation20]
    $region37: #{net_forward.1} parent=1 // pred_fallthru
      _
    // Predicated region
    $region38: #{net_forward.1} parent=1 // pred_check
      _
    $region39: #{net_forward.1} parent=1 // pred_check_branch
      %117 = sbr.rel (0) target = $region41
    $region40: #{net_forward.1} parent=1 // pred_region
      %s119 = ssub.s32 2048, 2048
      %120 = vsyncadd [#allocation20], %s119
      %s121 = sshll.u32 [#allocation21], 4
      %s122 = int_to_ptr.vmem [resolvable:$true] %s121
      %127 = dma.hbm_to_vmem [thread:$0]  %s9, 2048, %s122, [#allocation20], 128, 128, 8
    $region41: #{net_forward.1} parent=1 // pred_fallthru
      _
    // Predicated region
    $region42: #{net_forward.1} parent=1 // pred_check
      _
    $region43: #{net_forward.1} parent=1 // pred_check_branch
      %129 = sbr.rel (0) target = $region45
    $region44: #{net_forward.1} parent=1 // pred_region
      %s131 = ssub.s32 16, 16
      %132 = vsyncadd [#allocation23], %s131
      %s134 = sshll.u32 [#allocation22], 4
      %s135 = int_to_ptr.vmem [resolvable:$true] %s134
      %137 = dma.hbm_to_vmem [thread:$0]  %s10, 16, %s135, [#allocation23]
    $region45: #{net_forward.1} parent=1 // pred_fallthru
      _
    // Predicated region
    $region46: #{net_forward.1} parent=1 // pred_check
      _
    $region47: #{net_forward.1} parent=1 // pred_check_branch
      %139 = sbr.rel (0) target = $region49
    $region48: #{net_forward.1} parent=1 // pred_region
      %s141 = ssub.s32 2048, 2048
      %142 = vsyncadd [#allocation23], %s141
      %s143 = sshll.u32 [#allocation24], 4
      %s144 = int_to_ptr.vmem [resolvable:$true] %s143
      %149 = dma.hbm_to_vmem [thread:$0]  %s11, 2048, %s144, [#allocation23], 128, 128, 8
    $region49: #{net_forward.1} parent=1 // pred_fallthru
      _
    // Predicated region
    $region50: #{net_forward.1} parent=1 // pred_check
      _
    $region51: #{net_forward.1} parent=1 // pred_check_branch
      %151 = sbr.rel (0) target = $region53
    $region52: #{net_forward.1} parent=1 // pred_region
      %s153 = ssub.s32 16, 16
      %154 = vsyncadd [#allocation26], %s153
      %s156 = sshll.u32 [#allocation25], 4
      %s157 = int_to_ptr.vmem [resolvable:$true] %s156
      %159 = dma.hbm_to_vmem [thread:$0]  %s12, 16, %s157, [#allocation26]
    $region53: #{net_forward.1} parent=1 // pred_fallthru
      _
    // Predicated region
    $region54: #{net_forward.1} parent=1 // pred_check
      _
    $region55: #{net_forward.1} parent=1 // pred_check_branch
      %161 = sbr.rel (0) target = $region57
    $region56: #{net_forward.1} parent=1 // pred_region
      %162 = dma.done [#allocation8], 4608
    $region57: #{net_forward.1} parent=1 // pred_fallthru
      _
    // Predicated region
    $region58: #{net_forward.1} parent=1 // pred_check
      _
    $region59: #{net_forward.1} parent=1 // pred_check_branch
      %164 = sbr.rel (0) target = $region61
    $region60: #{net_forward.1} parent=1 // pred_region
      %165 = dma.done [#allocation11], 32
    $region61: #{net_forward.1} parent=1 // pred_fallthru
      _
    // Predicated region
    $region62: #{net_forward.1} parent=1 // pred_check
      _
    $region63: #{net_forward.1} parent=1 // pred_check_branch
      %167 = sbr.rel (0) target = $region65
    $region64: #{net_forward.1} parent=1 // pred_region
      %168 = dma.done [#allocation11], 49152
    $region65: #{net_forward.1} parent=1 // pred_fallthru
      _
    // Predicated region
    $region66: #{net_forward.1} parent=1 // pred_check
      _
    $region67: #{net_forward.1} parent=1 // pred_check_branch
      %170 = sbr.rel (0) target = $region69
    $region68: #{net_forward.1} parent=1 // pred_region
      %171 = dma.done [#allocation14], 64
    $region69: #{net_forward.1} parent=1 // pred_fallthru
      _
    // Predicated region
    $region70: #{net_forward.1} parent=1 // pred_check
      _
    $region71: #{net_forward.1} parent=1 // pred_check_branch
      %173 = sbr.rel (0) target = $region73
    $region72: #{net_forward.1} parent=1 // pred_region
      %174 = dma.done [#allocation14], 24576
    $region73: #{net_forward.1} parent=1 // pred_fallthru
      _
    // Predicated region
    $region74: #{net_forward.1} parent=1 // pred_check
      _
    $region75: #{net_forward.1} parent=1 // pred_check_branch
      %176 = sbr.rel (0) target = $region77
    $region76: #{net_forward.1} parent=1 // pred_region
      %177 = dma.done [#allocation17], 32
    $region77: #{net_forward.1} parent=1 // pred_fallthru
      _
    // Predicated region
    $region78: #{net_forward.1} parent=1 // pred_check
      _
    $region79: #{net_forward.1} parent=1 // pred_check_branch
      %179 = sbr.rel (0) target = $region81
    $region80: #{net_forward.1} parent=1 // pred_region
      %180 = dma.done [#allocation17], 4096
    $region81: #{net_forward.1} parent=1 // pred_fallthru
      _
    // Predicated region
    $region82: #{net_forward.1} parent=1 // pred_check
      _
    $region83: #{net_forward.1} parent=1 // pred_check_branch
      %182 = sbr.rel (0) target = $region85
    $region84: #{net_forward.1} parent=1 // pred_region
      %183 = dma.done [#allocation20], 16
    $region85: #{net_forward.1} parent=1 // pred_fallthru
      _
    // Predicated region
    $region86: #{net_forward.1} parent=1 // pred_check
      _
    $region87: #{net_forward.1} parent=1 // pred_check_branch
      %185 = sbr.rel (0) target = $region89
    $region88: #{net_forward.1} parent=1 // pred_region
      %186 = dma.done [#allocation20], 2048
    $region89: #{net_forward.1} parent=1 // pred_fallthru
      _
    // Predicated region
    $region90: #{net_forward.1} parent=1 // pred_check
      _
    $region91: #{net_forward.1} parent=1 // pred_check_branch
      %188 = sbr.rel (0) target = $region93
    $region92: #{net_forward.1} parent=1 // pred_region
      %189 = dma.done [#allocation23], 16
    $region93: #{net_forward.1} parent=1 // pred_fallthru
      _
    // Predicated region
    $region94: #{net_forward.1} parent=1 // pred_check
      _
    $region95: #{net_forward.1} parent=1 // pred_check_branch
      %191 = sbr.rel (0) target = $region97
    $region96: #{net_forward.1} parent=1 // pred_region
      %192 = dma.done [#allocation23], 2048
    $region97: #{net_forward.1} parent=1 // pred_fallthru
      _
    // Predicated region
    $region98: #{net_forward.1} parent=1 // pred_check
      _
    $region99: #{net_forward.1} parent=1 // pred_check_branch
      %194 = sbr.rel (0) target = $region101
    $region100: #{net_forward.1} parent=1 // pred_region
      %195 = dma.done [#allocation26], 16
    $region101: #{net_forward.1} parent=1 // pred_fallthru
      _
    %vm196 = vcmask 392192
    %197 = vst.msk [vmem:[#allocation2] sm:$0xff] %vm196, 0.0
    %198 = vst.msk [vmem:[#allocation2 + $0x8] sm:$0xff] %vm196, 0.0
    %vm199 = vcmask 386048
    %200 = vst.msk [vmem:[#allocation2 + $0x10] sm:$0x3] %vm199, 0.0
    %201 = vst.msk [vmem:[#allocation2 + $0x18] sm:$0xff] %vm196, 0.0
    %202 = vst.msk [vmem:[#allocation2 + $0x20] sm:$0xff] %vm196, 0.0
    %203 = vst.msk [vmem:[#allocation2 + $0x28] sm:$0x3] %vm199, 0.0
    %v204 = vld [vmem:[%s0] sm:$0xff]
    %v205 = vld [vmem:[%s0 + $0x8] sm:$0xff]
    %v206 = vld [vmem:[%s0 + $0x10] sm:$0xff]
    %v207 = vld [vmem:[%s0 + $0x18] sm:$0xff]
    %208 = vst.msk [vmem:[#allocation2 + $0x1] sm:$0xff] %vm196, %v204
    %209 = vst.msk [vmem:[#allocation2 + $0x9] sm:$0xff] %vm196, %v205
    %210 = vst.msk [vmem:[#allocation2 + $0x19] sm:$0xff] %vm196, %v206
    %211 = vst.msk [vmem:[#allocation2 + $0x21] sm:$0xff] %vm196, %v207
    %v212 = vld [vmem:[#allocation2] sm:$0xff]
    %v213 = vld [vmem:[#allocation2 + $0x8] sm:$0xff]
    %v214 = vld [vmem:[#allocation2 + $0x18] sm:$0xff]
    %v215 = vld [vmem:[#allocation2 + $0x20] sm:$0xff]
    %v216 = vld [vmem:[#allocation7] sm:$0xff]
    %v217 = vld [vmem:[#allocation7 + $0x8] sm:$0xff]
    %v218 = vld [vmem:[#allocation7 + $0x10] sm:$0xff]
    %v219 = vld [vmem:[#allocation7 + $0x18] sm:$0xff]
    %v220 = vld [vmem:[#allocation7 + $0x20] sm:$0xff]
    %v221 = vld [vmem:[#allocation7 + $0x28] sm:$0xff]
    %v222 = vld [vmem:[#allocation7 + $0x30] sm:$0xff]
    %v223 = vld [vmem:[#allocation7 + $0x38] sm:$0xff]
    %v224 = vld [vmem:[#allocation7 + $0x40] sm:$0xff]
    %v225 = vld [vmem:[#allocation7 + $0x48] sm:$0xff]
    %v226 = vld [vmem:[#allocation7 + $0x50] sm:$0xff]
    %v227 = vld [vmem:[#allocation7 + $0x58] sm:$0xff]
    %v228 = vld [vmem:[#allocation2 + $0x1] sm:$0xff]
    %v229 = vld [vmem:[#allocation2 + $0x9] sm:$0xff]
    %v230 = vld [vmem:[#allocation2 + $0x19] sm:$0xff]
    %v231 = vld [vmem:[#allocation2 + $0x21] sm:$0xff]
    %s232 = scalar_lea.vmem [#allocation7], 96
    %v233 = vld [vmem:[%s232] sm:$0xff]
    %v234 = vld [vmem:[%s232 + $0x8] sm:$0xff]
    %v235 = vld [vmem:[%s232 + $0x10] sm:$0xff]
    %v236 = vld [vmem:[%s232 + $0x18] sm:$0xff]
    %v237 = vld [vmem:[%s232 + $0x20] sm:$0xff]
    %v238 = vld [vmem:[%s232 + $0x28] sm:$0xff]
    %v239 = vld [vmem:[%s232 + $0x30] sm:$0xff]
    %v240 = vld [vmem:[%s232 + $0x38] sm:$0xff]
    %v241 = vld [vmem:[%s232 + $0x40] sm:$0xff]
    %v242 = vld [vmem:[%s232 + $0x48] sm:$0xff]
    %v243 = vld [vmem:[%s232 + $0x50] sm:$0xff]
    %v244 = vld [vmem:[%s232 + $0x58] sm:$0xff]
    %v246 = vsel %vm196, %v228, 0
    %v249 = vsel %vm196, %v229, 0
    %v252 = vsel %vm196, %v230, 0
    %v255 = vsel %vm196, %v231, 0
    %257 = vmatprep.subr.mxu0 %v234
    %258 = vmatpush1.msra.mxu0 %v233
    %259 = vmatprep.subr.mxu0 %v236
    %260 = vmatpush1.msra.mxu0 %v235
    %261 = vmatprep.subr.mxu0 %v238
    %262 = vmatpush1.msra.mxu0 %v237
    %263 = vmatprep.subr.mxu0 %v240
    %264 = vmatpush1.msra.mxu0 %v239
    %265 = vmatprep.subr.mxu0 %v242
    %266 = vmatpush1.msra.mxu0 %v241
    %267 = vmatprep.subr.mxu0 %v244
    %268 = vmatpush1.msra.mxu0 %v243
    %269 = vmatprep.subr.mxu0 0.0
    %270 = vmatpush1.msra.mxu0 0.0
    %271 = vmatprep.subr.mxu0 0.0
    %272 = vmatpush1.msra.mxu0 0.0
    %273 = vmatprep.subr.mxu0 0.0
    %274 = vmatpush1.msra.mxu0 0.0
    %275 = vmatprep.subr.mxu0 0.0
    %276 = vmatpush1.msra.mxu0 0.0
    %277 = vmatprep.subr.mxu0 0.0
    %278 = vmatpush1.msra.mxu0 0.0
    %279 = vmatprep.subr.mxu0 0.0
    %280 = vmatpush1.msra.mxu0 0.0
    %281 = vmatprep.subr.mxu0 0.0
    %282 = vmatpush1.msra.mxu0 0.0
    %283 = vmatprep.subr.mxu0 0.0
    %284 = vmatpush1.msra.mxu0 0.0
    %285 = vmatprep.subr.mxu0 0.0
    %286 = vmatpush1.msra.mxu0 0.0
    %287 = vmatprep.subr.mxu0 0.0
    %288 = vmatpush1.msra.mxu0 0.0
    %289 = vmatprep.subr.mxu0 0.0
    %290 = vmatpush1.msra.mxu0 0.0
    %291 = vmatprep.subr.mxu0 0.0
    %292 = vmatpush1.msra.mxu0 0.0
    %293 = vmatprep.subr.mxu0 0.0
    %294 = vmatpush1.msra.mxu0 0.0
    %295 = vmatprep.subr.mxu0 0.0
    %296 = vmatpush1.msra.mxu0 0.0
    %297 = vmatprep.subr.mxu0 0.0
    %298 = vmatpush1.msra.mxu0 0.0
    %299 = vmatprep.subr.mxu0 0.0
    %300 = vmatpush1.msra.mxu0 0.0
    %301 = vmatprep.subr.mxu0 0.0
    %302 = vmatpush1.msra.mxu0 0.0
    %303 = vmatprep.subr.mxu0 0.0
    %304 = vmatpush1.msra.mxu0 0.0
    %305 = vmatprep.subr.mxu0 0.0
    %306 = vmatpush1.msra.mxu0 0.0
    %307 = vmatprep.subr.mxu0 0.0
    %308 = vmatpush1.msra.mxu0 0.0
    %309 = vmatprep.subr.mxu0 0.0
    %310 = vmatpush1.msra.mxu0 0.0
    %311 = vmatprep.subr.mxu0 0.0
    %312 = vmatpush1.msra.mxu0 0.0
    %313 = vmatprep.subr.mxu0 0.0
    %314 = vmatpush1.msra.mxu0 0.0
    %315 = vmatprep.subr.mxu0 0.0
    %316 = vmatpush1.msra.mxu0 0.0
    %317 = vmatprep.subr.mxu0 0.0
    %318 = vmatpush1.msra.mxu0 0.0
    %319 = vmatprep.subr.mxu0 0.0
    %320 = vmatpush1.msra.mxu0 0.0
    %321 = vmatprep.mubr.f32.mxu0 0.0
    %322 = vmatmul.mubr.f32.gmra.mrb[0].mxu0 %v246
    %v323 = vpop.f32.mrb[0].mxu0
    %v324 = vadd.f32 0.0, %v323
    %v325 = vpop.f32.mrb[0].mxu0
    %v326 = vadd.f32 0.0, %v325
    %327 = vmatprep.mubr.f32.mxu0 0.0
    %328 = vmatmul.mubr.f32.gmra.mrb[0].mxu0 %v249
    %v329 = vpop.f32.mrb[0].mxu0
    %v330 = vadd.f32 0.0, %v329
    %v331 = vpop.f32.mrb[0].mxu0
    %v332 = vadd.f32 0.0, %v331
    %333 = vmatprep.mubr.f32.mxu0 0.0
    %334 = vmatmul.mubr.f32.gmra.mrb[0].mxu0 %v252
    %v335 = vpop.f32.mrb[0].mxu0
    %v336 = vadd.f32 0.0, %v335
    %v337 = vpop.f32.mrb[0].mxu0
    %v338 = vadd.f32 0.0, %v337
    %339 = vmatprep.mubr.f32.mxu0 0.0
    %340 = vmatmul.mubr.f32.gmra.mrb[0].mxu0 %v255
    %v341 = vpop.f32.mrb[0].mxu0
    %v342 = vadd.f32 0.0, %v341
    %v343 = vpop.f32.mrb[0].mxu0
    %v344 = vadd.f32 0.0, %v343
    %345 = vdwg.mxu0
    %v347 = vsel %vm196, %v212, 0
    %v350 = vsel %vm196, %v213, 0
    %v353 = vsel %vm196, %v214, 0
    %v356 = vsel %vm196, %v215, 0
    %358 = vmatprep.subr.mxu0 %v217
    %359 = vmatpush1.msra.mxu0 %v216
    %360 = vmatprep.subr.mxu0 %v219
    %361 = vmatpush1.msra.mxu0 %v218
    %362 = vmatprep.subr.mxu0 %v221
    %363 = vmatpush1.msra.mxu0 %v220
    %364 = vmatprep.subr.mxu0 %v223
    %365 = vmatpush1.msra.mxu0 %v222
    %366 = vmatprep.subr.mxu0 %v225
    %367 = vmatpush1.msra.mxu0 %v224
    %368 = vmatprep.subr.mxu0 %v227
    %369 = vmatpush1.msra.mxu0 %v226
    %370 = vmatprep.subr.mxu0 0.0
    %371 = vmatpush1.msra.mxu0 0.0
    %372 = vmatprep.subr.mxu0 0.0
    %373 = vmatpush1.msra.mxu0 0.0
    %374 = vmatprep.subr.mxu0 0.0
    %375 = vmatpush1.msra.mxu0 0.0
    %376 = vmatprep.subr.mxu0 0.0
    %377 = vmatpush1.msra.mxu0 0.0
    %378 = vmatprep.subr.mxu0 0.0
    %379 = vmatpush1.msra.mxu0 0.0
    %380 = vmatprep.subr.mxu0 0.0
    %381 = vmatpush1.msra.mxu0 0.0
    %382 = vmatprep.subr.mxu0 0.0
    %383 = vmatpush1.msra.mxu0 0.0
    %384 = vmatprep.subr.mxu0 0.0
    %385 = vmatpush1.msra.mxu0 0.0
    %386 = vmatprep.subr.mxu0 0.0
    %387 = vmatpush1.msra.mxu0 0.0
    %388 = vmatprep.subr.mxu0 0.0
    %389 = vmatpush1.msra.mxu0 0.0
    %390 = vmatprep.subr.mxu0 0.0
    %391 = vmatpush1.msra.mxu0 0.0
    %392 = vmatprep.subr.mxu0 0.0
    %393 = vmatpush1.msra.mxu0 0.0
    %394 = vmatprep.subr.mxu0 0.0
    %395 = vmatpush1.msra.mxu0 0.0
    %396 = vmatprep.subr.mxu0 0.0
    %397 = vmatpush1.msra.mxu0 0.0
    %398 = vmatprep.subr.mxu0 0.0
    %399 = vmatpush1.msra.mxu0 0.0
    %400 = vmatprep.subr.mxu0 0.0
    %401 = vmatpush1.msra.mxu0 0.0
    %402 = vmatprep.subr.mxu0 0.0
    %403 = vmatpush1.msra.mxu0 0.0
    %404 = vmatprep.subr.mxu0 0.0
    %405 = vmatpush1.msra.mxu0 0.0
    %406 = vmatprep.subr.mxu0 0.0
    %407 = vmatpush1.msra.mxu0 0.0
    %408 = vmatprep.subr.mxu0 0.0
    %409 = vmatpush1.msra.mxu0 0.0
    %410 = vmatprep.subr.mxu0 0.0
    %411 = vmatpush1.msra.mxu0 0.0
    %412 = vmatprep.subr.mxu0 0.0
    %413 = vmatpush1.msra.mxu0 0.0
    %414 = vmatprep.subr.mxu0 0.0
    %415 = vmatpush1.msra.mxu0 0.0
    %416 = vmatprep.subr.mxu0 0.0
    %417 = vmatpush1.msra.mxu0 0.0
    %418 = vmatprep.subr.mxu0 0.0
    %419 = vmatpush1.msra.mxu0 0.0
    %420 = vmatprep.subr.mxu0 0.0
    %421 = vmatpush1.msra.mxu0 0.0
    %422 = vmatprep.mubr.f32.mxu0 0.0
    %423 = vmatmul.mubr.f32.gmra.mrb[0].mxu0 %v347
    %v424 = vpop.f32.mrb[0].mxu0
    %v425 = vadd.f32 %v324, %v424
    %v426 = vpop.f32.mrb[0].mxu0
    %v427 = vadd.f32 %v326, %v426
    %428 = vmatprep.mubr.f32.mxu0 0.0
    %429 = vmatmul.mubr.f32.gmra.mrb[0].mxu0 %v350
    %v430 = vpop.f32.mrb[0].mxu0
    %v431 = vadd.f32 %v330, %v430
    %v432 = vpop.f32.mrb[0].mxu0
    %v433 = vadd.f32 %v332, %v432
    %434 = vmatprep.mubr.f32.mxu0 0.0
    %435 = vmatmul.mubr.f32.gmra.mrb[0].mxu0 %v353
    %v436 = vpop.f32.mrb[0].mxu0
    %v437 = vadd.f32 %v336, %v436
    %v438 = vpop.f32.mrb[0].mxu0
    %v439 = vadd.f32 %v338, %v438
    %440 = vmatprep.mubr.f32.mxu0 0.0
    %441 = vmatmul.mubr.f32.gmra.mrb[0].mxu0 %v356
    %v442 = vpop.f32.mrb[0].mxu0
    %v443 = vadd.f32 %v342, %v442
    %v444 = vpop.f32.mrb[0].mxu0
    %v445 = vadd.f32 %v344, %v444
    %446 = vdwg.mxu0
    %v447 = vld [vmem:[#allocation2 + $0x2] sm:$0xff]
    %v448 = vld [vmem:[#allocation2 + $0xa] sm:$0xff]
    %v449 = vld [vmem:[#allocation2 + $0x1a] sm:$0xff]
    %v450 = vld [vmem:[#allocation2 + $0x22] sm:$0xff]
    %s451 = scalar_lea.vmem [#allocation7], 192
    %v452 = vld [vmem:[%s451] sm:$0xff]
    %v453 = vld [vmem:[%s451 + $0x8] sm:$0xff]
    %v454 = vld [vmem:[%s451 + $0x10] sm:$0xff]
    %v455 = vld [vmem:[%s451 + $0x18] sm:$0xff]
    %v456 = vld [vmem:[%s451 + $0x20] sm:$0xff]
    %v457 = vld [vmem:[%s451 + $0x28] sm:$0xff]
    %v458 = vld [vmem:[%s451 + $0x30] sm:$0xff]
    %v459 = vld [vmem:[%s451 + $0x38] sm:$0xff]
    %v460 = vld [vmem:[%s451 + $0x40] sm:$0xff]
    %v461 = vld [vmem:[%s451 + $0x48] sm:$0xff]
    %v462 = vld [vmem:[%s451 + $0x50] sm:$0xff]
    %v463 = vld [vmem:[%s451 + $0x58] sm:$0xff]
    %v465 = vsel %vm196, %v447, 0
    %v468 = vsel %vm196, %v448, 0
    %v471 = vsel %vm196, %v449, 0
    %v474 = vsel %vm196, %v450, 0
    %476 = vmatprep.subr.mxu0 %v453
    %477 = vmatpush1.msra.mxu0 %v452
    %478 = vmatprep.subr.mxu0 %v455
    %479 = vmatpush1.msra.mxu0 %v454
    %480 = vmatprep.subr.mxu0 %v457
    %481 = vmatpush1.msra.mxu0 %v456
    %482 = vmatprep.subr.mxu0 %v459
    %483 = vmatpush1.msra.mxu0 %v458
    %484 = vmatprep.subr.mxu0 %v461
    %485 = vmatpush1.msra.mxu0 %v460
    %486 = vmatprep.subr.mxu0 %v463
    %487 = vmatpush1.msra.mxu0 %v462
    %488 = vmatprep.subr.mxu0 0.0
    %489 = vmatpush1.msra.mxu0 0.0
    %490 = vmatprep.subr.mxu0 0.0
    %491 = vmatpush1.msra.mxu0 0.0
    %492 = vmatprep.subr.mxu0 0.0
    %493 = vmatpush1.msra.mxu0 0.0
    %494 = vmatprep.subr.mxu0 0.0
    %495 = vmatpush1.msra.mxu0 0.0
    %496 = vmatprep.subr.mxu0 0.0
    %497 = vmatpush1.msra.mxu0 0.0
    %498 = vmatprep.subr.mxu0 0.0
    %499 = vmatpush1.msra.mxu0 0.0
    %500 = vmatprep.subr.mxu0 0.0
    %501 = vmatpush1.msra.mxu0 0.0
    %502 = vmatprep.subr.mxu0 0.0
    %503 = vmatpush1.msra.mxu0 0.0
    %504 = vmatprep.subr.mxu0 0.0
    %505 = vmatpush1.msra.mxu0 0.0
    %506 = vmatprep.subr.mxu0 0.0
    %507 = vmatpush1.msra.mxu0 0.0
    %508 = vmatprep.subr.mxu0 0.0
    %509 = vmatpush1.msra.mxu0 0.0
    %510 = vmatprep.subr.mxu0 0.0
    %511 = vmatpush1.msra.mxu0 0.0
    %512 = vmatprep.subr.mxu0 0.0
    %513 = vmatpush1.msra.mxu0 0.0
    %514 = vmatprep.subr.mxu0 0.0
    %515 = vmatpush1.msra.mxu0 0.0
    %516 = vmatprep.subr.mxu0 0.0
    %517 = vmatpush1.msra.mxu0 0.0
    %518 = vmatprep.subr.mxu0 0.0
    %519 = vmatpush1.msra.mxu0 0.0
    %520 = vmatprep.subr.mxu0 0.0
    %521 = vmatpush1.msra.mxu0 0.0
    %522 = vmatprep.subr.mxu0 0.0
    %523 = vmatpush1.msra.mxu0 0.0
    %524 = vmatprep.subr.mxu0 0.0
    %525 = vmatpush1.msra.mxu0 0.0
    %526 = vmatprep.subr.mxu0 0.0
    %527 = vmatpush1.msra.mxu0 0.0
    %528 = vmatprep.subr.mxu0 0.0
    %529 = vmatpush1.msra.mxu0 0.0
    %530 = vmatprep.subr.mxu0 0.0
    %531 = vmatpush1.msra.mxu0 0.0
    %532 = vmatprep.subr.mxu0 0.0
    %533 = vmatpush1.msra.mxu0 0.0
    %534 = vmatprep.subr.mxu0 0.0
    %535 = vmatpush1.msra.mxu0 0.0
    %536 = vmatprep.subr.mxu0 0.0
    %537 = vmatpush1.msra.mxu0 0.0
    %538 = vmatprep.subr.mxu0 0.0
    %539 = vmatpush1.msra.mxu0 0.0
    %540 = vmatprep.mubr.f32.mxu0 0.0
    %541 = vmatmul.mubr.f32.gmra.mrb[0].mxu0 %v465
    %v542 = vpop.f32.mrb[0].mxu0
    %v543 = vadd.f32 0.0, %v542
    %v544 = vpop.f32.mrb[0].mxu0
    %v545 = vadd.f32 0.0, %v544
    %546 = vmatprep.mubr.f32.mxu0 0.0
    %547 = vmatmul.mubr.f32.gmra.mrb[0].mxu0 %v468
    %v548 = vpop.f32.mrb[0].mxu0
    %v549 = vadd.f32 0.0, %v548
    %v550 = vpop.f32.mrb[0].mxu0
    %v551 = vadd.f32 0.0, %v550
    %552 = vmatprep.mubr.f32.mxu0 0.0
    %553 = vmatmul.mubr.f32.gmra.mrb[0].mxu0 %v471
    %v554 = vpop.f32.mrb[0].mxu0
    %v555 = vadd.f32 0.0, %v554
    %v556 = vpop.f32.mrb[0].mxu0
    %v557 = vadd.f32 0.0, %v556
    %558 = vmatprep.mubr.f32.mxu0 0.0
    %559 = vmatmul.mubr.f32.gmra.mrb[0].mxu0 %v474
    %v560 = vpop.f32.mrb[0].mxu0
    %v561 = vadd.f32 0.0, %v560
    %v562 = vpop.f32.mrb[0].mxu0
    %v563 = vadd.f32 0.0, %v562
    %564 = vdwg.mxu0
    %v565 = vadd.f32 %v425, %v543
    %v566 = vadd.f32 %v427, %v545
    %v567 = vadd.f32 %v431, %v549
    %v568 = vadd.f32 %v433, %v551
    %v569 = vadd.f32 %v437, %v555
    %v570 = vadd.f32 %v439, %v557
    %v571 = vadd.f32 %v443, %v561
    %v572 = vadd.f32 %v445, %v563
    %v573 = vld [vmem:[#allocation10] sm:$0x3]
    %v575 = vlaneseq
    %v576 = vshrl.u32 %v575, 7
    %v577 = vsub.s32 0, %v576
    %v578 = vrot.slane %v573, %v577
    %v579 = vlaneseq
    %v580 = vshrl.u32 %v579, 7
    %v581 = vsub.s32 1, %v580
    %v582 = vrot.slane %v573, %v581
    %v585 = vadd.f32 %v565, %v578
    %v586 = vadd.f32 %v566, %v582
    %v587 = vadd.f32 %v567, %v578
    %v588 = vadd.f32 %v568, %v582
    %v589 = vadd.f32 %v569, %v578
    %v590 = vadd.f32 %v570, %v582
    %v591 = vadd.f32 %v571, %v578
    %v592 = vadd.f32 %v572, %v582
    %v593 = vmax.f32 %v585, 0.0
    %v594 = vmax.f32 %v586, 0.0
    %v595 = vmax.f32 %v587, 0.0
    %v596 = vmax.f32 %v588, 0.0
    %v597 = vmax.f32 %v589, 0.0
    %v598 = vmax.f32 %v590, 0.0
    %v599 = vmax.f32 %v591, 0.0
    %v600 = vmax.f32 %v592, 0.0
    %601 = vst [vmem:[#allocation3] sm:$0xff] 0.0
    %602 = vst [vmem:[#allocation3 + $0x8] sm:$0xff] 0.0
    %603 = vst [vmem:[#allocation3 + $0x10] sm:$0xff] 0.0
    %604 = vst [vmem:[#allocation3 + $0x18] sm:$0xff] 0.0
    %605 = vst [vmem:[#allocation3 + $0x20] sm:$0x3] 0.0
    %606 = vst [vmem:[#allocation3 + $0x28] sm:$0x3] 0.0
    %607 = vst [vmem:[#allocation3 + $0x30] sm:$0xff] 0.0
    %608 = vst [vmem:[#allocation3 + $0x38] sm:$0xff] 0.0
    %609 = vst [vmem:[#allocation3 + $0x40] sm:$0xff] 0.0
    %610 = vst [vmem:[#allocation3 + $0x48] sm:$0xff] 0.0
    %611 = vst [vmem:[#allocation3 + $0x50] sm:$0x3] 0.0
    %612 = vst [vmem:[#allocation3 + $0x58] sm:$0x3] 0.0
    %vm621 = vcmask 1040384
    %v622 = vrot.slane %v593, 7
    %v623 = vrot.slane %v594, 7
    %v624 = vrot.slane %v595, 7
    %v625 = vsel %vm621, %v622, %v624
    %v626 = vrot.slane %v596, 7
    %v627 = vsel %vm621, %v623, %v626
    %v628 = vrot.slane %v597, 7
    %v629 = vrot.slane %v598, 7
    %v630 = vrot.slane %v599, 7
    %v631 = vsel %vm621, %v628, %v630
    %v632 = vrot.slane %v600, 7
    %v633 = vsel %vm621, %v629, %v632
    %646 = vst [vmem:[#allocation3] sm:$0xfe] %v622
    %647 = vst [vmem:[#allocation3 + $0x8] sm:$0xfe] %v623
    %648 = vst [vmem:[#allocation3 + $0x10] sm:$0xff] %v625
    %649 = vst [vmem:[#allocation3 + $0x18] sm:$0xff] %v627
    %650 = vst [vmem:[#allocation3 + $0x20] sm:$0x1] %v624
    %651 = vst [vmem:[#allocation3 + $0x28] sm:$0x1] %v626
    %652 = vst [vmem:[#allocation3 + $0x30] sm:$0xfe] %v628
    %653 = vst [vmem:[#allocation3 + $0x38] sm:$0xfe] %v629
    %654 = vst [vmem:[#allocation3 + $0x40] sm:$0xff] %v631
    %655 = vst [vmem:[#allocation3 + $0x48] sm:$0xff] %v633
    %656 = vst [vmem:[#allocation3 + $0x50] sm:$0x1] %v630
    %657 = vst [vmem:[#allocation3 + $0x58] sm:$0x1] %v632
    %v658 = vld [vmem:[#allocation3] sm:$0xff]
    %v659 = vld [vmem:[#allocation3 + $0x8] sm:$0xff]
    %v660 = vld [vmem:[#allocation3 + $0x10] sm:$0xff]
    %v661 = vld [vmem:[#allocation3 + $0x18] sm:$0xff]
    %v662 = vld [vmem:[#allocation3 + $0x30] sm:$0xff]
    %v663 = vld [vmem:[#allocation3 + $0x38] sm:$0xff]
    %v664 = vld [vmem:[#allocation3 + $0x40] sm:$0xff]
    %v665 = vld [vmem:[#allocation3 + $0x48] sm:$0xff]
    %v666 = vld [vmem:[#allocation12] sm:$0xff]
    %v667 = vld [vmem:[#allocation12 + $0x8] sm:$0xff]
    %v668 = vld [vmem:[#allocation12 + $0x10] sm:$0xff]
    %v669 = vld [vmem:[#allocation12 + $0x18] sm:$0xff]
    %v670 = vld [vmem:[#allocation12 + $0x20] sm:$0xff]
    %v671 = vld [vmem:[#allocation12 + $0x28] sm:$0xff]
    %v672 = vld [vmem:[#allocation12 + $0x30] sm:$0xff]
    %v673 = vld [vmem:[#allocation12 + $0x38] sm:$0xff]
    %v674 = vld [vmem:[#allocation12 + $0x40] sm:$0xff]
    %v675 = vld [vmem:[#allocation12 + $0x48] sm:$0xff]
    %v676 = vld [vmem:[#allocation12 + $0x50] sm:$0xff]
    %v677 = vld [vmem:[#allocation12 + $0x58] sm:$0xff]
    %v678 = vld [vmem:[#allocation12 + $0x60] sm:$0xff]
    %v679 = vld [vmem:[#allocation12 + $0x68] sm:$0xff]
    %v680 = vld [vmem:[#allocation12 + $0x70] sm:$0xff]
    %v681 = vld [vmem:[#allocation12 + $0x78] sm:$0xff]
    %v682 = vld [vmem:[#allocation12 + $0x80] sm:$0xff]
    %v683 = vld [vmem:[#allocation12 + $0x88] sm:$0xff]
    %v684 = vld [vmem:[#allocation12 + $0x90] sm:$0xff]
    %v685 = vld [vmem:[#allocation12 + $0x98] sm:$0xff]
    %v686 = vld [vmem:[#allocation12 + $0xa0] sm:$0xff]
    %v687 = vld [vmem:[#allocation12 + $0xa8] sm:$0xff]
    %v688 = vld [vmem:[#allocation12 + $0xb0] sm:$0xff]
    %v689 = vld [vmem:[#allocation12 + $0xb8] sm:$0xff]
    %v690 = vld [vmem:[#allocation12 + $0xc0] sm:$0xff]
    %v691 = vld [vmem:[#allocation12 + $0xc8] sm:$0xff]
    %v692 = vld [vmem:[#allocation12 + $0xd0] sm:$0xff]
    %v693 = vld [vmem:[#allocation12 + $0xd8] sm:$0xff]
    %v694 = vld [vmem:[#allocation12 + $0xe0] sm:$0xff]
    %v695 = vld [vmem:[#allocation12 + $0xe8] sm:$0xff]
    %v696 = vld [vmem:[#allocation12 + $0xf0] sm:$0xff]
    %v697 = vld [vmem:[#allocation12 + $0xf8] sm:$0xff]
    %v698 = vld [vmem:[#allocation12 + $0x100] sm:$0xff]
    %v699 = vld [vmem:[#allocation12 + $0x108] sm:$0xff]
    %v700 = vld [vmem:[#allocation12 + $0x110] sm:$0xff]
    %v701 = vld [vmem:[#allocation12 + $0x118] sm:$0xff]
    %v702 = vld [vmem:[#allocation12 + $0x120] sm:$0xff]
    %v703 = vld [vmem:[#allocation12 + $0x128] sm:$0xff]
    %v704 = vld [vmem:[#allocation12 + $0x130] sm:$0xff]
    %v705 = vld [vmem:[#allocation12 + $0x138] sm:$0xff]
    %v706 = vld [vmem:[#allocation12 + $0x140] sm:$0xff]
    %v707 = vld [vmem:[#allocation12 + $0x148] sm:$0xff]
    %v708 = vld [vmem:[#allocation12 + $0x150] sm:$0xff]
    %v709 = vld [vmem:[#allocation12 + $0x158] sm:$0xff]
    %v710 = vld [vmem:[#allocation12 + $0x160] sm:$0xff]
    %v711 = vld [vmem:[#allocation12 + $0x168] sm:$0xff]
    %v712 = vld [vmem:[#allocation12 + $0x170] sm:$0xff]
    %v713 = vld [vmem:[#allocation12 + $0x178] sm:$0xff]
    %v714 = vld [vmem:[#allocation12 + $0x180] sm:$0xff]
    %v715 = vld [vmem:[#allocation12 + $0x188] sm:$0xff]
    %v716 = vld [vmem:[#allocation12 + $0x190] sm:$0xff]
    %v717 = vld [vmem:[#allocation12 + $0x198] sm:$0xff]
    %v718 = vld [vmem:[#allocation12 + $0x1a0] sm:$0xff]
    %v719 = vld [vmem:[#allocation12 + $0x1a8] sm:$0xff]
    %v720 = vld [vmem:[#allocation12 + $0x1b0] sm:$0xff]
    %v721 = vld [vmem:[#allocation12 + $0x1b8] sm:$0xff]
    %v722 = vld [vmem:[#allocation12 + $0x1c0] sm:$0xff]
    %v723 = vld [vmem:[#allocation12 + $0x1c8] sm:$0xff]
    %v724 = vld [vmem:[#allocation12 + $0x1d0] sm:$0xff]
    %v725 = vld [vmem:[#allocation12 + $0x1d8] sm:$0xff]
    %v726 = vld [vmem:[#allocation12 + $0x1e0] sm:$0xff]
    %v727 = vld [vmem:[#allocation12 + $0x1e8] sm:$0xff]
    %v728 = vld [vmem:[#allocation12 + $0x1f0] sm:$0xff]
    %v729 = vld [vmem:[#allocation12 + $0x1f8] sm:$0xff]
    %v730 = vld [vmem:[#allocation12 + $0x200] sm:$0xff]
    %v731 = vld [vmem:[#allocation12 + $0x208] sm:$0xff]
    %v732 = vld [vmem:[#allocation12 + $0x210] sm:$0xff]
    %v733 = vld [vmem:[#allocation12 + $0x218] sm:$0xff]
    %v734 = vld [vmem:[#allocation12 + $0x220] sm:$0xff]
    %v735 = vld [vmem:[#allocation12 + $0x228] sm:$0xff]
    %v736 = vld [vmem:[#allocation12 + $0x230] sm:$0xff]
    %v737 = vld [vmem:[#allocation12 + $0x238] sm:$0xff]
    %v738 = vld [vmem:[#allocation12 + $0x240] sm:$0xff]
    %v739 = vld [vmem:[#allocation12 + $0x248] sm:$0xff]
    %v740 = vld [vmem:[#allocation12 + $0x250] sm:$0xff]
    %v741 = vld [vmem:[#allocation12 + $0x258] sm:$0xff]
    %v742 = vld [vmem:[#allocation12 + $0x260] sm:$0xff]
    %v743 = vld [vmem:[#allocation12 + $0x268] sm:$0xff]
    %v744 = vld [vmem:[#allocation12 + $0x270] sm:$0xff]
    %v745 = vld [vmem:[#allocation12 + $0x278] sm:$0xff]
    %v746 = vld [vmem:[#allocation12 + $0x280] sm:$0xff]
    %v747 = vld [vmem:[#allocation12 + $0x288] sm:$0xff]
    %v748 = vld [vmem:[#allocation12 + $0x290] sm:$0xff]
    %v749 = vld [vmem:[#allocation12 + $0x298] sm:$0xff]
    %v750 = vld [vmem:[#allocation12 + $0x2a0] sm:$0xff]
    %v751 = vld [vmem:[#allocation12 + $0x2a8] sm:$0xff]
    %v752 = vld [vmem:[#allocation12 + $0x2b0] sm:$0xff]
    %v753 = vld [vmem:[#allocation12 + $0x2b8] sm:$0xff]
    %v754 = vld [vmem:[#allocation12 + $0x2c0] sm:$0xff]
    %v755 = vld [vmem:[#allocation12 + $0x2c8] sm:$0xff]
    %v756 = vld [vmem:[#allocation12 + $0x2d0] sm:$0xff]
    %v757 = vld [vmem:[#allocation12 + $0x2d8] sm:$0xff]
    %v758 = vld [vmem:[#allocation12 + $0x2e0] sm:$0xff]
    %v759 = vld [vmem:[#allocation12 + $0x2e8] sm:$0xff]
    %v760 = vld [vmem:[#allocation12 + $0x2f0] sm:$0xff]
    %v761 = vld [vmem:[#allocation12 + $0x2f8] sm:$0xff]
    %v762 = vld [vmem:[#allocation12 + $0x300] sm:$0xff]
    %v763 = vld [vmem:[#allocation12 + $0x308] sm:$0xff]
    %v764 = vld [vmem:[#allocation12 + $0x310] sm:$0xff]
    %v765 = vld [vmem:[#allocation12 + $0x318] sm:$0xff]
    %v766 = vld [vmem:[#allocation12 + $0x320] sm:$0xff]
    %v767 = vld [vmem:[#allocation12 + $0x328] sm:$0xff]
    %v768 = vld [vmem:[#allocation12 + $0x330] sm:$0xff]
    %v769 = vld [vmem:[#allocation12 + $0x338] sm:$0xff]
    %v770 = vld [vmem:[#allocation12 + $0x340] sm:$0xff]
    %v771 = vld [vmem:[#allocation12 + $0x348] sm:$0xff]
    %v772 = vld [vmem:[#allocation12 + $0x350] sm:$0xff]
    %v773 = vld [vmem:[#allocation12 + $0x358] sm:$0xff]
    %v774 = vld [vmem:[#allocation12 + $0x360] sm:$0xff]
    %v775 = vld [vmem:[#allocation12 + $0x368] sm:$0xff]
    %v776 = vld [vmem:[#allocation12 + $0x370] sm:$0xff]
    %v777 = vld [vmem:[#allocation12 + $0x378] sm:$0xff]
    %v778 = vld [vmem:[#allocation12 + $0x380] sm:$0xff]
    %v779 = vld [vmem:[#allocation12 + $0x388] sm:$0xff]
    %v780 = vld [vmem:[#allocation12 + $0x390] sm:$0xff]
    %v781 = vld [vmem:[#allocation12 + $0x398] sm:$0xff]
    %v782 = vld [vmem:[#allocation12 + $0x3a0] sm:$0xff]
    %v783 = vld [vmem:[#allocation12 + $0x3a8] sm:$0xff]
    %v784 = vld [vmem:[#allocation12 + $0x3b0] sm:$0xff]
    %v785 = vld [vmem:[#allocation12 + $0x3b8] sm:$0xff]
    %v786 = vld [vmem:[#allocation12 + $0x3c0] sm:$0xff]
    %v787 = vld [vmem:[#allocation12 + $0x3c8] sm:$0xff]
    %v788 = vld [vmem:[#allocation12 + $0x3d0] sm:$0xff]
    %v789 = vld [vmem:[#allocation12 + $0x3d8] sm:$0xff]
    %v790 = vld [vmem:[#allocation12 + $0x3e0] sm:$0xff]
    %v791 = vld [vmem:[#allocation12 + $0x3e8] sm:$0xff]
    %v792 = vld [vmem:[#allocation12 + $0x3f0] sm:$0xff]
    %v793 = vld [vmem:[#allocation12 + $0x3f8] sm:$0xff]
    %v794 = vld [vmem:[#allocation3] sm:$0xfe]
    %v795 = vld [vmem:[#allocation3 + $0x8] sm:$0xfe]
    %v796 = vld [vmem:[#allocation3 + $0x20] sm:$0x1]
    %v797 = vld [vmem:[#allocation3 + $0x28] sm:$0x1]
    %v798 = vld [vmem:[#allocation3 + $0x30] sm:$0xfe]
    %v799 = vld [vmem:[#allocation3 + $0x38] sm:$0xfe]
    %v800 = vld [vmem:[#allocation3 + $0x50] sm:$0x1]
    %v801 = vld [vmem:[#allocation3 + $0x58] sm:$0x1]
    %vm814 = vcmask 1046528
    %v815 = vrot.slane %v794, 1
    %v816 = vrot.slane %v660, 1
    %v817 = vsel %vm814, %v815, %v816
    %v818 = vrot.slane %v795, 1
    %v819 = vrot.slane %v661, 1
    %v820 = vsel %vm814, %v818, %v819
    %v821 = vrot.slane %v796, 1
    %v822 = vsel %vm814, %v816, %v821
    %v823 = vrot.slane %v797, 1
    %v824 = vsel %vm814, %v819, %v823
    %v825 = vrot.slane %v798, 1
    %v826 = vrot.slane %v664, 1
    %v827 = vsel %vm814, %v825, %v826
    %v828 = vrot.slane %v799, 1
    %v829 = vrot.slane %v665, 1
    %v830 = vsel %vm814, %v828, %v829
    %v831 = vrot.slane %v800, 1
    %v832 = vsel %vm814, %v826, %v831
    %v833 = vrot.slane %v801, 1
    %v834 = vsel %vm814, %v829, %v833
    %s843 = scalar_lea.vmem [#allocation12], 1024
    %v844 = vld [vmem:[%s843] sm:$0xff]
    %v845 = vld [vmem:[%s843 + $0x8] sm:$0xff]
    %v846 = vld [vmem:[%s843 + $0x10] sm:$0xff]
    %v847 = vld [vmem:[%s843 + $0x18] sm:$0xff]
    %v848 = vld [vmem:[%s843 + $0x20] sm:$0xff]
    %v849 = vld [vmem:[%s843 + $0x28] sm:$0xff]
    %v850 = vld [vmem:[%s843 + $0x30] sm:$0xff]
    %v851 = vld [vmem:[%s843 + $0x38] sm:$0xff]
    %v852 = vld [vmem:[%s843 + $0x40] sm:$0xff]
    %v853 = vld [vmem:[%s843 + $0x48] sm:$0xff]
    %v854 = vld [vmem:[%s843 + $0x50] sm:$0xff]
    %v855 = vld [vmem:[%s843 + $0x58] sm:$0xff]
    %v856 = vld [vmem:[%s843 + $0x60] sm:$0xff]
    %v857 = vld [vmem:[%s843 + $0x68] sm:$0xff]
    %v858 = vld [vmem:[%s843 + $0x70] sm:$0xff]
    %v859 = vld [vmem:[%s843 + $0x78] sm:$0xff]
    %v860 = vld [vmem:[%s843 + $0x80] sm:$0xff]
    %v861 = vld [vmem:[%s843 + $0x88] sm:$0xff]
    %v862 = vld [vmem:[%s843 + $0x90] sm:$0xff]
    %v863 = vld [vmem:[%s843 + $0x98] sm:$0xff]
    %v864 = vld [vmem:[%s843 + $0xa0] sm:$0xff]
    %v865 = vld [vmem:[%s843 + $0xa8] sm:$0xff]
    %v866 = vld [vmem:[%s843 + $0xb0] sm:$0xff]
    %v867 = vld [vmem:[%s843 + $0xb8] sm:$0xff]
    %v868 = vld [vmem:[%s843 + $0xc0] sm:$0xff]
    %v869 = vld [vmem:[%s843 + $0xc8] sm:$0xff]
    %v870 = vld [vmem:[%s843 + $0xd0] sm:$0xff]
    %v871 = vld [vmem:[%s843 + $0xd8] sm:$0xff]
    %v872 = vld [vmem:[%s843 + $0xe0] sm:$0xff]
    %v873 = vld [vmem:[%s843 + $0xe8] sm:$0xff]
    %v874 = vld [vmem:[%s843 + $0xf0] sm:$0xff]
    %v875 = vld [vmem:[%s843 + $0xf8] sm:$0xff]
    %v876 = vld [vmem:[%s843 + $0x100] sm:$0xff]
    %v877 = vld [vmem:[%s843 + $0x108] sm:$0xff]
    %v878 = vld [vmem:[%s843 + $0x110] sm:$0xff]
    %v879 = vld [vmem:[%s843 + $0x118] sm:$0xff]
    %v880 = vld [vmem:[%s843 + $0x120] sm:$0xff]
    %v881 = vld [vmem:[%s843 + $0x128] sm:$0xff]
    %v882 = vld [vmem:[%s843 + $0x130] sm:$0xff]
    %v883 = vld [vmem:[%s843 + $0x138] sm:$0xff]
    %v884 = vld [vmem:[%s843 + $0x140] sm:$0xff]
    %v885 = vld [vmem:[%s843 + $0x148] sm:$0xff]
    %v886 = vld [vmem:[%s843 + $0x150] sm:$0xff]
    %v887 = vld [vmem:[%s843 + $0x158] sm:$0xff]
    %v888 = vld [vmem:[%s843 + $0x160] sm:$0xff]
    %v889 = vld [vmem:[%s843 + $0x168] sm:$0xff]
    %v890 = vld [vmem:[%s843 + $0x170] sm:$0xff]
    %v891 = vld [vmem:[%s843 + $0x178] sm:$0xff]
    %v892 = vld [vmem:[%s843 + $0x180] sm:$0xff]
    %v893 = vld [vmem:[%s843 + $0x188] sm:$0xff]
    %v894 = vld [vmem:[%s843 + $0x190] sm:$0xff]
    %v895 = vld [vmem:[%s843 + $0x198] sm:$0xff]
    %v896 = vld [vmem:[%s843 + $0x1a0] sm:$0xff]
    %v897 = vld [vmem:[%s843 + $0x1a8] sm:$0xff]
    %v898 = vld [vmem:[%s843 + $0x1b0] sm:$0xff]
    %v899 = vld [vmem:[%s843 + $0x1b8] sm:$0xff]
    %v900 = vld [vmem:[%s843 + $0x1c0] sm:$0xff]
    %v901 = vld [vmem:[%s843 + $0x1c8] sm:$0xff]
    %v902 = vld [vmem:[%s843 + $0x1d0] sm:$0xff]
    %v903 = vld [vmem:[%s843 + $0x1d8] sm:$0xff]
    %v904 = vld [vmem:[%s843 + $0x1e0] sm:$0xff]
    %v905 = vld [vmem:[%s843 + $0x1e8] sm:$0xff]
    %v906 = vld [vmem:[%s843 + $0x1f0] sm:$0xff]
    %v907 = vld [vmem:[%s843 + $0x1f8] sm:$0xff]
    %v908 = vld [vmem:[%s843 + $0x200] sm:$0xff]
    %v909 = vld [vmem:[%s843 + $0x208] sm:$0xff]
    %v910 = vld [vmem:[%s843 + $0x210] sm:$0xff]
    %v911 = vld [vmem:[%s843 + $0x218] sm:$0xff]
    %v912 = vld [vmem:[%s843 + $0x220] sm:$0xff]
    %v913 = vld [vmem:[%s843 + $0x228] sm:$0xff]
    %v914 = vld [vmem:[%s843 + $0x230] sm:$0xff]
    %v915 = vld [vmem:[%s843 + $0x238] sm:$0xff]
    %v916 = vld [vmem:[%s843 + $0x240] sm:$0xff]
    %v917 = vld [vmem:[%s843 + $0x248] sm:$0xff]
    %v918 = vld [vmem:[%s843 + $0x250] sm:$0xff]
    %v919 = vld [vmem:[%s843 + $0x258] sm:$0xff]
    %v920 = vld [vmem:[%s843 + $0x260] sm:$0xff]
    %v921 = vld [vmem:[%s843 + $0x268] sm:$0xff]
    %v922 = vld [vmem:[%s843 + $0x270] sm:$0xff]
    %v923 = vld [vmem:[%s843 + $0x278] sm:$0xff]
    %v924 = vld [vmem:[%s843 + $0x280] sm:$0xff]
    %v925 = vld [vmem:[%s843 + $0x288] sm:$0xff]
    %v926 = vld [vmem:[%s843 + $0x290] sm:$0xff]
    %v927 = vld [vmem:[%s843 + $0x298] sm:$0xff]
    %v928 = vld [vmem:[%s843 + $0x2a0] sm:$0xff]
    %v929 = vld [vmem:[%s843 + $0x2a8] sm:$0xff]
    %v930 = vld [vmem:[%s843 + $0x2b0] sm:$0xff]
    %v931 = vld [vmem:[%s843 + $0x2b8] sm:$0xff]
    %v932 = vld [vmem:[%s843 + $0x2c0] sm:$0xff]
    %v933 = vld [vmem:[%s843 + $0x2c8] sm:$0xff]
    %v934 = vld [vmem:[%s843 + $0x2d0] sm:$0xff]
    %v935 = vld [vmem:[%s843 + $0x2d8] sm:$0xff]
    %v936 = vld [vmem:[%s843 + $0x2e0] sm:$0xff]
    %v937 = vld [vmem:[%s843 + $0x2e8] sm:$0xff]
    %v938 = vld [vmem:[%s843 + $0x2f0] sm:$0xff]
    %v939 = vld [vmem:[%s843 + $0x2f8] sm:$0xff]
    %v940 = vld [vmem:[%s843 + $0x300] sm:$0xff]
    %v941 = vld [vmem:[%s843 + $0x308] sm:$0xff]
    %v942 = vld [vmem:[%s843 + $0x310] sm:$0xff]
    %v943 = vld [vmem:[%s843 + $0x318] sm:$0xff]
    %v944 = vld [vmem:[%s843 + $0x320] sm:$0xff]
    %v945 = vld [vmem:[%s843 + $0x328] sm:$0xff]
    %v946 = vld [vmem:[%s843 + $0x330] sm:$0xff]
    %v947 = vld [vmem:[%s843 + $0x338] sm:$0xff]
    %v948 = vld [vmem:[%s843 + $0x340] sm:$0xff]
    %v949 = vld [vmem:[%s843 + $0x348] sm:$0xff]
    %v950 = vld [vmem:[%s843 + $0x350] sm:$0xff]
    %v951 = vld [vmem:[%s843 + $0x358] sm:$0xff]
    %v952 = vld [vmem:[%s843 + $0x360] sm:$0xff]
    %v953 = vld [vmem:[%s843 + $0x368] sm:$0xff]
    %v954 = vld [vmem:[%s843 + $0x370] sm:$0xff]
    %v955 = vld [vmem:[%s843 + $0x378] sm:$0xff]
    %v956 = vld [vmem:[%s843 + $0x380] sm:$0xff]
    %v957 = vld [vmem:[%s843 + $0x388] sm:$0xff]
    %v958 = vld [vmem:[%s843 + $0x390] sm:$0xff]
    %v959 = vld [vmem:[%s843 + $0x398] sm:$0xff]
    %v960 = vld [vmem:[%s843 + $0x3a0] sm:$0xff]
    %v961 = vld [vmem:[%s843 + $0x3a8] sm:$0xff]
    %v962 = vld [vmem:[%s843 + $0x3b0] sm:$0xff]
    %v963 = vld [vmem:[%s843 + $0x3b8] sm:$0xff]
    %v964 = vld [vmem:[%s843 + $0x3c0] sm:$0xff]
    %v965 = vld [vmem:[%s843 + $0x3c8] sm:$0xff]
    %v966 = vld [vmem:[%s843 + $0x3d0] sm:$0xff]
    %v967 = vld [vmem:[%s843 + $0x3d8] sm:$0xff]
    %v968 = vld [vmem:[%s843 + $0x3e0] sm:$0xff]
    %v969 = vld [vmem:[%s843 + $0x3e8] sm:$0xff]
    %v970 = vld [vmem:[%s843 + $0x3f0] sm:$0xff]
    %v971 = vld [vmem:[%s843 + $0x3f8] sm:$0xff]
    %972 = vmatprep.subr.mxu0 %v845
    %973 = vmatpush1.msra.mxu0 %v844
    %974 = vmatprep.subr.mxu0 %v849
    %975 = vmatpush1.msra.mxu0 %v848
    %976 = vmatprep.subr.mxu0 %v853
    %977 = vmatpush1.msra.mxu0 %v852
    %978 = vmatprep.subr.mxu0 %v857
    %979 = vmatpush1.msra.mxu0 %v856
    %980 = vmatprep.subr.mxu0 %v861
    %981 = vmatpush1.msra.mxu0 %v860
    %982 = vmatprep.subr.mxu0 %v865
    %983 = vmatpush1.msra.mxu0 %v864
    %984 = vmatprep.subr.mxu0 %v869
    %985 = vmatpush1.msra.mxu0 %v868
    %986 = vmatprep.subr.mxu0 %v873
    %987 = vmatpush1.msra.mxu0 %v872
    %988 = vmatprep.subr.mxu0 %v877
    %989 = vmatpush1.msra.mxu0 %v876
    %990 = vmatprep.subr.mxu0 %v881
    %991 = vmatpush1.msra.mxu0 %v880
    %992 = vmatprep.subr.mxu0 %v885
    %993 = vmatpush1.msra.mxu0 %v884
    %994 = vmatprep.subr.mxu0 %v889
    %995 = vmatpush1.msra.mxu0 %v888
    %996 = vmatprep.subr.mxu0 %v893
    %997 = vmatpush1.msra.mxu0 %v892
    %998 = vmatprep.subr.mxu0 %v897
    %999 = vmatpush1.msra.mxu0 %v896
    %1000 = vmatprep.subr.mxu0 %v901
    %1001 = vmatpush1.msra.mxu0 %v900
    %1002 = vmatprep.subr.mxu0 %v905
    %1003 = vmatpush1.msra.mxu0 %v904
    %1004 = vmatprep.subr.mxu0 %v909
    %1005 = vmatpush1.msra.mxu0 %v908
    %1006 = vmatprep.subr.mxu0 %v913
    %1007 = vmatpush1.msra.mxu0 %v912
    %1008 = vmatprep.subr.mxu0 %v917
    %1009 = vmatpush1.msra.mxu0 %v916
    %1010 = vmatprep.subr.mxu0 %v921
    %1011 = vmatpush1.msra.mxu0 %v920
    %1012 = vmatprep.subr.mxu0 %v925
    %1013 = vmatpush1.msra.mxu0 %v924
    %1014 = vmatprep.subr.mxu0 %v929
    %1015 = vmatpush1.msra.mxu0 %v928
    %1016 = vmatprep.subr.mxu0 %v933
    %1017 = vmatpush1.msra.mxu0 %v932
    %1018 = vmatprep.subr.mxu0 %v937
    %1019 = vmatpush1.msra.mxu0 %v936
    %1020 = vmatprep.subr.mxu0 %v941
    %1021 = vmatpush1.msra.mxu0 %v940
    %1022 = vmatprep.subr.mxu0 %v945
    %1023 = vmatpush1.msra.mxu0 %v944
    %1024 = vmatprep.subr.mxu0 %v949
    %1025 = vmatpush1.msra.mxu0 %v948
    %1026 = vmatprep.subr.mxu0 %v953
    %1027 = vmatpush1.msra.mxu0 %v952
    %1028 = vmatprep.subr.mxu0 %v957
    %1029 = vmatpush1.msra.mxu0 %v956
    %1030 = vmatprep.subr.mxu0 %v961
    %1031 = vmatpush1.msra.mxu0 %v960
    %1032 = vmatprep.subr.mxu0 %v965
    %1033 = vmatpush1.msra.mxu0 %v964
    %1034 = vmatprep.subr.mxu0 %v969
    %1035 = vmatpush1.msra.mxu0 %v968
    %1036 = vmatprep.mubr.f32.mxu0 %v820
    %1037 = vmatmul.mubr.f32.gmra.mrb[0].mxu0 %v817
    %v1038 = vpop.f32.mrb[0].mxu0
    %v1039 = vadd.f32 0.0, %v1038
    %v1040 = vpop.f32.mrb[0].mxu0
    %v1041 = vadd.f32 0.0, %v1040
    %1042 = vmatprep.mubr.f32.mxu0 %v824
    %1043 = vmatmul.mubr.f32.gmra.mrb[0].mxu0 %v822
    %v1044 = vpop.f32.mrb[0].mxu0
    %v1045 = vadd.f32 0.0, %v1044
    %v1046 = vpop.f32.mrb[0].mxu0
    %v1047 = vadd.f32 0.0, %v1046
    %1048 = vmatprep.mubr.f32.mxu0 %v830
    %1049 = vmatmul.mubr.f32.gmra.mrb[0].mxu0 %v827
    %v1050 = vpop.f32.mrb[0].mxu0
    %v1051 = vadd.f32 0.0, %v1050
    %v1052 = vpop.f32.mrb[0].mxu0
    %v1053 = vadd.f32 0.0, %v1052
    %1054 = vmatprep.mubr.f32.mxu0 %v834
    %1055 = vmatmul.mubr.f32.gmra.mrb[0].mxu0 %v832
    %v1056 = vpop.f32.mrb[0].mxu0
    %v1057 = vadd.f32 0.0, %v1056
    %v1058 = vpop.f32.mrb[0].mxu0
    %v1059 = vadd.f32 0.0, %v1058
    %1060 = vdwg.mxu0
    %1061 = vmatprep.subr.mxu0 %v847
    %1062 = vmatpush1.msra.mxu0 %v846
    %1063 = vmatprep.subr.mxu0 %v851
    %1064 = vmatpush1.msra.mxu0 %v850
    %1065 = vmatprep.subr.mxu0 %v855
    %1066 = vmatpush1.msra.mxu0 %v854
    %1067 = vmatprep.subr.mxu0 %v859
    %1068 = vmatpush1.msra.mxu0 %v858
    %1069 = vmatprep.subr.mxu0 %v863
    %1070 = vmatpush1.msra.mxu0 %v862
    %1071 = vmatprep.subr.mxu0 %v867
    %1072 = vmatpush1.msra.mxu0 %v866
    %1073 = vmatprep.subr.mxu0 %v871
    %1074 = vmatpush1.msra.mxu0 %v870
    %1075 = vmatprep.subr.mxu0 %v875
    %1076 = vmatpush1.msra.mxu0 %v874
    %1077 = vmatprep.subr.mxu0 %v879
    %1078 = vmatpush1.msra.mxu0 %v878
    %1079 = vmatprep.subr.mxu0 %v883
    %1080 = vmatpush1.msra.mxu0 %v882
    %1081 = vmatprep.subr.mxu0 %v887
    %1082 = vmatpush1.msra.mxu0 %v886
    %1083 = vmatprep.subr.mxu0 %v891
    %1084 = vmatpush1.msra.mxu0 %v890
    %1085 = vmatprep.subr.mxu0 %v895
    %1086 = vmatpush1.msra.mxu0 %v894
    %1087 = vmatprep.subr.mxu0 %v899
    %1088 = vmatpush1.msra.mxu0 %v898
    %1089 = vmatprep.subr.mxu0 %v903
    %1090 = vmatpush1.msra.mxu0 %v902
    %1091 = vmatprep.subr.mxu0 %v907
    %1092 = vmatpush1.msra.mxu0 %v906
    %1093 = vmatprep.subr.mxu0 %v911
    %1094 = vmatpush1.msra.mxu0 %v910
    %1095 = vmatprep.subr.mxu0 %v915
    %1096 = vmatpush1.msra.mxu0 %v914
    %1097 = vmatprep.subr.mxu0 %v919
    %1098 = vmatpush1.msra.mxu0 %v918
    %1099 = vmatprep.subr.mxu0 %v923
    %1100 = vmatpush1.msra.mxu0 %v922
    %1101 = vmatprep.subr.mxu0 %v927
    %1102 = vmatpush1.msra.mxu0 %v926
    %1103 = vmatprep.subr.mxu0 %v931
    %1104 = vmatpush1.msra.mxu0 %v930
    %1105 = vmatprep.subr.mxu0 %v935
    %1106 = vmatpush1.msra.mxu0 %v934
    %1107 = vmatprep.subr.mxu0 %v939
    %1108 = vmatpush1.msra.mxu0 %v938
    %1109 = vmatprep.subr.mxu0 %v943
    %1110 = vmatpush1.msra.mxu0 %v942
    %1111 = vmatprep.subr.mxu0 %v947
    %1112 = vmatpush1.msra.mxu0 %v946
    %1113 = vmatprep.subr.mxu0 %v951
    %1114 = vmatpush1.msra.mxu0 %v950
    %1115 = vmatprep.subr.mxu0 %v955
    %1116 = vmatpush1.msra.mxu0 %v954
    %1117 = vmatprep.subr.mxu0 %v959
    %1118 = vmatpush1.msra.mxu0 %v958
    %1119 = vmatprep.subr.mxu0 %v963
    %1120 = vmatpush1.msra.mxu0 %v962
    %1121 = vmatprep.subr.mxu0 %v967
    %1122 = vmatpush1.msra.mxu0 %v966
    %1123 = vmatprep.subr.mxu0 %v971
    %1124 = vmatpush1.msra.mxu0 %v970
    %1125 = vmatprep.mubr.f32.mxu0 %v820
    %1126 = vmatmul.mubr.f32.gmra.mrb[0].mxu0 %v817
    %v1127 = vpop.f32.mrb[0].mxu0
    %v1128 = vadd.f32 0.0, %v1127
    %v1129 = vpop.f32.mrb[0].mxu0
    %v1130 = vadd.f32 0.0, %v1129
    %1131 = vmatprep.mubr.f32.mxu0 %v824
    %1132 = vmatmul.mubr.f32.gmra.mrb[0].mxu0 %v822
    %v1133 = vpop.f32.mrb[0].mxu0
    %v1134 = vadd.f32 0.0, %v1133
    %v1135 = vpop.f32.mrb[0].mxu0
    %v1136 = vadd.f32 0.0, %v1135
    %1137 = vmatprep.mubr.f32.mxu0 %v830
    %1138 = vmatmul.mubr.f32.gmra.mrb[0].mxu0 %v827
    %v1139 = vpop.f32.mrb[0].mxu0
    %v1140 = vadd.f32 0.0, %v1139
    %v1141 = vpop.f32.mrb[0].mxu0
    %v1142 = vadd.f32 0.0, %v1141
    %1143 = vmatprep.mubr.f32.mxu0 %v834
    %1144 = vmatmul.mubr.f32.gmra.mrb[0].mxu0 %v832
    %v1145 = vpop.f32.mrb[0].mxu0
    %v1146 = vadd.f32 0.0, %v1145
    %v1147 = vpop.f32.mrb[0].mxu0
    %v1148 = vadd.f32 0.0, %v1147
    %1149 = vdwg.mxu0
    %1150 = vmatprep.subr.mxu0 %v667
    %1151 = vmatpush1.msra.mxu0 %v666
    %1152 = vmatprep.subr.mxu0 %v671
    %1153 = vmatpush1.msra.mxu0 %v670
    %1154 = vmatprep.subr.mxu0 %v675
    %1155 = vmatpush1.msra.mxu0 %v674
    %1156 = vmatprep.subr.mxu0 %v679
    %1157 = vmatpush1.msra.mxu0 %v678
    %1158 = vmatprep.subr.mxu0 %v683
    %1159 = vmatpush1.msra.mxu0 %v682
    %1160 = vmatprep.subr.mxu0 %v687
    %1161 = vmatpush1.msra.mxu0 %v686
    %1162 = vmatprep.subr.mxu0 %v691
    %1163 = vmatpush1.msra.mxu0 %v690
    %1164 = vmatprep.subr.mxu0 %v695
    %1165 = vmatpush1.msra.mxu0 %v694
    %1166 = vmatprep.subr.mxu0 %v699
    %1167 = vmatpush1.msra.mxu0 %v698
    %1168 = vmatprep.subr.mxu0 %v703
    %1169 = vmatpush1.msra.mxu0 %v702
    %1170 = vmatprep.subr.mxu0 %v707
    %1171 = vmatpush1.msra.mxu0 %v706
    %1172 = vmatprep.subr.mxu0 %v711
    %1173 = vmatpush1.msra.mxu0 %v710
    %1174 = vmatprep.subr.mxu0 %v715
    %1175 = vmatpush1.msra.mxu0 %v714
    %1176 = vmatprep.subr.mxu0 %v719
    %1177 = vmatpush1.msra.mxu0 %v718
    %1178 = vmatprep.subr.mxu0 %v723
    %1179 = vmatpush1.msra.mxu0 %v722
    %1180 = vmatprep.subr.mxu0 %v727
    %1181 = vmatpush1.msra.mxu0 %v726
    %1182 = vmatprep.subr.mxu0 %v731
    %1183 = vmatpush1.msra.mxu0 %v730
    %1184 = vmatprep.subr.mxu0 %v735
    %1185 = vmatpush1.msra.mxu0 %v734
    %1186 = vmatprep.subr.mxu0 %v739
    %1187 = vmatpush1.msra.mxu0 %v738
    %1188 = vmatprep.subr.mxu0 %v743
    %1189 = vmatpush1.msra.mxu0 %v742
    %1190 = vmatprep.subr.mxu0 %v747
    %1191 = vmatpush1.msra.mxu0 %v746
    %1192 = vmatprep.subr.mxu0 %v751
    %1193 = vmatpush1.msra.mxu0 %v750
    %1194 = vmatprep.subr.mxu0 %v755
    %1195 = vmatpush1.msra.mxu0 %v754
    %1196 = vmatprep.subr.mxu0 %v759
    %1197 = vmatpush1.msra.mxu0 %v758
    %1198 = vmatprep.subr.mxu0 %v763
    %1199 = vmatpush1.msra.mxu0 %v762
    %1200 = vmatprep.subr.mxu0 %v767
    %1201 = vmatpush1.msra.mxu0 %v766
    %1202 = vmatprep.subr.mxu0 %v771
    %1203 = vmatpush1.msra.mxu0 %v770
    %1204 = vmatprep.subr.mxu0 %v775
    %1205 = vmatpush1.msra.mxu0 %v774
    %1206 = vmatprep.subr.mxu0 %v779
    %1207 = vmatpush1.msra.mxu0 %v778
    %1208 = vmatprep.subr.mxu0 %v783
    %1209 = vmatpush1.msra.mxu0 %v782
    %1210 = vmatprep.subr.mxu0 %v787
    %1211 = vmatpush1.msra.mxu0 %v786
    %1212 = vmatprep.subr.mxu0 %v791
    %1213 = vmatpush1.msra.mxu0 %v790
    %1214 = vmatprep.mubr.f32.mxu0 %v659
    %1215 = vmatmul.mubr.f32.gmra.mrb[0].mxu0 %v658
    %v1216 = vpop.f32.mrb[0].mxu0
    %v1217 = vadd.f32 %v1039, %v1216
    %v1218 = vpop.f32.mrb[0].mxu0
    %v1219 = vadd.f32 %v1041, %v1218
    %1220 = vmatprep.mubr.f32.mxu0 %v661
    %1221 = vmatmul.mubr.f32.gmra.mrb[0].mxu0 %v660
    %v1222 = vpop.f32.mrb[0].mxu0
    %v1223 = vadd.f32 %v1045, %v1222
    %v1224 = vpop.f32.mrb[0].mxu0
    %v1225 = vadd.f32 %v1047, %v1224
    %1226 = vmatprep.mubr.f32.mxu0 %v663
    %1227 = vmatmul.mubr.f32.gmra.mrb[0].mxu0 %v662
    %v1228 = vpop.f32.mrb[0].mxu0
    %v1229 = vadd.f32 %v1051, %v1228
    %v1230 = vpop.f32.mrb[0].mxu0
    %v1231 = vadd.f32 %v1053, %v1230
    %1232 = vmatprep.mubr.f32.mxu0 %v665
    %1233 = vmatmul.mubr.f32.gmra.mrb[0].mxu0 %v664
    %v1234 = vpop.f32.mrb[0].mxu0
    %v1235 = vadd.f32 %v1057, %v1234
    %v1236 = vpop.f32.mrb[0].mxu0
    %v1237 = vadd.f32 %v1059, %v1236
    %1238 = vdwg.mxu0
    %1239 = vmatprep.subr.mxu0 %v669
    %1240 = vmatpush1.msra.mxu0 %v668
    %1241 = vmatprep.subr.mxu0 %v673
    %1242 = vmatpush1.msra.mxu0 %v672
    %1243 = vmatprep.subr.mxu0 %v677
    %1244 = vmatpush1.msra.mxu0 %v676
    %1245 = vmatprep.subr.mxu0 %v681
    %1246 = vmatpush1.msra.mxu0 %v680
    %1247 = vmatprep.subr.mxu0 %v685
    %1248 = vmatpush1.msra.mxu0 %v684
    %1249 = vmatprep.subr.mxu0 %v689
    %1250 = vmatpush1.msra.mxu0 %v688
    %1251 = vmatprep.subr.mxu0 %v693
    %1252 = vmatpush1.msra.mxu0 %v692
    %1253 = vmatprep.subr.mxu0 %v697
    %1254 = vmatpush1.msra.mxu0 %v696
    %1255 = vmatprep.subr.mxu0 %v701
    %1256 = vmatpush1.msra.mxu0 %v700
    %1257 = vmatprep.subr.mxu0 %v705
    %1258 = vmatpush1.msra.mxu0 %v704
    %1259 = vmatprep.subr.mxu0 %v709
    %1260 = vmatpush1.msra.mxu0 %v708
    %1261 = vmatprep.subr.mxu0 %v713
    %1262 = vmatpush1.msra.mxu0 %v712
    %1263 = vmatprep.subr.mxu0 %v717
    %1264 = vmatpush1.msra.mxu0 %v716
    %1265 = vmatprep.subr.mxu0 %v721
    %1266 = vmatpush1.msra.mxu0 %v720
    %1267 = vmatprep.subr.mxu0 %v725
    %1268 = vmatpush1.msra.mxu0 %v724
    %1269 = vmatprep.subr.mxu0 %v729
    %1270 = vmatpush1.msra.mxu0 %v728
    %1271 = vmatprep.subr.mxu0 %v733
    %1272 = vmatpush1.msra.mxu0 %v732
    %1273 = vmatprep.subr.mxu0 %v737
    %1274 = vmatpush1.msra.mxu0 %v736
    %1275 = vmatprep.subr.mxu0 %v741
    %1276 = vmatpush1.msra.mxu0 %v740
    %1277 = vmatprep.subr.mxu0 %v745
    %1278 = vmatpush1.msra.mxu0 %v744
    %1279 = vmatprep.subr.mxu0 %v749
    %1280 = vmatpush1.msra.mxu0 %v748
    %1281 = vmatprep.subr.mxu0 %v753
    %1282 = vmatpush1.msra.mxu0 %v752
    %1283 = vmatprep.subr.mxu0 %v757
    %1284 = vmatpush1.msra.mxu0 %v756
    %1285 = vmatprep.subr.mxu0 %v761
    %1286 = vmatpush1.msra.mxu0 %v760
    %1287 = vmatprep.subr.mxu0 %v765
    %1288 = vmatpush1.msra.mxu0 %v764
    %1289 = vmatprep.subr.mxu0 %v769
    %1290 = vmatpush1.msra.mxu0 %v768
    %1291 = vmatprep.subr.mxu0 %v773
    %1292 = vmatpush1.msra.mxu0 %v772
    %1293 = vmatprep.subr.mxu0 %v777
    %1294 = vmatpush1.msra.mxu0 %v776
    %1295 = vmatprep.subr.mxu0 %v781
    %1296 = vmatpush1.msra.mxu0 %v780
    %1297 = vmatprep.subr.mxu0 %v785
    %1298 = vmatpush1.msra.mxu0 %v784
    %1299 = vmatprep.subr.mxu0 %v789
    %1300 = vmatpush1.msra.mxu0 %v788
    %1301 = vmatprep.subr.mxu0 %v793
    %1302 = vmatpush1.msra.mxu0 %v792
    %1303 = vmatprep.mubr.f32.mxu0 %v659
    %1304 = vmatmul.mubr.f32.gmra.mrb[0].mxu0 %v658
    %v1305 = vpop.f32.mrb[0].mxu0
    %v1306 = vadd.f32 %v1128, %v1305
    %v1307 = vpop.f32.mrb[0].mxu0
    %v1308 = vadd.f32 %v1130, %v1307
    %1309 = vmatprep.mubr.f32.mxu0 %v661
    %1310 = vmatmul.mubr.f32.gmra.mrb[0].mxu0 %v660
    %v1311 = vpop.f32.mrb[0].mxu0
    %v1312 = vadd.f32 %v1134, %v1311
    %v1313 = vpop.f32.mrb[0].mxu0
    %v1314 = vadd.f32 %v1136, %v1313
    %1315 = vmatprep.mubr.f32.mxu0 %v663
    %1316 = vmatmul.mubr.f32.gmra.mrb[0].mxu0 %v662
    %v1317 = vpop.f32.mrb[0].mxu0
    %v1318 = vadd.f32 %v1140, %v1317
    %v1319 = vpop.f32.mrb[0].mxu0
    %v1320 = vadd.f32 %v1142, %v1319
    %1321 = vmatprep.mubr.f32.mxu0 %v665
    %1322 = vmatmul.mubr.f32.gmra.mrb[0].mxu0 %v664
    %v1323 = vpop.f32.mrb[0].mxu0
    %v1324 = vadd.f32 %v1146, %v1323
    %v1325 = vpop.f32.mrb[0].mxu0
    %v1326 = vadd.f32 %v1148, %v1325
    %1327 = vdwg.mxu0
    %v1328 = vld [vmem:[#allocation3] sm:$0xfc]
    %v1329 = vld [vmem:[#allocation3 + $0x8] sm:$0xfc]
    %v1330 = vld [vmem:[#allocation3 + $0x20] sm:$0x3]
    %v1331 = vld [vmem:[#allocation3 + $0x28] sm:$0x3]
    %v1332 = vld [vmem:[#allocation3 + $0x30] sm:$0xfc]
    %v1333 = vld [vmem:[#allocation3 + $0x38] sm:$0xfc]
    %v1334 = vld [vmem:[#allocation3 + $0x50] sm:$0x3]
    %v1335 = vld [vmem:[#allocation3 + $0x58] sm:$0x3]
    %vm1344 = vcmask 1045504
    %v1345 = vrot.slane %v1328, 2
    %v1346 = vrot.slane %v660, 2
    %v1347 = vsel %vm1344, %v1345, %v1346
    %v1348 = vrot.slane %v1329, 2
    %v1349 = vrot.slane %v661, 2
    %v1350 = vsel %vm1344, %v1348, %v1349
    %v1351 = vrot.slane %v1330, 2
    %v1352 = vsel %vm1344, %v1346, %v1351
    %v1353 = vrot.slane %v1331, 2
    %v1354 = vsel %vm1344, %v1349, %v1353
    %v1355 = vrot.slane %v1332, 2
    %v1356 = vrot.slane %v664, 2
    %v1357 = vsel %vm1344, %v1355, %v1356
    %v1358 = vrot.slane %v1333, 2
    %v1359 = vrot.slane %v665, 2
    %v1360 = vsel %vm1344, %v1358, %v1359
    %v1361 = vrot.slane %v1334, 2
    %v1362 = vsel %vm1344, %v1356, %v1361
    %v1363 = vrot.slane %v1335, 2
    %v1364 = vsel %vm1344, %v1359, %v1363
    %s1373 = scalar_lea.vmem [#allocation12], 2048
    %v1374 = vld [vmem:[%s1373] sm:$0xff]
    %v1375 = vld [vmem:[%s1373 + $0x8] sm:$0xff]
    %v1376 = vld [vmem:[%s1373 + $0x10] sm:$0xff]
    %v1377 = vld [vmem:[%s1373 + $0x18] sm:$0xff]
    %v1378 = vld [vmem:[%s1373 + $0x20] sm:$0xff]
    %v1379 = vld [vmem:[%s1373 + $0x28] sm:$0xff]
    %v1380 = vld [vmem:[%s1373 + $0x30] sm:$0xff]
    %v1381 = vld [vmem:[%s1373 + $0x38] sm:$0xff]
    %v1382 = vld [vmem:[%s1373 + $0x40] sm:$0xff]
    %v1383 = vld [vmem:[%s1373 + $0x48] sm:$0xff]
    %v1384 = vld [vmem:[%s1373 + $0x50] sm:$0xff]
    %v1385 = vld [vmem:[%s1373 + $0x58] sm:$0xff]
    %v1386 = vld [vmem:[%s1373 + $0x60] sm:$0xff]
    %v1387 = vld [vmem:[%s1373 + $0x68] sm:$0xff]
    %v1388 = vld [vmem:[%s1373 + $0x70] sm:$0xff]
    %v1389 = vld [vmem:[%s1373 + $0x78] sm:$0xff]
    %v1390 = vld [vmem:[%s1373 + $0x80] sm:$0xff]
    %v1391 = vld [vmem:[%s1373 + $0x88] sm:$0xff]
    %v1392 = vld [vmem:[%s1373 + $0x90] sm:$0xff]
    %v1393 = vld [vmem:[%s1373 + $0x98] sm:$0xff]
    %v1394 = vld [vmem:[%s1373 + $0xa0] sm:$0xff]
    %v1395 = vld [vmem:[%s1373 + $0xa8] sm:$0xff]
    %v1396 = vld [vmem:[%s1373 + $0xb0] sm:$0xff]
    %v1397 = vld [vmem:[%s1373 + $0xb8] sm:$0xff]
    %v1398 = vld [vmem:[%s1373 + $0xc0] sm:$0xff]
    %v1399 = vld [vmem:[%s1373 + $0xc8] sm:$0xff]
    %v1400 = vld [vmem:[%s1373 + $0xd0] sm:$0xff]
    %v1401 = vld [vmem:[%s1373 + $0xd8] sm:$0xff]
    %v1402 = vld [vmem:[%s1373 + $0xe0] sm:$0xff]
    %v1403 = vld [vmem:[%s1373 + $0xe8] sm:$0xff]
    %v1404 = vld [vmem:[%s1373 + $0xf0] sm:$0xff]
    %v1405 = vld [vmem:[%s1373 + $0xf8] sm:$0xff]
    %v1406 = vld [vmem:[%s1373 + $0x100] sm:$0xff]
    %v1407 = vld [vmem:[%s1373 + $0x108] sm:$0xff]
    %v1408 = vld [vmem:[%s1373 + $0x110] sm:$0xff]
    %v1409 = vld [vmem:[%s1373 + $0x118] sm:$0xff]
    %v1410 = vld [vmem:[%s1373 + $0x120] sm:$0xff]
    %v1411 = vld [vmem:[%s1373 + $0x128] sm:$0xff]
    %v1412 = vld [vmem:[%s1373 + $0x130] sm:$0xff]
    %v1413 = vld [vmem:[%s1373 + $0x138] sm:$0xff]
    %v1414 = vld [vmem:[%s1373 + $0x140] sm:$0xff]
    %v1415 = vld [vmem:[%s1373 + $0x148] sm:$0xff]
    %v1416 = vld [vmem:[%s1373 + $0x150] sm:$0xff]
    %v1417 = vld [vmem:[%s1373 + $0x158] sm:$0xff]
    %v1418 = vld [vmem:[%s1373 + $0x160] sm:$0xff]
    %v1419 = vld [vmem:[%s1373 + $0x168] sm:$0xff]
    %v1420 = vld [vmem:[%s1373 + $0x170] sm:$0xff]
    %v1421 = vld [vmem:[%s1373 + $0x178] sm:$0xff]
    %v1422 = vld [vmem:[%s1373 + $0x180] sm:$0xff]
    %v1423 = vld [vmem:[%s1373 + $0x188] sm:$0xff]
    %v1424 = vld [vmem:[%s1373 + $0x190] sm:$0xff]
    %v1425 = vld [vmem:[%s1373 + $0x198] sm:$0xff]
    %v1426 = vld [vmem:[%s1373 + $0x1a0] sm:$0xff]
    %v1427 = vld [vmem:[%s1373 + $0x1a8] sm:$0xff]
    %v1428 = vld [vmem:[%s1373 + $0x1b0] sm:$0xff]
    %v1429 = vld [vmem:[%s1373 + $0x1b8] sm:$0xff]
    %v1430 = vld [vmem:[%s1373 + $0x1c0] sm:$0xff]
    %v1431 = vld [vmem:[%s1373 + $0x1c8] sm:$0xff]
    %v1432 = vld [vmem:[%s1373 + $0x1d0] sm:$0xff]
    %v1433 = vld [vmem:[%s1373 + $0x1d8] sm:$0xff]
    %v1434 = vld [vmem:[%s1373 + $0x1e0] sm:$0xff]
    %v1435 = vld [vmem:[%s1373 + $0x1e8] sm:$0xff]
    %v1436 = vld [vmem:[%s1373 + $0x1f0] sm:$0xff]
    %v1437 = vld [vmem:[%s1373 + $0x1f8] sm:$0xff]
    %v1438 = vld [vmem:[%s1373 + $0x200] sm:$0xff]
    %v1439 = vld [vmem:[%s1373 + $0x208] sm:$0xff]
    %v1440 = vld [vmem:[%s1373 + $0x210] sm:$0xff]
    %v1441 = vld [vmem:[%s1373 + $0x218] sm:$0xff]
    %v1442 = vld [vmem:[%s1373 + $0x220] sm:$0xff]
    %v1443 = vld [vmem:[%s1373 + $0x228] sm:$0xff]
    %v1444 = vld [vmem:[%s1373 + $0x230] sm:$0xff]
    %v1445 = vld [vmem:[%s1373 + $0x238] sm:$0xff]
    %v1446 = vld [vmem:[%s1373 + $0x240] sm:$0xff]
    %v1447 = vld [vmem:[%s1373 + $0x248] sm:$0xff]
    %v1448 = vld [vmem:[%s1373 + $0x250] sm:$0xff]
    %v1449 = vld [vmem:[%s1373 + $0x258] sm:$0xff]
    %v1450 = vld [vmem:[%s1373 + $0x260] sm:$0xff]
    %v1451 = vld [vmem:[%s1373 + $0x268] sm:$0xff]
    %v1452 = vld [vmem:[%s1373 + $0x270] sm:$0xff]
    %v1453 = vld [vmem:[%s1373 + $0x278] sm:$0xff]
    %v1454 = vld [vmem:[%s1373 + $0x280] sm:$0xff]
    %v1455 = vld [vmem:[%s1373 + $0x288] sm:$0xff]
    %v1456 = vld [vmem:[%s1373 + $0x290] sm:$0xff]
    %v1457 = vld [vmem:[%s1373 + $0x298] sm:$0xff]
    %v1458 = vld [vmem:[%s1373 + $0x2a0] sm:$0xff]
    %v1459 = vld [vmem:[%s1373 + $0x2a8] sm:$0xff]
    %v1460 = vld [vmem:[%s1373 + $0x2b0] sm:$0xff]
    %v1461 = vld [vmem:[%s1373 + $0x2b8] sm:$0xff]
    %v1462 = vld [vmem:[%s1373 + $0x2c0] sm:$0xff]
    %v1463 = vld [vmem:[%s1373 + $0x2c8] sm:$0xff]
    %v1464 = vld [vmem:[%s1373 + $0x2d0] sm:$0xff]
    %v1465 = vld [vmem:[%s1373 + $0x2d8] sm:$0xff]
    %v1466 = vld [vmem:[%s1373 + $0x2e0] sm:$0xff]
    %v1467 = vld [vmem:[%s1373 + $0x2e8] sm:$0xff]
    %v1468 = vld [vmem:[%s1373 + $0x2f0] sm:$0xff]
    %v1469 = vld [vmem:[%s1373 + $0x2f8] sm:$0xff]
    %v1470 = vld [vmem:[%s1373 + $0x300] sm:$0xff]
    %v1471 = vld [vmem:[%s1373 + $0x308] sm:$0xff]
    %v1472 = vld [vmem:[%s1373 + $0x310] sm:$0xff]
    %v1473 = vld [vmem:[%s1373 + $0x318] sm:$0xff]
    %v1474 = vld [vmem:[%s1373 + $0x320] sm:$0xff]
    %v1475 = vld [vmem:[%s1373 + $0x328] sm:$0xff]
    %v1476 = vld [vmem:[%s1373 + $0x330] sm:$0xff]
    %v1477 = vld [vmem:[%s1373 + $0x338] sm:$0xff]
    %v1478 = vld [vmem:[%s1373 + $0x340] sm:$0xff]
    %v1479 = vld [vmem:[%s1373 + $0x348] sm:$0xff]
    %v1480 = vld [vmem:[%s1373 + $0x350] sm:$0xff]
    %v1481 = vld [vmem:[%s1373 + $0x358] sm:$0xff]
    %v1482 = vld [vmem:[%s1373 + $0x360] sm:$0xff]
    %v1483 = vld [vmem:[%s1373 + $0x368] sm:$0xff]
    %v1484 = vld [vmem:[%s1373 + $0x370] sm:$0xff]
    %v1485 = vld [vmem:[%s1373 + $0x378] sm:$0xff]
    %v1486 = vld [vmem:[%s1373 + $0x380] sm:$0xff]
    %v1487 = vld [vmem:[%s1373 + $0x388] sm:$0xff]
    %v1488 = vld [vmem:[%s1373 + $0x390] sm:$0xff]
    %v1489 = vld [vmem:[%s1373 + $0x398] sm:$0xff]
    %v1490 = vld [vmem:[%s1373 + $0x3a0] sm:$0xff]
    %v1491 = vld [vmem:[%s1373 + $0x3a8] sm:$0xff]
    %v1492 = vld [vmem:[%s1373 + $0x3b0] sm:$0xff]
    %v1493 = vld [vmem:[%s1373 + $0x3b8] sm:$0xff]
    %v1494 = vld [vmem:[%s1373 + $0x3c0] sm:$0xff]
    %v1495 = vld [vmem:[%s1373 + $0x3c8] sm:$0xff]
    %v1496 = vld [vmem:[%s1373 + $0x3d0] sm:$0xff]
    %v1497 = vld [vmem:[%s1373 + $0x3d8] sm:$0xff]
    %v1498 = vld [vmem:[%s1373 + $0x3e0] sm:$0xff]
    %v1499 = vld [vmem:[%s1373 + $0x3e8] sm:$0xff]
    %v1500 = vld [vmem:[%s1373 + $0x3f0] sm:$0xff]
    %v1501 = vld [vmem:[%s1373 + $0x3f8] sm:$0xff]
    %1502 = vmatprep.subr.mxu0 %v1375
    %1503 = vmatpush1.msra.mxu0 %v1374
    %1504 = vmatprep.subr.mxu0 %v1379
    %1505 = vmatpush1.msra.mxu0 %v1378
    %1506 = vmatprep.subr.mxu0 %v1383
    %1507 = vmatpush1.msra.mxu0 %v1382
    %1508 = vmatprep.subr.mxu0 %v1387
    %1509 = vmatpush1.msra.mxu0 %v1386
    %1510 = vmatprep.subr.mxu0 %v1391
    %1511 = vmatpush1.msra.mxu0 %v1390
    %1512 = vmatprep.subr.mxu0 %v1395
    %1513 = vmatpush1.msra.mxu0 %v1394
    %1514 = vmatprep.subr.mxu0 %v1399
    %1515 = vmatpush1.msra.mxu0 %v1398
    %1516 = vmatprep.subr.mxu0 %v1403
    %1517 = vmatpush1.msra.mxu0 %v1402
    %1518 = vmatprep.subr.mxu0 %v1407
    %1519 = vmatpush1.msra.mxu0 %v1406
    %1520 = vmatprep.subr.mxu0 %v1411
    %1521 = vmatpush1.msra.mxu0 %v1410
    %1522 = vmatprep.subr.mxu0 %v1415
    %1523 = vmatpush1.msra.mxu0 %v1414
    %1524 = vmatprep.subr.mxu0 %v1419
    %1525 = vmatpush1.msra.mxu0 %v1418
    %1526 = vmatprep.subr.mxu0 %v1423
    %1527 = vmatpush1.msra.mxu0 %v1422
    %1528 = vmatprep.subr.mxu0 %v1427
    %1529 = vmatpush1.msra.mxu0 %v1426
    %1530 = vmatprep.subr.mxu0 %v1431
    %1531 = vmatpush1.msra.mxu0 %v1430
    %1532 = vmatprep.subr.mxu0 %v1435
    %1533 = vmatpush1.msra.mxu0 %v1434
    %1534 = vmatprep.subr.mxu0 %v1439
    %1535 = vmatpush1.msra.mxu0 %v1438
    %1536 = vmatprep.subr.mxu0 %v1443
    %1537 = vmatpush1.msra.mxu0 %v1442
    %1538 = vmatprep.subr.mxu0 %v1447
    %1539 = vmatpush1.msra.mxu0 %v1446
    %1540 = vmatprep.subr.mxu0 %v1451
    %1541 = vmatpush1.msra.mxu0 %v1450
    %1542 = vmatprep.subr.mxu0 %v1455
    %1543 = vmatpush1.msra.mxu0 %v1454
    %1544 = vmatprep.subr.mxu0 %v1459
    %1545 = vmatpush1.msra.mxu0 %v1458
    %1546 = vmatprep.subr.mxu0 %v1463
    %1547 = vmatpush1.msra.mxu0 %v1462
    %1548 = vmatprep.subr.mxu0 %v1467
    %1549 = vmatpush1.msra.mxu0 %v1466
    %1550 = vmatprep.subr.mxu0 %v1471
    %1551 = vmatpush1.msra.mxu0 %v1470
    %1552 = vmatprep.subr.mxu0 %v1475
    %1553 = vmatpush1.msra.mxu0 %v1474
    %1554 = vmatprep.subr.mxu0 %v1479
    %1555 = vmatpush1.msra.mxu0 %v1478
    %1556 = vmatprep.subr.mxu0 %v1483
    %1557 = vmatpush1.msra.mxu0 %v1482
    %1558 = vmatprep.subr.mxu0 %v1487
    %1559 = vmatpush1.msra.mxu0 %v1486
    %1560 = vmatprep.subr.mxu0 %v1491
    %1561 = vmatpush1.msra.mxu0 %v1490
    %1562 = vmatprep.subr.mxu0 %v1495
    %1563 = vmatpush1.msra.mxu0 %v1494
    %1564 = vmatprep.subr.mxu0 %v1499
    %1565 = vmatpush1.msra.mxu0 %v1498
    %1566 = vmatprep.mubr.f32.mxu0 %v1350
    %1567 = vmatmul.mubr.f32.gmra.mrb[0].mxu0 %v1347
    %v1568 = vpop.f32.mrb[0].mxu0
    %v1569 = vadd.f32 0.0, %v1568
    %v1570 = vpop.f32.mrb[0].mxu0
    %v1571 = vadd.f32 0.0, %v1570
    %1572 = vmatprep.mubr.f32.mxu0 %v1354
    %1573 = vmatmul.mubr.f32.gmra.mrb[0].mxu0 %v1352
    %v1574 = vpop.f32.mrb[0].mxu0
    %v1575 = vadd.f32 0.0, %v1574
    %v1576 = vpop.f32.mrb[0].mxu0
    %v1577 = vadd.f32 0.0, %v1576
    %1578 = vmatprep.mubr.f32.mxu0 %v1360
    %1579 = vmatmul.mubr.f32.gmra.mrb[0].mxu0 %v1357
    %v1580 = vpop.f32.mrb[0].mxu0
    %v1581 = vadd.f32 0.0, %v1580
    %v1582 = vpop.f32.mrb[0].mxu0
    %v1583 = vadd.f32 0.0, %v1582
    %1584 = vmatprep.mubr.f32.mxu0 %v1364
    %1585 = vmatmul.mubr.f32.gmra.mrb[0].mxu0 %v1362
    %v1586 = vpop.f32.mrb[0].mxu0
    %v1587 = vadd.f32 0.0, %v1586
    %v1588 = vpop.f32.mrb[0].mxu0
    %v1589 = vadd.f32 0.0, %v1588
    %1590 = vdwg.mxu0
    %1591 = vmatprep.subr.mxu0 %v1377
    %1592 = vmatpush1.msra.mxu0 %v1376
    %1593 = vmatprep.subr.mxu0 %v1381
    %1594 = vmatpush1.msra.mxu0 %v1380
    %1595 = vmatprep.subr.mxu0 %v1385
    %1596 = vmatpush1.msra.mxu0 %v1384
    %1597 = vmatprep.subr.mxu0 %v1389
    %1598 = vmatpush1.msra.mxu0 %v1388
    %1599 = vmatprep.subr.mxu0 %v1393
    %1600 = vmatpush1.msra.mxu0 %v1392
    %1601 = vmatprep.subr.mxu0 %v1397
    %1602 = vmatpush1.msra.mxu0 %v1396
    %1603 = vmatprep.subr.mxu0 %v1401
    %1604 = vmatpush1.msra.mxu0 %v1400
    %1605 = vmatprep.subr.mxu0 %v1405
    %1606 = vmatpush1.msra.mxu0 %v1404
    %1607 = vmatprep.subr.mxu0 %v1409
    %1608 = vmatpush1.msra.mxu0 %v1408
    %1609 = vmatprep.subr.mxu0 %v1413
    %1610 = vmatpush1.msra.mxu0 %v1412
    %1611 = vmatprep.subr.mxu0 %v1417
    %1612 = vmatpush1.msra.mxu0 %v1416
    %1613 = vmatprep.subr.mxu0 %v1421
    %1614 = vmatpush1.msra.mxu0 %v1420
    %1615 = vmatprep.subr.mxu0 %v1425
    %1616 = vmatpush1.msra.mxu0 %v1424
    %1617 = vmatprep.subr.mxu0 %v1429
    %1618 = vmatpush1.msra.mxu0 %v1428
    %1619 = vmatprep.subr.mxu0 %v1433
    %1620 = vmatpush1.msra.mxu0 %v1432
    %1621 = vmatprep.subr.mxu0 %v1437
    %1622 = vmatpush1.msra.mxu0 %v1436
    %1623 = vmatprep.subr.mxu0 %v1441
    %1624 = vmatpush1.msra.mxu0 %v1440
    %1625 = vmatprep.subr.mxu0 %v1445
    %1626 = vmatpush1.msra.mxu0 %v1444
    %1627 = vmatprep.subr.mxu0 %v1449
    %1628 = vmatpush1.msra.mxu0 %v1448
    %1629 = vmatprep.subr.mxu0 %v1453
    %1630 = vmatpush1.msra.mxu0 %v1452
    %1631 = vmatprep.subr.mxu0 %v1457
    %1632 = vmatpush1.msra.mxu0 %v1456
    %1633 = vmatprep.subr.mxu0 %v1461
    %1634 = vmatpush1.msra.mxu0 %v1460
    %1635 = vmatprep.subr.mxu0 %v1465
    %1636 = vmatpush1.msra.mxu0 %v1464
    %1637 = vmatprep.subr.mxu0 %v1469
    %1638 = vmatpush1.msra.mxu0 %v1468
    %1639 = vmatprep.subr.mxu0 %v1473
    %1640 = vmatpush1.msra.mxu0 %v1472
    %1641 = vmatprep.subr.mxu0 %v1477
    %1642 = vmatpush1.msra.mxu0 %v1476
    %1643 = vmatprep.subr.mxu0 %v1481
    %1644 = vmatpush1.msra.mxu0 %v1480
    %1645 = vmatprep.subr.mxu0 %v1485
    %1646 = vmatpush1.msra.mxu0 %v1484
    %1647 = vmatprep.subr.mxu0 %v1489
    %1648 = vmatpush1.msra.mxu0 %v1488
    %1649 = vmatprep.subr.mxu0 %v1493
    %1650 = vmatpush1.msra.mxu0 %v1492
    %1651 = vmatprep.subr.mxu0 %v1497
    %1652 = vmatpush1.msra.mxu0 %v1496
    %1653 = vmatprep.subr.mxu0 %v1501
    %1654 = vmatpush1.msra.mxu0 %v1500
    %1655 = vmatprep.mubr.f32.mxu0 %v1350
    %1656 = vmatmul.mubr.f32.gmra.mrb[0].mxu0 %v1347
    %v1657 = vpop.f32.mrb[0].mxu0
    %v1658 = vadd.f32 0.0, %v1657
    %v1659 = vpop.f32.mrb[0].mxu0
    %v1660 = vadd.f32 0.0, %v1659
    %1661 = vmatprep.mubr.f32.mxu0 %v1354
    %1662 = vmatmul.mubr.f32.gmra.mrb[0].mxu0 %v1352
    %v1663 = vpop.f32.mrb[0].mxu0
    %v1664 = vadd.f32 0.0, %v1663
    %v1665 = vpop.f32.mrb[0].mxu0
    %v1666 = vadd.f32 0.0, %v1665
    %1667 = vmatprep.mubr.f32.mxu0 %v1360
    %1668 = vmatmul.mubr.f32.gmra.mrb[0].mxu0 %v1357
    %v1669 = vpop.f32.mrb[0].mxu0
    %v1670 = vadd.f32 0.0, %v1669
    %v1671 = vpop.f32.mrb[0].mxu0
    %v1672 = vadd.f32 0.0, %v1671
    %1673 = vmatprep.mubr.f32.mxu0 %v1364
    %1674 = vmatmul.mubr.f32.gmra.mrb[0].mxu0 %v1362
    %v1675 = vpop.f32.mrb[0].mxu0
    %v1676 = vadd.f32 0.0, %v1675
    %v1677 = vpop.f32.mrb[0].mxu0
    %v1678 = vadd.f32 0.0, %v1677
    %1679 = vdwg.mxu0
    %v1680 = vadd.f32 %v1217, %v1569
    %v1681 = vadd.f32 %v1219, %v1571
    %v1682 = vadd.f32 %v1306, %v1658
    %v1683 = vadd.f32 %v1308, %v1660
    %v1684 = vadd.f32 %v1223, %v1575
    %v1685 = vadd.f32 %v1225, %v1577
    %v1686 = vadd.f32 %v1312, %v1664
    %v1687 = vadd.f32 %v1314, %v1666
    %v1688 = vadd.f32 %v1229, %v1581
    %v1689 = vadd.f32 %v1231, %v1583
    %v1690 = vadd.f32 %v1318, %v1670
    %v1691 = vadd.f32 %v1320, %v1672
    %v1692 = vadd.f32 %v1235, %v1587
    %v1693 = vadd.f32 %v1237, %v1589
    %v1694 = vadd.f32 %v1324, %v1676
    %v1695 = vadd.f32 %v1326, %v1678
    %v1696 = vld [vmem:[#allocation13] sm:$0xf]
    %v1698 = vlaneseq
    %v1699 = vshrl.u32 %v1698, 7
    %v1700 = vsub.s32 0, %v1699
    %v1701 = vrot.slane %v1696, %v1700
    %v1702 = vlaneseq
    %v1703 = vshrl.u32 %v1702, 7
    %v1704 = vsub.s32 1, %v1703
    %v1705 = vrot.slane %v1696, %v1704
    %v1706 = vlaneseq
    %v1707 = vshrl.u32 %v1706, 7
    %v1708 = vsub.s32 2, %v1707
    %v1709 = vrot.slane %v1696, %v1708
    %v1710 = vlaneseq
    %v1711 = vshrl.u32 %v1710, 7
    %v1712 = vsub.s32 3, %v1711
    %v1713 = vrot.slane %v1696, %v1712
    %v1718 = vadd.f32 %v1680, %v1701
    %v1719 = vadd.f32 %v1681, %v1705
    %v1720 = vadd.f32 %v1682, %v1709
    %v1721 = vadd.f32 %v1683, %v1713
    %v1722 = vadd.f32 %v1684, %v1701
    %v1723 = vadd.f32 %v1685, %v1705
    %v1724 = vadd.f32 %v1686, %v1709
    %v1725 = vadd.f32 %v1687, %v1713
    %v1726 = vadd.f32 %v1688, %v1701
    %v1727 = vadd.f32 %v1689, %v1705
    %v1728 = vadd.f32 %v1690, %v1709
    %v1729 = vadd.f32 %v1691, %v1713
    %v1730 = vadd.f32 %v1692, %v1701
    %v1731 = vadd.f32 %v1693, %v1705
    %v1732 = vadd.f32 %v1694, %v1709
    %v1733 = vadd.f32 %v1695, %v1713
    %v1750 = vrot.slane %v1718, 1
    %v1751 = vrot.slane %v1722, 1
    %v1752 = vsel %vm814, %v1750, %v1751
    %v1753 = vrot.slane %v1719, 1
    %v1754 = vrot.slane %v1723, 1
    %v1755 = vsel %vm814, %v1753, %v1754
    %v1756 = vrot.slane %v1720, 1
    %v1757 = vrot.slane %v1724, 1
    %v1758 = vsel %vm814, %v1756, %v1757
    %v1759 = vrot.slane %v1721, 1
    %v1760 = vrot.slane %v1725, 1
    %v1761 = vsel %vm814, %v1759, %v1760
    %v1762 = vrot.slane %v1726, 1
    %v1763 = vrot.slane %v1730, 1
    %v1764 = vsel %vm814, %v1762, %v1763
    %v1765 = vrot.slane %v1727, 1
    %v1766 = vrot.slane %v1731, 1
    %v1767 = vsel %vm814, %v1765, %v1766
    %v1768 = vrot.slane %v1728, 1
    %v1769 = vrot.slane %v1732, 1
    %v1770 = vsel %vm814, %v1768, %v1769
    %v1771 = vrot.slane %v1729, 1
    %v1772 = vrot.slane %v1733, 1
    %v1773 = vsel %vm814, %v1771, %v1772
    %v1790 = vmax.f32 %v1718, %v1752
    %v1791 = vmax.f32 %v1719, %v1755
    %v1792 = vmax.f32 %v1720, %v1758
    %v1793 = vmax.f32 %v1721, %v1761
    %v1794 = vmax.f32 %v1722, %v1751
    %v1795 = vmax.f32 %v1723, %v1754
    %v1796 = vmax.f32 %v1724, %v1757
    %v1797 = vmax.f32 %v1725, %v1760
    %v1798 = vmax.f32 %v1726, %v1764
    %v1799 = vmax.f32 %v1727, %v1767
    %v1800 = vmax.f32 %v1728, %v1770
    %v1801 = vmax.f32 %v1729, %v1773
    %v1802 = vmax.f32 %v1730, %v1763
    %v1803 = vmax.f32 %v1731, %v1766
    %v1804 = vmax.f32 %v1732, %v1769
    %v1805 = vmax.f32 %v1733, %v1772
    %v1806 = vmax.f32 %v1790, %v1792
    %v1807 = vmax.f32 %v1791, %v1793
    %v1808 = vmax.f32 %v1794, %v1796
    %v1809 = vmax.f32 %v1795, %v1797
    %v1810 = vmax.f32 %v1798, %v1800
    %v1811 = vmax.f32 %v1799, %v1801
    %v1812 = vmax.f32 %v1802, %v1804
    %v1813 = vmax.f32 %v1803, %v1805
    %v1814 = vmax.f32 %v1806, 0.0
    %v1815 = vmax.f32 %v1807, 0.0
    %v1816 = vmax.f32 %v1808, 0.0
    %v1817 = vmax.f32 %v1809, 0.0
    %v1818 = vmax.f32 %v1810, 0.0
    %v1819 = vmax.f32 %v1811, 0.0
    %v1820 = vmax.f32 %v1812, 0.0
    %v1821 = vmax.f32 %v1813, 0.0
    %1822 = vst [vmem:[#allocation4] sm:$0xff] 0.0
    %1823 = vst [vmem:[#allocation4 + $0x8] sm:$0xff] 0.0
    %v1828 = vrot.slane %v1818, 7
    %vm1829 = vcmask 1043459
    %v1830 = vsel %vm1829, %v1828, %v1814
    %v1831 = vrot.slane %v1819, 7
    %v1832 = vsel %vm1829, %v1831, %v1815
    %1835 = vst [vmem:[#allocation4] sm:$0xc] %v1830
    %1836 = vst [vmem:[#allocation4 + $0x8] sm:$0xc] %v1832
    %v1837 = vrot.slane %v1814, 2
    %v1838 = vrot.slane %v1818, 1
    %vm1839 = vcmask 1045509
    %v1840 = vsel %vm1839, %v1838, %v1837
    %v1841 = vrot.slane %v1815, 2
    %v1842 = vrot.slane %v1819, 1
    %v1843 = vsel %vm1839, %v1842, %v1841
    %1846 = vst [vmem:[#allocation4] sm:$0x30] %v1840
    %1847 = vst [vmem:[#allocation4 + $0x8] sm:$0x30] %v1843
    %v1852 = vrot.slane %v1816, 4
    %v1853 = vrot.slane %v1820, 3
    %vm1854 = vcmask 1047559
    %v1855 = vsel %vm1854, %v1853, %v1852
    %v1856 = vrot.slane %v1817, 4
    %v1857 = vrot.slane %v1821, 3
    %v1858 = vsel %vm1854, %v1857, %v1856
    %1861 = vst [vmem:[#allocation4] sm:$0xc0] %v1855
    %1862 = vst [vmem:[#allocation4 + $0x8] sm:$0xc0] %v1858
    %vm1863 = vcmask 1041409
    %v1864 = vsel %vm1863, %v1828, %v1814
    %v1865 = vsel %vm1863, %v1831, %v1815
    %1868 = vst [vmem:[#allocation5] sm:$0x3] %v1864
    %1869 = vst [vmem:[#allocation5 + $0x8] sm:$0x3] %v1865
    %v1870 = vsel %vm1829, %v1838, %v1837
    %v1871 = vsel %vm1829, %v1842, %v1841
    %1874 = vst [vmem:[#allocation5] sm:$0xc] %v1870
    %1875 = vst [vmem:[#allocation5 + $0x8] sm:$0xc] %v1871
    %v1876 = vsel %vm1839, %v1853, %v1852
    %v1877 = vsel %vm1839, %v1857, %v1856
    %1880 = vst [vmem:[#allocation5] sm:$0x30] %v1876
    %1881 = vst [vmem:[#allocation5 + $0x8] sm:$0x30] %v1877
    %v1882 = vrot.slane %v1816, 6
    %v1883 = vrot.slane %v1820, 5
    %v1884 = vsel %vm1854, %v1883, %v1882
    %v1885 = vrot.slane %v1817, 6
    %v1886 = vrot.slane %v1821, 5
    %v1887 = vsel %vm1854, %v1886, %v1885
    %1890 = vst [vmem:[#allocation5] sm:$0xc0] %v1884
    %1891 = vst [vmem:[#allocation5 + $0x8] sm:$0xc0] %v1887
    %v1892 = vsel %vm1863, %v1838, %v1837
    %v1893 = vsel %vm1863, %v1842, %v1841
    %1896 = vst [vmem:[#allocation6] sm:$0x3] %v1892
    %1897 = vst [vmem:[#allocation6 + $0x8] sm:$0x3] %v1893
    %v1898 = vrot.slane %v1814, 4
    %v1899 = vrot.slane %v1818, 3
    %v1900 = vsel %vm1829, %v1899, %v1898
    %v1901 = vrot.slane %v1815, 4
    %v1902 = vrot.slane %v1819, 3
    %v1903 = vsel %vm1829, %v1902, %v1901
    %1906 = vst [vmem:[#allocation6] sm:$0xc] %v1900
    %1907 = vst [vmem:[#allocation6 + $0x8] sm:$0xc] %v1903
    %v1908 = vsel %vm1839, %v1883, %v1882
    %v1909 = vsel %vm1839, %v1886, %v1885
    %1912 = vst [vmem:[#allocation6] sm:$0x30] %v1908
    %1913 = vst [vmem:[#allocation6 + $0x8] sm:$0x30] %v1909
    %v1914 = vrot.slane %v1820, 7
    %v1915 = vsel %vm1854, %v1914, %v1816
    %v1916 = vrot.slane %v1821, 7
    %v1917 = vsel %vm1854, %v1916, %v1817
    %1920 = vst [vmem:[#allocation6] sm:$0xc0] %v1915
    %1921 = vst [vmem:[#allocation6 + $0x8] sm:$0xc0] %v1917
    %v1922 = vld [vmem:[#allocation4] sm:$0xff]
    %v1923 = vld [vmem:[#allocation4 + $0x8] sm:$0xff]
    %v1924 = vld [vmem:[#allocation15] sm:$0xff]
    %v1925 = vld [vmem:[#allocation15 + $0x8] sm:$0xff]
    %v1926 = vld [vmem:[#allocation15 + $0x10] sm:$0xff]
    %v1927 = vld [vmem:[#allocation15 + $0x18] sm:$0xff]
    %v1928 = vld [vmem:[#allocation15 + $0x20] sm:$0xff]
    %v1929 = vld [vmem:[#allocation15 + $0x28] sm:$0xff]
    %v1930 = vld [vmem:[#allocation15 + $0x30] sm:$0xff]
    %v1931 = vld [vmem:[#allocation15 + $0x38] sm:$0xff]
    %v1932 = vld [vmem:[#allocation15 + $0x40] sm:$0xff]
    %v1933 = vld [vmem:[#allocation15 + $0x48] sm:$0xff]
    %v1934 = vld [vmem:[#allocation15 + $0x50] sm:$0xff]
    %v1935 = vld [vmem:[#allocation15 + $0x58] sm:$0xff]
    %v1936 = vld [vmem:[#allocation15 + $0x60] sm:$0xff]
    %v1937 = vld [vmem:[#allocation15 + $0x68] sm:$0xff]
    %v1938 = vld [vmem:[#allocation15 + $0x70] sm:$0xff]
    %v1939 = vld [vmem:[#allocation15 + $0x78] sm:$0xff]
    %v1940 = vld [vmem:[#allocation15 + $0x80] sm:$0xff]
    %v1941 = vld [vmem:[#allocation15 + $0x88] sm:$0xff]
    %v1942 = vld [vmem:[#allocation15 + $0x90] sm:$0xff]
    %v1943 = vld [vmem:[#allocation15 + $0x98] sm:$0xff]
    %v1944 = vld [vmem:[#allocation15 + $0xa0] sm:$0xff]
    %v1945 = vld [vmem:[#allocation15 + $0xa8] sm:$0xff]
    %v1946 = vld [vmem:[#allocation15 + $0xb0] sm:$0xff]
    %v1947 = vld [vmem:[#allocation15 + $0xb8] sm:$0xff]
    %v1948 = vld [vmem:[#allocation15 + $0xc0] sm:$0xff]
    %v1949 = vld [vmem:[#allocation15 + $0xc8] sm:$0xff]
    %v1950 = vld [vmem:[#allocation15 + $0xd0] sm:$0xff]
    %v1951 = vld [vmem:[#allocation15 + $0xd8] sm:$0xff]
    %v1952 = vld [vmem:[#allocation15 + $0xe0] sm:$0xff]
    %v1953 = vld [vmem:[#allocation15 + $0xe8] sm:$0xff]
    %v1954 = vld [vmem:[#allocation15 + $0xf0] sm:$0xff]
    %v1955 = vld [vmem:[#allocation15 + $0xf8] sm:$0xff]
    %v1956 = vld [vmem:[#allocation15 + $0x100] sm:$0xff]
    %v1957 = vld [vmem:[#allocation15 + $0x108] sm:$0xff]
    %v1958 = vld [vmem:[#allocation15 + $0x110] sm:$0xff]
    %v1959 = vld [vmem:[#allocation15 + $0x118] sm:$0xff]
    %v1960 = vld [vmem:[#allocation15 + $0x120] sm:$0xff]
    %v1961 = vld [vmem:[#allocation15 + $0x128] sm:$0xff]
    %v1962 = vld [vmem:[#allocation15 + $0x130] sm:$0xff]
    %v1963 = vld [vmem:[#allocation15 + $0x138] sm:$0xff]
    %v1964 = vld [vmem:[#allocation15 + $0x140] sm:$0xff]
    %v1965 = vld [vmem:[#allocation15 + $0x148] sm:$0xff]
    %v1966 = vld [vmem:[#allocation15 + $0x150] sm:$0xff]
    %v1967 = vld [vmem:[#allocation15 + $0x158] sm:$0xff]
    %v1968 = vld [vmem:[#allocation15 + $0x160] sm:$0xff]
    %v1969 = vld [vmem:[#allocation15 + $0x168] sm:$0xff]
    %v1970 = vld [vmem:[#allocation15 + $0x170] sm:$0xff]
    %v1971 = vld [vmem:[#allocation15 + $0x178] sm:$0xff]
    %v1972 = vld [vmem:[#allocation15 + $0x180] sm:$0xff]
    %v1973 = vld [vmem:[#allocation15 + $0x188] sm:$0xff]
    %v1974 = vld [vmem:[#allocation15 + $0x190] sm:$0xff]
    %v1975 = vld [vmem:[#allocation15 + $0x198] sm:$0xff]
    %v1976 = vld [vmem:[#allocation15 + $0x1a0] sm:$0xff]
    %v1977 = vld [vmem:[#allocation15 + $0x1a8] sm:$0xff]
    %v1978 = vld [vmem:[#allocation15 + $0x1b0] sm:$0xff]
    %v1979 = vld [vmem:[#allocation15 + $0x1b8] sm:$0xff]
    %v1980 = vld [vmem:[#allocation15 + $0x1c0] sm:$0xff]
    %v1981 = vld [vmem:[#allocation15 + $0x1c8] sm:$0xff]
    %v1982 = vld [vmem:[#allocation15 + $0x1d0] sm:$0xff]
    %v1983 = vld [vmem:[#allocation15 + $0x1d8] sm:$0xff]
    %v1984 = vld [vmem:[#allocation15 + $0x1e0] sm:$0xff]
    %v1985 = vld [vmem:[#allocation15 + $0x1e8] sm:$0xff]
    %v1986 = vld [vmem:[#allocation15 + $0x1f0] sm:$0xff]
    %v1987 = vld [vmem:[#allocation15 + $0x1f8] sm:$0xff]
    %v1988 = vld [vmem:[#allocation5] sm:$0xff]
    %v1989 = vld [vmem:[#allocation5 + $0x8] sm:$0xff]
    %s1990 = scalar_lea.vmem [#allocation15], 512
    %v1991 = vld [vmem:[%s1990] sm:$0xff]
    %v1992 = vld [vmem:[%s1990 + $0x8] sm:$0xff]
    %v1993 = vld [vmem:[%s1990 + $0x10] sm:$0xff]
    %v1994 = vld [vmem:[%s1990 + $0x18] sm:$0xff]
    %v1995 = vld [vmem:[%s1990 + $0x20] sm:$0xff]
    %v1996 = vld [vmem:[%s1990 + $0x28] sm:$0xff]
    %v1997 = vld [vmem:[%s1990 + $0x30] sm:$0xff]
    %v1998 = vld [vmem:[%s1990 + $0x38] sm:$0xff]
    %v1999 = vld [vmem:[%s1990 + $0x40] sm:$0xff]
    %v2000 = vld [vmem:[%s1990 + $0x48] sm:$0xff]
    %v2001 = vld [vmem:[%s1990 + $0x50] sm:$0xff]
    %v2002 = vld [vmem:[%s1990 + $0x58] sm:$0xff]
    %v2003 = vld [vmem:[%s1990 + $0x60] sm:$0xff]
    %v2004 = vld [vmem:[%s1990 + $0x68] sm:$0xff]
    %v2005 = vld [vmem:[%s1990 + $0x70] sm:$0xff]
    %v2006 = vld [vmem:[%s1990 + $0x78] sm:$0xff]
    %v2007 = vld [vmem:[%s1990 + $0x80] sm:$0xff]
    %v2008 = vld [vmem:[%s1990 + $0x88] sm:$0xff]
    %v2009 = vld [vmem:[%s1990 + $0x90] sm:$0xff]
    %v2010 = vld [vmem:[%s1990 + $0x98] sm:$0xff]
    %v2011 = vld [vmem:[%s1990 + $0xa0] sm:$0xff]
    %v2012 = vld [vmem:[%s1990 + $0xa8] sm:$0xff]
    %v2013 = vld [vmem:[%s1990 + $0xb0] sm:$0xff]
    %v2014 = vld [vmem:[%s1990 + $0xb8] sm:$0xff]
    %v2015 = vld [vmem:[%s1990 + $0xc0] sm:$0xff]
    %v2016 = vld [vmem:[%s1990 + $0xc8] sm:$0xff]
    %v2017 = vld [vmem:[%s1990 + $0xd0] sm:$0xff]
    %v2018 = vld [vmem:[%s1990 + $0xd8] sm:$0xff]
    %v2019 = vld [vmem:[%s1990 + $0xe0] sm:$0xff]
    %v2020 = vld [vmem:[%s1990 + $0xe8] sm:$0xff]
    %v2021 = vld [vmem:[%s1990 + $0xf0] sm:$0xff]
    %v2022 = vld [vmem:[%s1990 + $0xf8] sm:$0xff]
    %v2023 = vld [vmem:[%s1990 + $0x100] sm:$0xff]
    %v2024 = vld [vmem:[%s1990 + $0x108] sm:$0xff]
    %v2025 = vld [vmem:[%s1990 + $0x110] sm:$0xff]
    %v2026 = vld [vmem:[%s1990 + $0x118] sm:$0xff]
    %v2027 = vld [vmem:[%s1990 + $0x120] sm:$0xff]
    %v2028 = vld [vmem:[%s1990 + $0x128] sm:$0xff]
    %v2029 = vld [vmem:[%s1990 + $0x130] sm:$0xff]
    %v2030 = vld [vmem:[%s1990 + $0x138] sm:$0xff]
    %v2031 = vld [vmem:[%s1990 + $0x140] sm:$0xff]
    %v2032 = vld [vmem:[%s1990 + $0x148] sm:$0xff]
    %v2033 = vld [vmem:[%s1990 + $0x150] sm:$0xff]
    %v2034 = vld [vmem:[%s1990 + $0x158] sm:$0xff]
    %v2035 = vld [vmem:[%s1990 + $0x160] sm:$0xff]
    %v2036 = vld [vmem:[%s1990 + $0x168] sm:$0xff]
    %v2037 = vld [vmem:[%s1990 + $0x170] sm:$0xff]
    %v2038 = vld [vmem:[%s1990 + $0x178] sm:$0xff]
    %v2039 = vld [vmem:[%s1990 + $0x180] sm:$0xff]
    %v2040 = vld [vmem:[%s1990 + $0x188] sm:$0xff]
    %v2041 = vld [vmem:[%s1990 + $0x190] sm:$0xff]
    %v2042 = vld [vmem:[%s1990 + $0x198] sm:$0xff]
    %v2043 = vld [vmem:[%s1990 + $0x1a0] sm:$0xff]
    %v2044 = vld [vmem:[%s1990 + $0x1a8] sm:$0xff]
    %v2045 = vld [vmem:[%s1990 + $0x1b0] sm:$0xff]
    %v2046 = vld [vmem:[%s1990 + $0x1b8] sm:$0xff]
    %v2047 = vld [vmem:[%s1990 + $0x1c0] sm:$0xff]
    %v2048 = vld [vmem:[%s1990 + $0x1c8] sm:$0xff]
    %v2049 = vld [vmem:[%s1990 + $0x1d0] sm:$0xff]
    %v2050 = vld [vmem:[%s1990 + $0x1d8] sm:$0xff]
    %v2051 = vld [vmem:[%s1990 + $0x1e0] sm:$0xff]
    %v2052 = vld [vmem:[%s1990 + $0x1e8] sm:$0xff]
    %v2053 = vld [vmem:[%s1990 + $0x1f0] sm:$0xff]
    %v2054 = vld [vmem:[%s1990 + $0x1f8] sm:$0xff]
    %2055 = vmatprep.subr.mxu0 %v1992
    %2056 = vmatpush1.msra.mxu0 %v1991
    %2057 = vmatprep.subr.mxu0 %v1994
    %2058 = vmatpush1.msra.mxu0 %v1993
    %2059 = vmatprep.subr.mxu0 %v1996
    %2060 = vmatpush1.msra.mxu0 %v1995
    %2061 = vmatprep.subr.mxu0 %v1998
    %2062 = vmatpush1.msra.mxu0 %v1997
    %2063 = vmatprep.subr.mxu0 %v2000
    %2064 = vmatpush1.msra.mxu0 %v1999
    %2065 = vmatprep.subr.mxu0 %v2002
    %2066 = vmatpush1.msra.mxu0 %v2001
    %2067 = vmatprep.subr.mxu0 %v2004
    %2068 = vmatpush1.msra.mxu0 %v2003
    %2069 = vmatprep.subr.mxu0 %v2006
    %2070 = vmatpush1.msra.mxu0 %v2005
    %2071 = vmatprep.subr.mxu0 %v2008
    %2072 = vmatpush1.msra.mxu0 %v2007
    %2073 = vmatprep.subr.mxu0 %v2010
    %2074 = vmatpush1.msra.mxu0 %v2009
    %2075 = vmatprep.subr.mxu0 %v2012
    %2076 = vmatpush1.msra.mxu0 %v2011
    %2077 = vmatprep.subr.mxu0 %v2014
    %2078 = vmatpush1.msra.mxu0 %v2013
    %2079 = vmatprep.subr.mxu0 %v2016
    %2080 = vmatpush1.msra.mxu0 %v2015
    %2081 = vmatprep.subr.mxu0 %v2018
    %2082 = vmatpush1.msra.mxu0 %v2017
    %2083 = vmatprep.subr.mxu0 %v2020
    %2084 = vmatpush1.msra.mxu0 %v2019
    %2085 = vmatprep.subr.mxu0 %v2022
    %2086 = vmatpush1.msra.mxu0 %v2021
    %2087 = vmatprep.subr.mxu0 %v2024
    %2088 = vmatpush1.msra.mxu0 %v2023
    %2089 = vmatprep.subr.mxu0 %v2026
    %2090 = vmatpush1.msra.mxu0 %v2025
    %2091 = vmatprep.subr.mxu0 %v2028
    %2092 = vmatpush1.msra.mxu0 %v2027
    %2093 = vmatprep.subr.mxu0 %v2030
    %2094 = vmatpush1.msra.mxu0 %v2029
    %2095 = vmatprep.subr.mxu0 %v2032
    %2096 = vmatpush1.msra.mxu0 %v2031
    %2097 = vmatprep.subr.mxu0 %v2034
    %2098 = vmatpush1.msra.mxu0 %v2033
    %2099 = vmatprep.subr.mxu0 %v2036
    %2100 = vmatpush1.msra.mxu0 %v2035
    %2101 = vmatprep.subr.mxu0 %v2038
    %2102 = vmatpush1.msra.mxu0 %v2037
    %2103 = vmatprep.subr.mxu0 %v2040
    %2104 = vmatpush1.msra.mxu0 %v2039
    %2105 = vmatprep.subr.mxu0 %v2042
    %2106 = vmatpush1.msra.mxu0 %v2041
    %2107 = vmatprep.subr.mxu0 %v2044
    %2108 = vmatpush1.msra.mxu0 %v2043
    %2109 = vmatprep.subr.mxu0 %v2046
    %2110 = vmatpush1.msra.mxu0 %v2045
    %2111 = vmatprep.subr.mxu0 %v2048
    %2112 = vmatpush1.msra.mxu0 %v2047
    %2113 = vmatprep.subr.mxu0 %v2050
    %2114 = vmatpush1.msra.mxu0 %v2049
    %2115 = vmatprep.subr.mxu0 %v2052
    %2116 = vmatpush1.msra.mxu0 %v2051
    %2117 = vmatprep.subr.mxu0 %v2054
    %2118 = vmatpush1.msra.mxu0 %v2053
    %2119 = vmatprep.mubr.f32.mxu0 %v1989
    %2120 = vmatmul.mubr.f32.gmra.mrb[0].mxu0 %v1988
    %v2121 = vpop.f32.mrb[0].mxu0
    %v2122 = vadd.f32 0.0, %v2121
    %v2123 = vpop.f32.mrb[0].mxu0
    %v2124 = vadd.f32 0.0, %v2123
    %2125 = vdwg.mxu0
    %2126 = vmatprep.subr.mxu0 %v1925
    %2127 = vmatpush1.msra.mxu0 %v1924
    %2128 = vmatprep.subr.mxu0 %v1927
    %2129 = vmatpush1.msra.mxu0 %v1926
    %2130 = vmatprep.subr.mxu0 %v1929
    %2131 = vmatpush1.msra.mxu0 %v1928
    %2132 = vmatprep.subr.mxu0 %v1931
    %2133 = vmatpush1.msra.mxu0 %v1930
    %2134 = vmatprep.subr.mxu0 %v1933
    %2135 = vmatpush1.msra.mxu0 %v1932
    %2136 = vmatprep.subr.mxu0 %v1935
    %2137 = vmatpush1.msra.mxu0 %v1934
    %2138 = vmatprep.subr.mxu0 %v1937
    %2139 = vmatpush1.msra.mxu0 %v1936
    %2140 = vmatprep.subr.mxu0 %v1939
    %2141 = vmatpush1.msra.mxu0 %v1938
    %2142 = vmatprep.subr.mxu0 %v1941
    %2143 = vmatpush1.msra.mxu0 %v1940
    %2144 = vmatprep.subr.mxu0 %v1943
    %2145 = vmatpush1.msra.mxu0 %v1942
    %2146 = vmatprep.subr.mxu0 %v1945
    %2147 = vmatpush1.msra.mxu0 %v1944
    %2148 = vmatprep.subr.mxu0 %v1947
    %2149 = vmatpush1.msra.mxu0 %v1946
    %2150 = vmatprep.subr.mxu0 %v1949
    %2151 = vmatpush1.msra.mxu0 %v1948
    %2152 = vmatprep.subr.mxu0 %v1951
    %2153 = vmatpush1.msra.mxu0 %v1950
    %2154 = vmatprep.subr.mxu0 %v1953
    %2155 = vmatpush1.msra.mxu0 %v1952
    %2156 = vmatprep.subr.mxu0 %v1955
    %2157 = vmatpush1.msra.mxu0 %v1954
    %2158 = vmatprep.subr.mxu0 %v1957
    %2159 = vmatpush1.msra.mxu0 %v1956
    %2160 = vmatprep.subr.mxu0 %v1959
    %2161 = vmatpush1.msra.mxu0 %v1958
    %2162 = vmatprep.subr.mxu0 %v1961
    %2163 = vmatpush1.msra.mxu0 %v1960
    %2164 = vmatprep.subr.mxu0 %v1963
    %2165 = vmatpush1.msra.mxu0 %v1962
    %2166 = vmatprep.subr.mxu0 %v1965
    %2167 = vmatpush1.msra.mxu0 %v1964
    %2168 = vmatprep.subr.mxu0 %v1967
    %2169 = vmatpush1.msra.mxu0 %v1966
    %2170 = vmatprep.subr.mxu0 %v1969
    %2171 = vmatpush1.msra.mxu0 %v1968
    %2172 = vmatprep.subr.mxu0 %v1971
    %2173 = vmatpush1.msra.mxu0 %v1970
    %2174 = vmatprep.subr.mxu0 %v1973
    %2175 = vmatpush1.msra.mxu0 %v1972
    %2176 = vmatprep.subr.mxu0 %v1975
    %2177 = vmatpush1.msra.mxu0 %v1974
    %2178 = vmatprep.subr.mxu0 %v1977
    %2179 = vmatpush1.msra.mxu0 %v1976
    %2180 = vmatprep.subr.mxu0 %v1979
    %2181 = vmatpush1.msra.mxu0 %v1978
    %2182 = vmatprep.subr.mxu0 %v1981
    %2183 = vmatpush1.msra.mxu0 %v1980
    %2184 = vmatprep.subr.mxu0 %v1983
    %2185 = vmatpush1.msra.mxu0 %v1982
    %2186 = vmatprep.subr.mxu0 %v1985
    %2187 = vmatpush1.msra.mxu0 %v1984
    %2188 = vmatprep.subr.mxu0 %v1987
    %2189 = vmatpush1.msra.mxu0 %v1986
    %2190 = vmatprep.mubr.f32.mxu0 %v1923
    %2191 = vmatmul.mubr.f32.gmra.mrb[0].mxu0 %v1922
    %v2192 = vpop.f32.mrb[0].mxu0
    %v2193 = vadd.f32 %v2122, %v2192
    %v2194 = vpop.f32.mrb[0].mxu0
    %v2195 = vadd.f32 %v2124, %v2194
    %2196 = vdwg.mxu0
    %v2197 = vld [vmem:[#allocation6] sm:$0xff]
    %v2198 = vld [vmem:[#allocation6 + $0x8] sm:$0xff]
    %s2199 = scalar_lea.vmem [#allocation15], 1024
    %v2200 = vld [vmem:[%s2199] sm:$0xff]
    %v2201 = vld [vmem:[%s2199 + $0x8] sm:$0xff]
    %v2202 = vld [vmem:[%s2199 + $0x10] sm:$0xff]
    %v2203 = vld [vmem:[%s2199 + $0x18] sm:$0xff]
    %v2204 = vld [vmem:[%s2199 + $0x20] sm:$0xff]
    %v2205 = vld [vmem:[%s2199 + $0x28] sm:$0xff]
    %v2206 = vld [vmem:[%s2199 + $0x30] sm:$0xff]
    %v2207 = vld [vmem:[%s2199 + $0x38] sm:$0xff]
    %v2208 = vld [vmem:[%s2199 + $0x40] sm:$0xff]
    %v2209 = vld [vmem:[%s2199 + $0x48] sm:$0xff]
    %v2210 = vld [vmem:[%s2199 + $0x50] sm:$0xff]
    %v2211 = vld [vmem:[%s2199 + $0x58] sm:$0xff]
    %v2212 = vld [vmem:[%s2199 + $0x60] sm:$0xff]
    %v2213 = vld [vmem:[%s2199 + $0x68] sm:$0xff]
    %v2214 = vld [vmem:[%s2199 + $0x70] sm:$0xff]
    %v2215 = vld [vmem:[%s2199 + $0x78] sm:$0xff]
    %v2216 = vld [vmem:[%s2199 + $0x80] sm:$0xff]
    %v2217 = vld [vmem:[%s2199 + $0x88] sm:$0xff]
    %v2218 = vld [vmem:[%s2199 + $0x90] sm:$0xff]
    %v2219 = vld [vmem:[%s2199 + $0x98] sm:$0xff]
    %v2220 = vld [vmem:[%s2199 + $0xa0] sm:$0xff]
    %v2221 = vld [vmem:[%s2199 + $0xa8] sm:$0xff]
    %v2222 = vld [vmem:[%s2199 + $0xb0] sm:$0xff]
    %v2223 = vld [vmem:[%s2199 + $0xb8] sm:$0xff]
    %v2224 = vld [vmem:[%s2199 + $0xc0] sm:$0xff]
    %v2225 = vld [vmem:[%s2199 + $0xc8] sm:$0xff]
    %v2226 = vld [vmem:[%s2199 + $0xd0] sm:$0xff]
    %v2227 = vld [vmem:[%s2199 + $0xd8] sm:$0xff]
    %v2228 = vld [vmem:[%s2199 + $0xe0] sm:$0xff]
    %v2229 = vld [vmem:[%s2199 + $0xe8] sm:$0xff]
    %v2230 = vld [vmem:[%s2199 + $0xf0] sm:$0xff]
    %v2231 = vld [vmem:[%s2199 + $0xf8] sm:$0xff]
    %v2232 = vld [vmem:[%s2199 + $0x100] sm:$0xff]
    %v2233 = vld [vmem:[%s2199 + $0x108] sm:$0xff]
    %v2234 = vld [vmem:[%s2199 + $0x110] sm:$0xff]
    %v2235 = vld [vmem:[%s2199 + $0x118] sm:$0xff]
    %v2236 = vld [vmem:[%s2199 + $0x120] sm:$0xff]
    %v2237 = vld [vmem:[%s2199 + $0x128] sm:$0xff]
    %v2238 = vld [vmem:[%s2199 + $0x130] sm:$0xff]
    %v2239 = vld [vmem:[%s2199 + $0x138] sm:$0xff]
    %v2240 = vld [vmem:[%s2199 + $0x140] sm:$0xff]
    %v2241 = vld [vmem:[%s2199 + $0x148] sm:$0xff]
    %v2242 = vld [vmem:[%s2199 + $0x150] sm:$0xff]
    %v2243 = vld [vmem:[%s2199 + $0x158] sm:$0xff]
    %v2244 = vld [vmem:[%s2199 + $0x160] sm:$0xff]
    %v2245 = vld [vmem:[%s2199 + $0x168] sm:$0xff]
    %v2246 = vld [vmem:[%s2199 + $0x170] sm:$0xff]
    %v2247 = vld [vmem:[%s2199 + $0x178] sm:$0xff]
    %v2248 = vld [vmem:[%s2199 + $0x180] sm:$0xff]
    %v2249 = vld [vmem:[%s2199 + $0x188] sm:$0xff]
    %v2250 = vld [vmem:[%s2199 + $0x190] sm:$0xff]
    %v2251 = vld [vmem:[%s2199 + $0x198] sm:$0xff]
    %v2252 = vld [vmem:[%s2199 + $0x1a0] sm:$0xff]
    %v2253 = vld [vmem:[%s2199 + $0x1a8] sm:$0xff]
    %v2254 = vld [vmem:[%s2199 + $0x1b0] sm:$0xff]
    %v2255 = vld [vmem:[%s2199 + $0x1b8] sm:$0xff]
    %v2256 = vld [vmem:[%s2199 + $0x1c0] sm:$0xff]
    %v2257 = vld [vmem:[%s2199 + $0x1c8] sm:$0xff]
    %v2258 = vld [vmem:[%s2199 + $0x1d0] sm:$0xff]
    %v2259 = vld [vmem:[%s2199 + $0x1d8] sm:$0xff]
    %v2260 = vld [vmem:[%s2199 + $0x1e0] sm:$0xff]
    %v2261 = vld [vmem:[%s2199 + $0x1e8] sm:$0xff]
    %v2262 = vld [vmem:[%s2199 + $0x1f0] sm:$0xff]
    %v2263 = vld [vmem:[%s2199 + $0x1f8] sm:$0xff]
    %2264 = vmatprep.subr.mxu0 %v2201
    %2265 = vmatpush1.msra.mxu0 %v2200
    %2266 = vmatprep.subr.mxu0 %v2203
    %2267 = vmatpush1.msra.mxu0 %v2202
    %2268 = vmatprep.subr.mxu0 %v2205
    %2269 = vmatpush1.msra.mxu0 %v2204
    %2270 = vmatprep.subr.mxu0 %v2207
    %2271 = vmatpush1.msra.mxu0 %v2206
    %2272 = vmatprep.subr.mxu0 %v2209
    %2273 = vmatpush1.msra.mxu0 %v2208
    %2274 = vmatprep.subr.mxu0 %v2211
    %2275 = vmatpush1.msra.mxu0 %v2210
    %2276 = vmatprep.subr.mxu0 %v2213
    %2277 = vmatpush1.msra.mxu0 %v2212
    %2278 = vmatprep.subr.mxu0 %v2215
    %2279 = vmatpush1.msra.mxu0 %v2214
    %2280 = vmatprep.subr.mxu0 %v2217
    %2281 = vmatpush1.msra.mxu0 %v2216
    %2282 = vmatprep.subr.mxu0 %v2219
    %2283 = vmatpush1.msra.mxu0 %v2218
    %2284 = vmatprep.subr.mxu0 %v2221
    %2285 = vmatpush1.msra.mxu0 %v2220
    %2286 = vmatprep.subr.mxu0 %v2223
    %2287 = vmatpush1.msra.mxu0 %v2222
    %2288 = vmatprep.subr.mxu0 %v2225
    %2289 = vmatpush1.msra.mxu0 %v2224
    %2290 = vmatprep.subr.mxu0 %v2227
    %2291 = vmatpush1.msra.mxu0 %v2226
    %2292 = vmatprep.subr.mxu0 %v2229
    %2293 = vmatpush1.msra.mxu0 %v2228
    %2294 = vmatprep.subr.mxu0 %v2231
    %2295 = vmatpush1.msra.mxu0 %v2230
    %2296 = vmatprep.subr.mxu0 %v2233
    %2297 = vmatpush1.msra.mxu0 %v2232
    %2298 = vmatprep.subr.mxu0 %v2235
    %2299 = vmatpush1.msra.mxu0 %v2234
    %2300 = vmatprep.subr.mxu0 %v2237
    %2301 = vmatpush1.msra.mxu0 %v2236
    %2302 = vmatprep.subr.mxu0 %v2239
    %2303 = vmatpush1.msra.mxu0 %v2238
    %2304 = vmatprep.subr.mxu0 %v2241
    %2305 = vmatpush1.msra.mxu0 %v2240
    %2306 = vmatprep.subr.mxu0 %v2243
    %2307 = vmatpush1.msra.mxu0 %v2242
    %2308 = vmatprep.subr.mxu0 %v2245
    %2309 = vmatpush1.msra.mxu0 %v2244
    %2310 = vmatprep.subr.mxu0 %v2247
    %2311 = vmatpush1.msra.mxu0 %v2246
    %2312 = vmatprep.subr.mxu0 %v2249
    %2313 = vmatpush1.msra.mxu0 %v2248
    %2314 = vmatprep.subr.mxu0 %v2251
    %2315 = vmatpush1.msra.mxu0 %v2250
    %2316 = vmatprep.subr.mxu0 %v2253
    %2317 = vmatpush1.msra.mxu0 %v2252
    %2318 = vmatprep.subr.mxu0 %v2255
    %2319 = vmatpush1.msra.mxu0 %v2254
    %2320 = vmatprep.subr.mxu0 %v2257
    %2321 = vmatpush1.msra.mxu0 %v2256
    %2322 = vmatprep.subr.mxu0 %v2259
    %2323 = vmatpush1.msra.mxu0 %v2258
    %2324 = vmatprep.subr.mxu0 %v2261
    %2325 = vmatpush1.msra.mxu0 %v2260
    %2326 = vmatprep.subr.mxu0 %v2263
    %2327 = vmatpush1.msra.mxu0 %v2262
    %2328 = vmatprep.mubr.f32.mxu0 %v2198
    %2329 = vmatmul.mubr.f32.gmra.mrb[0].mxu0 %v2197
    %v2330 = vpop.f32.mrb[0].mxu0
    %v2331 = vadd.f32 0.0, %v2330
    %v2332 = vpop.f32.mrb[0].mxu0
    %v2333 = vadd.f32 0.0, %v2332
    %2334 = vdwg.mxu0
    %v2335 = vadd.f32 %v2193, %v2331
    %v2336 = vadd.f32 %v2195, %v2333
    %v2337 = vld [vmem:[#allocation16] sm:$0x3]
    %v2339 = vlaneseq
    %v2340 = vshrl.u32 %v2339, 7
    %v2341 = vsub.s32 0, %v2340
    %v2342 = vrot.slane %v2337, %v2341
    %v2343 = vlaneseq
    %v2344 = vshrl.u32 %v2343, 7
    %v2345 = vsub.s32 1, %v2344
    %v2346 = vrot.slane %v2337, %v2345
    %v2349 = vadd.f32 %v2335, %v2342
    %v2350 = vadd.f32 %v2336, %v2346
    %v2353 = vrot.slane %v2349, 2
    %v2354 = vrot.slane %v2350, 2
    %v2357 = vmax.f32 %v2349, %v2353
    %v2358 = vmax.f32 %v2350, %v2354
    %v2359 = vmax.f32 %v2357, %v2358
    %v2360 = vmax.f32 %v2359, 0.0
    %v2361 = vld [vmem:[#allocation18] sm:$0xff]
    %v2362 = vld [vmem:[#allocation18 + $0x8] sm:$0xff]
    %v2363 = vld [vmem:[#allocation18 + $0x10] sm:$0xff]
    %v2364 = vld [vmem:[#allocation18 + $0x18] sm:$0xff]
    %v2365 = vld [vmem:[#allocation18 + $0x20] sm:$0xff]
    %v2366 = vld [vmem:[#allocation18 + $0x28] sm:$0xff]
    %v2367 = vld [vmem:[#allocation18 + $0x30] sm:$0xff]
    %v2368 = vld [vmem:[#allocation18 + $0x38] sm:$0xff]
    %v2369 = vld [vmem:[#allocation18 + $0x40] sm:$0xff]
    %v2370 = vld [vmem:[#allocation18 + $0x48] sm:$0xff]
    %v2371 = vld [vmem:[#allocation18 + $0x50] sm:$0xff]
    %v2372 = vld [vmem:[#allocation18 + $0x58] sm:$0xff]
    %v2373 = vld [vmem:[#allocation18 + $0x60] sm:$0xff]
    %v2374 = vld [vmem:[#allocation18 + $0x68] sm:$0xff]
    %v2375 = vld [vmem:[#allocation18 + $0x70] sm:$0xff]
    %v2376 = vld [vmem:[#allocation18 + $0x78] sm:$0xff]
    %s2377 = scalar_lea.vmem [#allocation18], 128
    %v2378 = vld [vmem:[%s2377] sm:$0xff]
    %v2379 = vld [vmem:[%s2377 + $0x8] sm:$0xff]
    %v2380 = vld [vmem:[%s2377 + $0x10] sm:$0xff]
    %v2381 = vld [vmem:[%s2377 + $0x18] sm:$0xff]
    %v2382 = vld [vmem:[%s2377 + $0x20] sm:$0xff]
    %v2383 = vld [vmem:[%s2377 + $0x28] sm:$0xff]
    %v2384 = vld [vmem:[%s2377 + $0x30] sm:$0xff]
    %v2385 = vld [vmem:[%s2377 + $0x38] sm:$0xff]
    %v2386 = vld [vmem:[%s2377 + $0x40] sm:$0xff]
    %v2387 = vld [vmem:[%s2377 + $0x48] sm:$0xff]
    %v2388 = vld [vmem:[%s2377 + $0x50] sm:$0xff]
    %v2389 = vld [vmem:[%s2377 + $0x58] sm:$0xff]
    %v2390 = vld [vmem:[%s2377 + $0x60] sm:$0xff]
    %v2391 = vld [vmem:[%s2377 + $0x68] sm:$0xff]
    %v2392 = vld [vmem:[%s2377 + $0x70] sm:$0xff]
    %v2393 = vld [vmem:[%s2377 + $0x78] sm:$0xff]
    %v2395 = vrot.slane %v2360, 4
    %2397 = vmatprep.subr.mxu0 0.0
    %2398 = vmatpush1.msra.mxu0 %v2378
    %2399 = vmatprep.subr.mxu0 0.0
    %2400 = vmatpush1.msra.mxu0 %v2379
    %2401 = vmatprep.subr.mxu0 0.0
    %2402 = vmatpush1.msra.mxu0 %v2380
    %2403 = vmatprep.subr.mxu0 0.0
    %2404 = vmatpush1.msra.mxu0 %v2381
    %2405 = vmatprep.subr.mxu0 0.0
    %2406 = vmatpush1.msra.mxu0 %v2382
    %2407 = vmatprep.subr.mxu0 0.0
    %2408 = vmatpush1.msra.mxu0 %v2383
    %2409 = vmatprep.subr.mxu0 0.0
    %2410 = vmatpush1.msra.mxu0 %v2384
    %2411 = vmatprep.subr.mxu0 0.0
    %2412 = vmatpush1.msra.mxu0 %v2385
    %2413 = vmatprep.subr.mxu0 0.0
    %2414 = vmatpush1.msra.mxu0 %v2386
    %2415 = vmatprep.subr.mxu0 0.0
    %2416 = vmatpush1.msra.mxu0 %v2387
    %2417 = vmatprep.subr.mxu0 0.0
    %2418 = vmatpush1.msra.mxu0 %v2388
    %2419 = vmatprep.subr.mxu0 0.0
    %2420 = vmatpush1.msra.mxu0 %v2389
    %2421 = vmatprep.subr.mxu0 0.0
    %2422 = vmatpush1.msra.mxu0 %v2390
    %2423 = vmatprep.subr.mxu0 0.0
    %2424 = vmatpush1.msra.mxu0 %v2391
    %2425 = vmatprep.subr.mxu0 0.0
    %2426 = vmatpush1.msra.mxu0 %v2392
    %2427 = vmatprep.subr.mxu0 0.0
    %2428 = vmatpush1.msra.mxu0 %v2393
    %2429 = vmatprep.subr.mxu0 0.0
    %2430 = vmatpush1.msra.mxu0 0.0
    %2431 = vmatprep.subr.mxu0 0.0
    %2432 = vmatpush1.msra.mxu0 0.0
    %2433 = vmatprep.subr.mxu0 0.0
    %2434 = vmatpush1.msra.mxu0 0.0
    %2435 = vmatprep.subr.mxu0 0.0
    %2436 = vmatpush1.msra.mxu0 0.0
    %2437 = vmatprep.subr.mxu0 0.0
    %2438 = vmatpush1.msra.mxu0 0.0
    %2439 = vmatprep.subr.mxu0 0.0
    %2440 = vmatpush1.msra.mxu0 0.0
    %2441 = vmatprep.subr.mxu0 0.0
    %2442 = vmatpush1.msra.mxu0 0.0
    %2443 = vmatprep.subr.mxu0 0.0
    %2444 = vmatpush1.msra.mxu0 0.0
    %2445 = vmatprep.subr.mxu0 0.0
    %2446 = vmatpush1.msra.mxu0 0.0
    %2447 = vmatprep.subr.mxu0 0.0
    %2448 = vmatpush1.msra.mxu0 0.0
    %2449 = vmatprep.subr.mxu0 0.0
    %2450 = vmatpush1.msra.mxu0 0.0
    %2451 = vmatprep.subr.mxu0 0.0
    %2452 = vmatpush1.msra.mxu0 0.0
    %2453 = vmatprep.subr.mxu0 0.0
    %2454 = vmatpush1.msra.mxu0 0.0
    %2455 = vmatprep.subr.mxu0 0.0
    %2456 = vmatpush1.msra.mxu0 0.0
    %2457 = vmatprep.subr.mxu0 0.0
    %2458 = vmatpush1.msra.mxu0 0.0
    %2459 = vmatprep.subr.mxu0 0.0
    %2460 = vmatpush1.msra.mxu0 0.0
    %2461 = vmatprep.mubr.f32.mxu0 0.0
    %2462 = vmatmul.mubr.f32.gmra.mrb[0].mxu0 %v2395
    %v2463 = vpop.f32.mrb[0].mxu0
    %v2464 = vadd.f32 0.0, %v2463
    %v2465 = vpop.f32.mrb[0].mxu0
    %2466 = vdwg.mxu0
    %2467 = vmatprep.subr.mxu0 0.0
    %2468 = vmatpush1.msra.mxu0 %v2361
    %2469 = vmatprep.subr.mxu0 0.0
    %2470 = vmatpush1.msra.mxu0 %v2362
    %2471 = vmatprep.subr.mxu0 0.0
    %2472 = vmatpush1.msra.mxu0 %v2363
    %2473 = vmatprep.subr.mxu0 0.0
    %2474 = vmatpush1.msra.mxu0 %v2364
    %2475 = vmatprep.subr.mxu0 0.0
    %2476 = vmatpush1.msra.mxu0 %v2365
    %2477 = vmatprep.subr.mxu0 0.0
    %2478 = vmatpush1.msra.mxu0 %v2366
    %2479 = vmatprep.subr.mxu0 0.0
    %2480 = vmatpush1.msra.mxu0 %v2367
    %2481 = vmatprep.subr.mxu0 0.0
    %2482 = vmatpush1.msra.mxu0 %v2368
    %2483 = vmatprep.subr.mxu0 0.0
    %2484 = vmatpush1.msra.mxu0 %v2369
    %2485 = vmatprep.subr.mxu0 0.0
    %2486 = vmatpush1.msra.mxu0 %v2370
    %2487 = vmatprep.subr.mxu0 0.0
    %2488 = vmatpush1.msra.mxu0 %v2371
    %2489 = vmatprep.subr.mxu0 0.0
    %2490 = vmatpush1.msra.mxu0 %v2372
    %2491 = vmatprep.subr.mxu0 0.0
    %2492 = vmatpush1.msra.mxu0 %v2373
    %2493 = vmatprep.subr.mxu0 0.0
    %2494 = vmatpush1.msra.mxu0 %v2374
    %2495 = vmatprep.subr.mxu0 0.0
    %2496 = vmatpush1.msra.mxu0 %v2375
    %2497 = vmatprep.subr.mxu0 0.0
    %2498 = vmatpush1.msra.mxu0 %v2376
    %2499 = vmatprep.subr.mxu0 0.0
    %2500 = vmatpush1.msra.mxu0 0.0
    %2501 = vmatprep.subr.mxu0 0.0
    %2502 = vmatpush1.msra.mxu0 0.0
    %2503 = vmatprep.subr.mxu0 0.0
    %2504 = vmatpush1.msra.mxu0 0.0
    %2505 = vmatprep.subr.mxu0 0.0
    %2506 = vmatpush1.msra.mxu0 0.0
    %2507 = vmatprep.subr.mxu0 0.0
    %2508 = vmatpush1.msra.mxu0 0.0
    %2509 = vmatprep.subr.mxu0 0.0
    %2510 = vmatpush1.msra.mxu0 0.0
    %2511 = vmatprep.subr.mxu0 0.0
    %2512 = vmatpush1.msra.mxu0 0.0
    %2513 = vmatprep.subr.mxu0 0.0
    %2514 = vmatpush1.msra.mxu0 0.0
    %2515 = vmatprep.subr.mxu0 0.0
    %2516 = vmatpush1.msra.mxu0 0.0
    %2517 = vmatprep.subr.mxu0 0.0
    %2518 = vmatpush1.msra.mxu0 0.0
    %2519 = vmatprep.subr.mxu0 0.0
    %2520 = vmatpush1.msra.mxu0 0.0
    %2521 = vmatprep.subr.mxu0 0.0
    %2522 = vmatpush1.msra.mxu0 0.0
    %2523 = vmatprep.subr.mxu0 0.0
    %2524 = vmatpush1.msra.mxu0 0.0
    %2525 = vmatprep.subr.mxu0 0.0
    %2526 = vmatpush1.msra.mxu0 0.0
    %2527 = vmatprep.subr.mxu0 0.0
    %2528 = vmatpush1.msra.mxu0 0.0
    %2529 = vmatprep.subr.mxu0 0.0
    %2530 = vmatpush1.msra.mxu0 0.0
    %2531 = vmatprep.mubr.f32.mxu0 0.0
    %2532 = vmatmul.mubr.f32.gmra.mrb[0].mxu0 %v2360
    %v2533 = vpop.f32.mrb[0].mxu0
    %v2534 = vadd.f32 %v2464, %v2533
    %v2535 = vpop.f32.mrb[0].mxu0
    %2536 = vdwg.mxu0
    %v2537 = vld [vmem:[#allocation19] sm:$0x1]
    %v2539 = vlaneseq
    %v2540 = vshrl.u32 %v2539, 7
    %v2541 = vsub.s32 0, %v2540
    %v2542 = vrot.slane %v2537, %v2541
    %v2544 = vadd.f32 %v2534, %v2542
    %v2545 = vmax.f32 %v2544, 0.0
    %v2546 = vld [vmem:[#allocation21] sm:$0xff]
    %v2547 = vld [vmem:[#allocation21 + $0x8] sm:$0xff]
    %v2548 = vld [vmem:[#allocation21 + $0x10] sm:$0xff]
    %v2549 = vld [vmem:[#allocation21 + $0x18] sm:$0xff]
    %v2550 = vld [vmem:[#allocation21 + $0x20] sm:$0xff]
    %v2551 = vld [vmem:[#allocation21 + $0x28] sm:$0xff]
    %v2552 = vld [vmem:[#allocation21 + $0x30] sm:$0xff]
    %v2553 = vld [vmem:[#allocation21 + $0x38] sm:$0xff]
    %v2554 = vld [vmem:[#allocation21 + $0x40] sm:$0xff]
    %v2555 = vld [vmem:[#allocation21 + $0x48] sm:$0xff]
    %v2556 = vld [vmem:[#allocation21 + $0x50] sm:$0xff]
    %v2557 = vld [vmem:[#allocation21 + $0x58] sm:$0xff]
    %v2558 = vld [vmem:[#allocation21 + $0x60] sm:$0xff]
    %v2559 = vld [vmem:[#allocation21 + $0x68] sm:$0xff]
    %v2560 = vld [vmem:[#allocation21 + $0x70] sm:$0xff]
    %v2561 = vld [vmem:[#allocation21 + $0x78] sm:$0xff]
    %v2562 = vld [vmem:[#allocation22] sm:$0x1]
    %v2564 = vlaneseq
    %v2565 = vshrl.u32 %v2564, 7
    %v2566 = vsub.s32 0, %v2565
    %v2567 = vrot.slane %v2562, %v2566
    %2569 = vmatprep.subr.mxu0 0.0
    %2570 = vmatpush1.msra.mxu0 %v2546
    %2571 = vmatprep.subr.mxu0 0.0
    %2572 = vmatpush1.msra.mxu0 %v2547
    %2573 = vmatprep.subr.mxu0 0.0
    %2574 = vmatpush1.msra.mxu0 %v2548
    %2575 = vmatprep.subr.mxu0 0.0
    %2576 = vmatpush1.msra.mxu0 %v2549
    %2577 = vmatprep.subr.mxu0 0.0
    %2578 = vmatpush1.msra.mxu0 %v2550
    %2579 = vmatprep.subr.mxu0 0.0
    %2580 = vmatpush1.msra.mxu0 %v2551
    %2581 = vmatprep.subr.mxu0 0.0
    %2582 = vmatpush1.msra.mxu0 %v2552
    %2583 = vmatprep.subr.mxu0 0.0
    %2584 = vmatpush1.msra.mxu0 %v2553
    %2585 = vmatprep.subr.mxu0 0.0
    %2586 = vmatpush1.msra.mxu0 %v2554
    %2587 = vmatprep.subr.mxu0 0.0
    %2588 = vmatpush1.msra.mxu0 %v2555
    %2589 = vmatprep.subr.mxu0 0.0
    %2590 = vmatpush1.msra.mxu0 %v2556
    %2591 = vmatprep.subr.mxu0 0.0
    %2592 = vmatpush1.msra.mxu0 %v2557
    %2593 = vmatprep.subr.mxu0 0.0
    %2594 = vmatpush1.msra.mxu0 %v2558
    %2595 = vmatprep.subr.mxu0 0.0
    %2596 = vmatpush1.msra.mxu0 %v2559
    %2597 = vmatprep.subr.mxu0 0.0
    %2598 = vmatpush1.msra.mxu0 %v2560
    %2599 = vmatprep.subr.mxu0 0.0
    %2600 = vmatpush1.msra.mxu0 %v2561
    %2601 = vmatprep.subr.mxu0 0.0
    %2602 = vmatpush1.msra.mxu0 0.0
    %2603 = vmatprep.subr.mxu0 0.0
    %2604 = vmatpush1.msra.mxu0 0.0
    %2605 = vmatprep.subr.mxu0 0.0
    %2606 = vmatpush1.msra.mxu0 0.0
    %2607 = vmatprep.subr.mxu0 0.0
    %2608 = vmatpush1.msra.mxu0 0.0
    %2609 = vmatprep.subr.mxu0 0.0
    %2610 = vmatpush1.msra.mxu0 0.0
    %2611 = vmatprep.subr.mxu0 0.0
    %2612 = vmatpush1.msra.mxu0 0.0
    %2613 = vmatprep.subr.mxu0 0.0
    %2614 = vmatpush1.msra.mxu0 0.0
    %2615 = vmatprep.subr.mxu0 0.0
    %2616 = vmatpush1.msra.mxu0 0.0
    %2617 = vmatprep.subr.mxu0 0.0
    %2618 = vmatpush1.msra.mxu0 0.0
    %2619 = vmatprep.subr.mxu0 0.0
    %2620 = vmatpush1.msra.mxu0 0.0
    %2621 = vmatprep.subr.mxu0 0.0
    %2622 = vmatpush1.msra.mxu0 0.0
    %2623 = vmatprep.subr.mxu0 0.0
    %2624 = vmatpush1.msra.mxu0 0.0
    %2625 = vmatprep.subr.mxu0 0.0
    %2626 = vmatpush1.msra.mxu0 0.0
    %2627 = vmatprep.subr.mxu0 0.0
    %2628 = vmatpush1.msra.mxu0 0.0
    %2629 = vmatprep.subr.mxu0 0.0
    %2630 = vmatpush1.msra.mxu0 0.0
    %2631 = vmatprep.subr.mxu0 0.0
    %2632 = vmatpush1.msra.mxu0 0.0
    %2633 = vmatprep.mubr.f32.mxu0 0.0
    %2634 = vmatmul.mubr.f32.gmra.mrb[0].mxu0 %v2545
    %v2635 = vpop.f32.mrb[0].mxu0
    %v2636 = vadd.f32 %v2567, %v2635
    %v2637 = vpop.f32.mrb[0].mxu0
    %2638 = vdwg.mxu0
    %v2639 = vmax.f32 %v2636, 0.0
    %v2640 = vld [vmem:[#allocation24] sm:$0xff]
    %v2641 = vld [vmem:[#allocation24 + $0x8] sm:$0xff]
    %v2642 = vld [vmem:[#allocation24 + $0x10] sm:$0xff]
    %v2643 = vld [vmem:[#allocation24 + $0x18] sm:$0xff]
    %v2644 = vld [vmem:[#allocation24 + $0x20] sm:$0xff]
    %v2645 = vld [vmem:[#allocation24 + $0x28] sm:$0xff]
    %v2646 = vld [vmem:[#allocation24 + $0x30] sm:$0xff]
    %v2647 = vld [vmem:[#allocation24 + $0x38] sm:$0xff]
    %v2648 = vld [vmem:[#allocation24 + $0x40] sm:$0xff]
    %v2649 = vld [vmem:[#allocation24 + $0x48] sm:$0xff]
    %v2650 = vld [vmem:[#allocation24 + $0x50] sm:$0xff]
    %v2651 = vld [vmem:[#allocation24 + $0x58] sm:$0xff]
    %v2652 = vld [vmem:[#allocation24 + $0x60] sm:$0xff]
    %v2653 = vld [vmem:[#allocation24 + $0x68] sm:$0xff]
    %v2654 = vld [vmem:[#allocation24 + $0x70] sm:$0xff]
    %v2655 = vld [vmem:[#allocation24 + $0x78] sm:$0xff]
    %v2656 = vld [vmem:[#allocation25] sm:$0x1]
    %v2658 = vlaneseq
    %v2659 = vshrl.u32 %v2658, 7
    %v2660 = vsub.s32 0, %v2659
    %v2661 = vrot.slane %v2656, %v2660
    %2663 = vmatprep.subr.mxu0 0.0
    %2664 = vmatpush1.msra.mxu0 %v2640
    %2665 = vmatprep.subr.mxu0 0.0
    %2666 = vmatpush1.msra.mxu0 %v2641
    %2667 = vmatprep.subr.mxu0 0.0
    %2668 = vmatpush1.msra.mxu0 %v2642
    %2669 = vmatprep.subr.mxu0 0.0
    %2670 = vmatpush1.msra.mxu0 %v2643
    %2671 = vmatprep.subr.mxu0 0.0
    %2672 = vmatpush1.msra.mxu0 %v2644
    %2673 = vmatprep.subr.mxu0 0.0
    %2674 = vmatpush1.msra.mxu0 %v2645
    %2675 = vmatprep.subr.mxu0 0.0
    %2676 = vmatpush1.msra.mxu0 %v2646
    %2677 = vmatprep.subr.mxu0 0.0
    %2678 = vmatpush1.msra.mxu0 %v2647
    %2679 = vmatprep.subr.mxu0 0.0
    %2680 = vmatpush1.msra.mxu0 %v2648
    %2681 = vmatprep.subr.mxu0 0.0
    %2682 = vmatpush1.msra.mxu0 %v2649
    %2683 = vmatprep.subr.mxu0 0.0
    %2684 = vmatpush1.msra.mxu0 %v2650
    %2685 = vmatprep.subr.mxu0 0.0
    %2686 = vmatpush1.msra.mxu0 %v2651
    %2687 = vmatprep.subr.mxu0 0.0
    %2688 = vmatpush1.msra.mxu0 %v2652
    %2689 = vmatprep.subr.mxu0 0.0
    %2690 = vmatpush1.msra.mxu0 %v2653
    %2691 = vmatprep.subr.mxu0 0.0
    %2692 = vmatpush1.msra.mxu0 %v2654
    %2693 = vmatprep.subr.mxu0 0.0
    %2694 = vmatpush1.msra.mxu0 %v2655
    %2695 = vmatprep.subr.mxu0 0.0
    %2696 = vmatpush1.msra.mxu0 0.0
    %2697 = vmatprep.subr.mxu0 0.0
    %2698 = vmatpush1.msra.mxu0 0.0
    %2699 = vmatprep.subr.mxu0 0.0
    %2700 = vmatpush1.msra.mxu0 0.0
    %2701 = vmatprep.subr.mxu0 0.0
    %2702 = vmatpush1.msra.mxu0 0.0
    %2703 = vmatprep.subr.mxu0 0.0
    %2704 = vmatpush1.msra.mxu0 0.0
    %2705 = vmatprep.subr.mxu0 0.0
    %2706 = vmatpush1.msra.mxu0 0.0
    %2707 = vmatprep.subr.mxu0 0.0
    %2708 = vmatpush1.msra.mxu0 0.0
    %2709 = vmatprep.subr.mxu0 0.0
    %2710 = vmatpush1.msra.mxu0 0.0
    %2711 = vmatprep.subr.mxu0 0.0
    %2712 = vmatpush1.msra.mxu0 0.0
    %2713 = vmatprep.subr.mxu0 0.0
    %2714 = vmatpush1.msra.mxu0 0.0
    %2715 = vmatprep.subr.mxu0 0.0
    %2716 = vmatpush1.msra.mxu0 0.0
    %2717 = vmatprep.subr.mxu0 0.0
    %2718 = vmatpush1.msra.mxu0 0.0
    %2719 = vmatprep.subr.mxu0 0.0
    %2720 = vmatpush1.msra.mxu0 0.0
    %2721 = vmatprep.subr.mxu0 0.0
    %2722 = vmatpush1.msra.mxu0 0.0
    %2723 = vmatprep.subr.mxu0 0.0
    %2724 = vmatpush1.msra.mxu0 0.0
    %2725 = vmatprep.subr.mxu0 0.0
    %2726 = vmatpush1.msra.mxu0 0.0
    %2727 = vmatprep.mubr.f32.mxu0 0.0
    %2728 = vmatmul.mubr.f32.gmra.mrb[0].mxu0 %v2639
    %v2729 = vpop.f32.mrb[0].mxu0
    %v2730 = vadd.f32 %v2661, %v2729
    %v2731 = vpop.f32.mrb[0].mxu0
    %2732 = vdwg.mxu0
    %2733 = vst [vmem:[#allocation27] sm:$0x3] %v2730
    // Predicated region
    $region102: #{net_forward.1} parent=1 // pred_check
      _
    $region103: #{net_forward.1} parent=1 // pred_check_branch
      %2735 = sbr.rel (0) target = $region105
    $region104: #{net_forward.1} parent=1 // pred_region
      %s2737 = ssub.s32 32, 32
      %2738 = vsyncadd [#allocation9], %s2737
      %s2740 = sshll.u32 [#allocation27], 4
      %s2741 = int_to_ptr.vmem [resolvable:$true] %s2740
      %2743 = dma.vmem_to_hbm [thread:$0]  %s2741, 32, %s13, [#allocation9]
    $region105: #{net_forward.1} parent=1 // pred_fallthru
      _
    // Predicated region
    $region106: #{net_forward.1} parent=1 // pred_check
      _
    $region107: #{net_forward.1} parent=1 // pred_check_branch
      %2745 = sbr.rel (0) target = $region109
    $region108: #{net_forward.1} parent=1 // pred_region
      %2746 = dma.done [#allocation9], 32
    $region109: #{net_forward.1} parent=1 // pred_fallthru
      _
    %2747 = vsyncpa [#allocation8], 1
    %2748 = vsyncpa [#allocation11], 1
    %2749 = vsyncpa [#allocation14], 1
    %2750 = vsyncpa [#allocation17], 1
    %2751 = vsyncpa [#allocation20], 1
    %2752 = vsyncpa [#allocation23], 1
    %2753 = vsyncpa [#allocation26], 1
    %2754 = vsyncpa [#allocation9], 1

</llo_original>
